<compile_context>
chip_gen: v7x
topology: tpu7x:2x2x1
jax: 0.10.0
libtpu: 0.0.40
codegen_flags: <defaults>
</compile_context>

<pallas_src>
import math
import functools

import jax
import jax.numpy as jnp
from jax.experimental import pallas as pl
from jax.experimental.pallas import tpu as pltpu

_EPS = 1e-5


# ----------------------------- in-kernel helpers -----------------------------

def _ln(x, g, b, eps=_EPS):
    mu = jnp.mean(x, axis=-1, keepdims=True)
    var = jnp.mean((x - mu) ** 2, axis=-1, keepdims=True)
    return (x - mu) * jax.lax.rsqrt(var + eps) * g + b


def _dot(a, w, b=None):
    """a [M,K] (f32) @ w [K,N] (bf16) with f32 accumulation (+ optional bias)."""
    y = jnp.dot(a.astype(jnp.bfloat16), w, preferred_element_type=jnp.float32)
    if b is not None:
        y = y + b
    return y


def _mha(q, k, v, num_heads, causal):
    """q:[Tq,E] (scale already folded into W_q), k/v:[Tk,E] f32 -> [Tq,E] f32.

    All heads are computed with one batched einsum pair instead of a per-head
    loop of K=dh matmuls."""
    Tq, E = q.shape
    Tk = k.shape[0]
    dh = E // num_heads

    def split(x):  # [T,E] -> [H,T,dh] via static lane slices + leading-dim stack
        return jnp.stack([x[:, h * dh:(h + 1) * dh] for h in range(num_heads)], axis=0)

    qh = split(q).astype(jnp.bfloat16)
    kh = split(k).astype(jnp.bfloat16)
    vh = split(v).astype(jnp.bfloat16)

    s = jnp.einsum("hqd,hkd->hqk", qh, kh, preferred_element_type=jnp.float32)
    if causal:
        row = jax.lax.broadcasted_iota(jnp.int32, (Tq, Tk), 0)
        col = jax.lax.broadcasted_iota(jnp.int32, (Tq, Tk), 1)
        s = s + jnp.where(col > row, -1e9, 0.0).astype(jnp.float32)[None]
    m = jnp.max(s, axis=-1, keepdims=True)
    p = jnp.exp(s - m)
    p = p / jnp.sum(p, axis=-1, keepdims=True)          # exact softmax
    o = jnp.einsum("hqk,hkd->hqd", p.astype(jnp.bfloat16), vh,
                   preferred_element_type=jnp.float32)   # [H,Tq,dh]
    return jnp.concatenate([o[h] for h in range(num_heads)], axis=-1)  # [Tq,E]


# ----------------------------- fused encoder kernel -----------------------------

def _encoder_kernel(x_ref, in_w, in_b, conv_w, conv_b, pe,
                    ln1_g, ln1_b, wqkv, bqkv, wo, bo,
                    ln2_g, ln2_b, w1, b1, w2, b2,
                    lnf_g, lnf_b, o_ref,
                    *, num_layers, num_heads, conv_specs):
    # ---- stem: input projection [T_src, n_mels] -> [T_src, E] ----
    h = _dot(x_ref[...].astype(jnp.float32), in_w[...], in_b[...])

    # ---- Conv1d subsampling (stride + zero-padding via iota selection), fused ReLU ----
    for ci, (ksize, stride, pad, t_in, t_out) in enumerate(conv_specs):
        hb = h.astype(jnp.bfloat16)                 # cast once per conv
        wc = conv_w[ci]                             # [Kmax, Cin, Cout] bf16
        row = jax.lax.broadcasted_iota(jnp.int32, (t_out, t_in), 0)
        col = jax.lax.broadcasted_iota(jnp.int32, (t_out, t_in), 1)
        acc = jnp.zeros((t_out, wc.shape[-1]), jnp.float32)
        for k in range(ksize):
            # sel[t, r] = 1 iff r == stride*t + k - pad  (rows all-zero => zero padding)
            sel = (col == stride * row + (k - pad)).astype(jnp.bfloat16)
            xk = jnp.dot(sel, hb, preferred_element_type=jnp.float32)
            acc = acc + jnp.dot(xk.astype(jnp.bfloat16), wc[k],
                                preferred_element_type=jnp.float32)
        h = jnp.maximum(acc + conv_b[ci], 0.0)      # [t_out, E]

    # ---- positional encoding ----
    h = h + pe[...]

    # ---- transformer encoder layers (pre-norm, relu, dropout=identity) ----
    E = h.shape[-1]
    for l in range(num_layers):
        hn = _ln(h, ln1_g[l], ln1_b[l])
        qkv = _dot(hn, wqkv[l], bqkv[l])            # fused Q|K|V projection
        a = _mha(qkv[:, :E], qkv[:, E:2 * E], qkv[:, 2 * E:], num_heads, causal=False)
        h = h + _dot(a, wo[l], bo[l])
        hn = _ln(h, ln2_g[l], ln2_b[l])
        a = jnp.maximum(_dot(hn, w1[l], b1[l]), 0.0)
        h = h + _dot(a, w2[l], b2[l])

    # ---- final LayerNorm ----
    o_ref[...] = _ln(h, lnf_g[...], lnf_b[...]).astype(o_ref.dtype)


# ----------------------------- fused decoder kernel -----------------------------

def _decoder_kernel(tgt_ref, mem_ref, emb_w, emb_b, pe,
                    ln1_g, ln1_b, sa_wqkv, sa_bqkv, sa_wo, sa_bo,
                    ln2_g, ln2_b, ca_wq, ca_bq, ca_wkv, ca_bkv, ca_wo, ca_bo,
                    ln3_g, ln3_b, w1, b1, w2, b2,
                    lnf_g, lnf_b, ow, ob, o_ref,
                    *, num_layers, num_heads):
    D = emb_w.shape[-1]
    # target embedding + positional encoding
    h = _dot(tgt_ref[...].astype(jnp.float32), emb_w[...], emb_b[...]) + pe[...]
    mem_bf = mem_ref[...].astype(jnp.bfloat16)      # cast memory once

    for l in range(num_layers):
        # causal self-attention
        hn = _ln(h, ln1_g[l], ln1_b[l])
        qkv = _dot(hn, sa_wqkv[l], sa_bqkv[l])
        a = _mha(qkv[:, :D], qkv[:, D:2 * D], qkv[:, 2 * D:], num_heads, causal=True)
        h = h + _dot(a, sa_wo[l], sa_bo[l])
        # cross-attention over encoder memory (requires enc dim == dec dim, as in PyTorch)
        hn = _ln(h, ln2_g[l], ln2_b[l])
        q = _dot(hn, ca_wq[l], ca_bq[l])
        kv = jnp.dot(mem_bf, ca_wkv[l], preferred_element_type=jnp.float32) + ca_bkv[l]
        a = _mha(q, kv[:, :D], kv[:, D:], num_heads, causal=False)
        h = h + _dot(a, ca_wo[l], ca_bo[l])
        # feed-forward
        hn = _ln(h, ln3_g[l], ln3_b[l])
        a = jnp.maximum(_dot(hn, w1[l], b1[l]), 0.0)
        h = h + _dot(a, w2[l], b2[l])

    # final LayerNorm + output projection + softmax
    h = _ln(h, lnf_g[...], lnf_b[...])
    y = _dot(h, ow[...], ob[...])
    m = jnp.max(y, axis=-1, keepdims=True)
    e = jnp.exp(y - m)
    o_ref[...] = (e / jnp.sum(e, axis=-1, keepdims=True)).astype(o_ref.dtype)


# ----------------------------- host-side glue -----------------------------

def sinusoidal_pe(length, d_model):
    # NOTE: assumes even d_model (as in the tested config); odd d_model would
    # need the cos half truncated by one column.
    position = jnp.arange(length, dtype=jnp.float32)[:, None]
    div_term = jnp.exp(jnp.arange(0, d_model, 2, dtype=jnp.float32)
                       * (-math.log(10000.0) / d_model))
    pe = jnp.zeros((length, d_model), jnp.float32)
    pe = pe.at[:, 0::2].set(jnp.sin(position * div_term))
    pe = pe.at[:, 1::2].set(jnp.cos(position * div_term))
    return pe


def _stack(layers, name):
    return jnp.stack([lp[name] for lp in layers], axis=0)


def _const_spec(a):
    nd = a.ndim
    return pl.BlockSpec(a.shape, lambda b, _nd=nd: (0,) * _nd)


def _batch_spec(shape):
    nd = len(shape)
    return pl.BlockSpec((None,) + tuple(shape[1:]),
                        lambda b, _nd=nd: (b,) + (0,) * (_nd - 1))


def _encode(params, cfg, mel):
    B, n_mels, T_src = mel.shape
    E = cfg["encoder_embed_dim"]
    H = cfg["encoder_attention_heads"]
    L = cfg["encoder_layers"]

    x = jnp.transpose(mel, (0, 2, 1)).astype(jnp.float32)          # [B, T_src, n_mels]

    # static conv geometry
    conv_specs = []
    t = T_src
    for c in params["convs"]:
        ks, stride, pad = c["w"].shape[0], c["stride"], c["pad"]
        t_out = (t + 2 * pad - ks) // stride + 1
        conv_specs.append((ks, stride, pad, t, t_out))
        t = t_out
    T_enc = t
    kmax = max(c["w"].shape[0] for c in params["convs"])
    conv_w = jnp.stack(
        [jnp.pad(c["w"], ((0, kmax - c["w"].shape[0]), (0, 0), (0, 0)))
         for c in params["convs"]], axis=0).astype(jnp.bfloat16)    # [C, Kmax, E, E]
    conv_b = jnp.stack([c["b"][None, :] for c in params["convs"]], axis=0)  # [C,1,E]

    pe = sinusoidal_pe(T_enc, E)

    lyr = params["enc_layers"]
    scale = 1.0 / math.sqrt(E // H)
    # fold the attention 1/sqrt(dh) scale into the Q columns of the fused QKV proj
    wqkv = _stack(lyr, "sa_wqkv").at[:, :, :E].multiply(scale).astype(jnp.bfloat16)
    bqkv = _stack(lyr, "sa_bqkv").at[:, :E].multiply(scale)[:, None, :]

    args = [
        x,
        params["enc_in_w"].astype(jnp.bfloat16), params["enc_in_b"][None, :],
        conv_w, conv_b, pe,
        _stack(lyr, "ln1_g")[:, None, :], _stack(lyr, "ln1_b")[:, None, :],
        wqkv, bqkv,
        _stack(lyr, "sa_wo").astype(jnp.bfloat16), _stack(lyr, "sa_bo")[:, None, :],
        _stack(lyr, "ln2_g")[:, None, :], _stack(lyr, "ln2_b")[:, None, :],
        _stack(lyr, "ffn_w1").astype(jnp.bfloat16), _stack(lyr, "ffn_b1")[:, None, :],
        _stack(lyr, "ffn_w2").astype(jnp.bfloat16), _stack(lyr, "ffn_b2")[:, None, :],
        params["enc_ln_g"][None, :], params["enc_ln_b"][None, :],
    ]
    in_specs = [_batch_spec(x.shape)] + [_const_spec(a) for a in args[1:]]

    # TODO(synk): at realistic E/F/L the whole-stack-resident weights would need
    # per-layer streaming / K-tiling; at this config they are a few tens of KiB.
    return pl.pallas_call(
        functools.partial(_encoder_kernel, num_layers=L, num_heads=H,
                          conv_specs=tuple(conv_specs)),
        out_shape=jax.ShapeDtypeStruct((B, T_enc, E), jnp.float32),
        grid=(B,),
        in_specs=in_specs,
        out_specs=pl.BlockSpec((None, T_enc, E), lambda b: (b, 0, 0)),
        compiler_params=pltpu.CompilerParams(dimension_semantics=("parallel",)),
    )(*args)


def _decode(params, cfg, memory, target_soft_units):
    B, T_tgt, O = target_soft_units.shape
    D = cfg["decoder_embed_dim"]
    H = cfg["decoder_attention_heads"]
    L = cfg["decoder_layers"]

    shifted = jnp.concatenate(
        [jnp.zeros((B, 1, O), jnp.float32), target_soft_units[:, :-1, :]], axis=1)
    pe = sinusoidal_pe(T_tgt, D)

    lyr = params["dec_layers"]
    scale = 1.0 / math.sqrt(D // H)
    sa_wqkv = _stack(lyr, "sa_wqkv").at[:, :, :D].multiply(scale).astype(jnp.bfloat16)
    sa_bqkv = _stack(lyr, "sa_bqkv").at[:, :D].multiply(scale)[:, None, :]
    ca_wq = (_stack(lyr, "ca_wq") * scale).astype(jnp.bfloat16)
    ca_bq = (_stack(lyr, "ca_bq") * scale)[:, None, :]

    args = [
        shifted, memory,
        params["tgt_emb_w"].astype(jnp.bfloat16), params["tgt_emb_b"][None, :], pe,
        _stack(lyr, "ln1_g")[:, None, :], _stack(lyr, "ln1_b")[:, None, :],
        sa_wqkv, sa_bqkv,
        _stack(lyr, "sa_wo").astype(jnp.bfloat16), _stack(lyr, "sa_bo")[:, None, :],
        _stack(lyr, "ln2_g")[:, None, :], _stack(lyr, "ln2_b")[:, None, :],
        ca_wq, ca_bq,
        _stack(lyr, "ca_wkv").astype(jnp.bfloat16), _stack(lyr, "ca_bkv")[:, None, :],
        _stack(lyr, "ca_wo").astype(jnp.bfloat16), _stack(lyr, "ca_bo")[:, None, :],
        _stack(lyr, "ln3_g")[:, None, :], _stack(lyr, "ln3_b")[:, None, :],
        _stack(lyr, "ffn_w1").astype(jnp.bfloat16), _stack(lyr, "ffn_b1")[:, None, :],
        _stack(lyr, "ffn_w2").astype(jnp.bfloat16), _stack(lyr, "ffn_b2")[:, None, :],
        params["dec_ln_g"][None, :], params["dec_ln_b"][None, :],
        params["out_proj_w"].astype(jnp.bfloat16), params["out_proj_b"][None, :],
    ]
    in_specs = ([_batch_spec(shifted.shape), _batch_spec(memory.shape)]
                + [_const_spec(a) for a in args[2:]])

    return pl.pallas_call(
        functools.partial(_decoder_kernel, num_layers=L, num_heads=H),
        out_shape=jax.ShapeDtypeStruct((B, T_tgt, O), jnp.float32),
        grid=(B,),
        in_specs=in_specs,
        out_specs=pl.BlockSpec((None, T_tgt, O), lambda b: (b, 0, 0)),
        compiler_params=pltpu.CompilerParams(dimension_semantics=("parallel",)),
    )(*args)


# ----------------------------- parameter init -----------------------------

def init_params(key, cfg):
    keys = iter(jax.random.split(key, 256))

    def w(shape):
        return jax.random.normal(next(keys), shape, jnp.float32) * 0.02

    zeros = lambda s: jnp.zeros(s, jnp.float32)
    ones = lambda s: jnp.ones(s, jnp.float32)

    E = cfg["encoder_embed_dim"]
    D = cfg["decoder_embed_dim"]
    F_e = cfg["encoder_ffn_embed_dim"]
    F_d = cfg["decoder_ffn_embed_dim"]
    O = cfg["output_dim"]

    p = {}
    p["enc_in_w"] = w((cfg["input_feat_per_channel"], E))
    p["enc_in_b"] = zeros((E,))
    p["convs"] = []
    in_dim = E
    for ks in cfg["conv_kernel_sizes"]:
        p["convs"].append(dict(w=w((ks, in_dim, E)), b=zeros((E,)),
                               stride=2, pad=ks // 2))
        in_dim = E
    p["enc_layers"] = []
    for _ in range(cfg["encoder_layers"]):
        p["enc_layers"].append(dict(
            ln1_g=ones((E,)), ln1_b=zeros((E,)),
            sa_wqkv=w((E, 3 * E)), sa_bqkv=zeros((3 * E,)),      # fused Q|K|V
            sa_wo=w((E, E)), sa_bo=zeros((E,)),
            ln2_g=ones((E,)), ln2_b=zeros((E,)),
            ffn_w1=w((E, F_e)), ffn_b1=zeros((F_e,)),
            ffn_w2=w((F_e, E)), ffn_b2=zeros((E,))))
    p["enc_ln_g"] = ones((E,))
    p["enc_ln_b"] = zeros((E,))

    p["tgt_emb_w"] = w((O, D))
    p["tgt_emb_b"] = zeros((D,))
    p["dec_layers"] = []
    for _ in range(cfg["decoder_layers"]):
        p["dec_layers"].append(dict(
            ln1_g=ones((D,)), ln1_b=zeros((D,)),
            sa_wqkv=w((D, 3 * D)), sa_bqkv=zeros((3 * D,)),      # fused Q|K|V
            sa_wo=w((D, D)), sa_bo=zeros((D,)),
            ln2_g=ones((D,)), ln2_b=zeros((D,)),
            ca_wq=w((D, D)), ca_bq=zeros((D,)),
            ca_wkv=w((E, 2 * D)), ca_bkv=zeros((2 * D,)),        # fused K|V on memory
            ca_wo=w((D, D)), ca_bo=zeros((D,)),
            ln3_g=ones((D,)), ln3_b=zeros((D,)),
            ffn_w1=w((D, F_d)), ffn_b1=zeros((F_d,)),
            ffn_w2=w((F_d, D)), ffn_b2=zeros((D,))))
    p["dec_ln_g"] = ones((D,))
    p["dec_ln_b"] = zeros((D,))
    p["out_proj_w"] = w((D, O))
    p["out_proj_b"] = zeros((O,))
    return p


# ----------------------------- model forward -----------------------------

def s2ut_forward(params, cfg, dysarthric_mel, target_soft_units):
    """dysarthric_mel: [B, n_mels, T_src]; target_soft_units: [B, T_tgt, output_dim]."""
    encoder_output = _encode(params, cfg, dysarthric_mel)
    predicted_soft_units = _decode(params, cfg, encoder_output, target_soft_units)
    # TODO(synk): autoregressive decode branch (target_soft_units=None) and the
    # src/tgt padding-mask bookkeeping are not implemented (run with None masks).
    return {"predicted_soft_units": predicted_soft_units,
            "encoder_output": encoder_output,
            "encoder_mask": None}


# ----------------------------- main -----------------------------

if __name__ == "__main__":
    cfg = dict(
        input_feat_per_channel=8,      # n_mels
        encoder_embed_dim=32,
        encoder_attention_heads=4,
        encoder_ffn_embed_dim=64,
        encoder_layers=2,
        encoder_normalize_before=True,
        conv_kernel_sizes=[5, 5],
        decoder_embed_dim=32,
        decoder_attention_heads=4,
        decoder_ffn_embed_dim=64,
        decoder_layers=2,
        decoder_normalize_before=True,
        output_dim=16,
        dropout=0.0,
        activation_fn="relu",
        temperature=0.1,
        contrastive_weight=1.0,
    )

    B, T_src, T_tgt = 2, 16, 8
    key = jax.random.PRNGKey(0)
    pkey, mkey, tkey = jax.random.split(key, 3)

    params = init_params(pkey, cfg)
    mel = jax.random.normal(mkey, (B, cfg["input_feat_per_channel"], T_src), jnp.float32)
    target = jax.nn.softmax(
        jax.random.normal(tkey, (B, T_tgt, cfg["output_dim"]), jnp.float32), axis=-1)

    out = s2ut_forward(params, cfg, mel, target)
    pred = jax.block_until_ready(out["predicted_soft_units"])
    enc = jax.block_until_ready(out["encoder_output"])

    # shape checks: conv subsampling halves T twice -> T_src/4
    assert pred.shape == (B, T_tgt, cfg["output_dim"])
    assert enc.shape == (B, T_src // 4, cfg["encoder_embed_dim"])
    assert bool(jnp.all(jnp.isfinite(pred)))
    assert bool(jnp.all(jnp.isfinite(enc)))
    # softmax rows sum to 1
    assert bool(jnp.allclose(jnp.sum(pred, axis=-1), 1.0, atol=1e-4))

    print("KERNEL_OK")
</pallas_src>

<mosaic_0001>
module attributes {stable_mosaic.version = 11 : i64} {
  func.func @_encoder_kernel(%arg0: i32, %arg1: memref<1x16x8xf32, #tpu.memory_space<vmem>>, %arg2: memref<8x32xbf16, #tpu.memory_space<vmem>>, %arg3: memref<1x32xf32, #tpu.memory_space<vmem>>, %arg4: memref<2x5x32x32xbf16, #tpu.memory_space<vmem>>, %arg5: memref<2x1x32xf32, #tpu.memory_space<vmem>>, %arg6: memref<4x32xf32, #tpu.memory_space<vmem>>, %arg7: memref<2x1x32xf32, #tpu.memory_space<vmem>>, %arg8: memref<2x1x32xf32, #tpu.memory_space<vmem>>, %arg9: memref<2x32x96xbf16, #tpu.memory_space<vmem>>, %arg10: memref<2x1x96xf32, #tpu.memory_space<vmem>>, %arg11: memref<2x32x32xbf16, #tpu.memory_space<vmem>>, %arg12: memref<2x1x32xf32, #tpu.memory_space<vmem>>, %arg13: memref<2x1x32xf32, #tpu.memory_space<vmem>>, %arg14: memref<2x1x32xf32, #tpu.memory_space<vmem>>, %arg15: memref<2x32x64xbf16, #tpu.memory_space<vmem>>, %arg16: memref<2x1x64xf32, #tpu.memory_space<vmem>>, %arg17: memref<2x64x32xbf16, #tpu.memory_space<vmem>>, %arg18: memref<2x1x32xf32, #tpu.memory_space<vmem>>, %arg19: memref<1x32xf32, #tpu.memory_space<vmem>>, %arg20: memref<1x32xf32, #tpu.memory_space<vmem>>, %arg21: memref<1x4x32xf32, #tpu.memory_space<vmem>>) attributes {dimension_semantics = [#tpu.dimension_semantics<parallel>], iteration_bounds = array<i64: 2>, scalar_prefetch = 0 : i64, scratch_operands = 0 : i64, tpu.core_type = #tpu.core_type<tc>, window_params = [{transform_indices = @transform_0, window_bounds = array<i64: 1, 16, 8>}, {pipeline_mode = #tpu.pipeline_mode<synchronous>, transform_indices = @transform_1, window_bounds = array<i64: 8, 32>}, {pipeline_mode = #tpu.pipeline_mode<synchronous>, transform_indices = @transform_2, window_bounds = array<i64: 1, 32>}, {pipeline_mode = #tpu.pipeline_mode<synchronous>, transform_indices = @transform_3, window_bounds = array<i64: 2, 5, 32, 32>}, {pipeline_mode = #tpu.pipeline_mode<synchronous>, transform_indices = @transform_4, window_bounds = array<i64: 2, 1, 32>}, {pipeline_mode = #tpu.pipeline_mode<synchronous>, transform_indices = @transform_5, window_bounds = array<i64: 4, 32>}, {pipeline_mode = #tpu.pipeline_mode<synchronous>, transform_indices = @transform_6, window_bounds = array<i64: 2, 1, 32>}, {pipeline_mode = #tpu.pipeline_mode<synchronous>, transform_indices = @transform_7, window_bounds = array<i64: 2, 1, 32>}, {pipeline_mode = #tpu.pipeline_mode<synchronous>, transform_indices = @transform_8, window_bounds = array<i64: 2, 32, 96>}, {pipeline_mode = #tpu.pipeline_mode<synchronous>, transform_indices = @transform_9, window_bounds = array<i64: 2, 1, 96>}, {pipeline_mode = #tpu.pipeline_mode<synchronous>, transform_indices = @transform_10, window_bounds = array<i64: 2, 32, 32>}, {pipeline_mode = #tpu.pipeline_mode<synchronous>, transform_indices = @transform_11, window_bounds = array<i64: 2, 1, 32>}, {pipeline_mode = #tpu.pipeline_mode<synchronous>, transform_indices = @transform_12, window_bounds = array<i64: 2, 1, 32>}, {pipeline_mode = #tpu.pipeline_mode<synchronous>, transform_indices = @transform_13, window_bounds = array<i64: 2, 1, 32>}, {pipeline_mode = #tpu.pipeline_mode<synchronous>, transform_indices = @transform_14, window_bounds = array<i64: 2, 32, 64>}, {pipeline_mode = #tpu.pipeline_mode<synchronous>, transform_indices = @transform_15, window_bounds = array<i64: 2, 1, 64>}, {pipeline_mode = #tpu.pipeline_mode<synchronous>, transform_indices = @transform_16, window_bounds = array<i64: 2, 64, 32>}, {pipeline_mode = #tpu.pipeline_mode<synchronous>, transform_indices = @transform_17, window_bounds = array<i64: 2, 1, 32>}, {pipeline_mode = #tpu.pipeline_mode<synchronous>, transform_indices = @transform_18, window_bounds = array<i64: 1, 32>}, {pipeline_mode = #tpu.pipeline_mode<synchronous>, transform_indices = @transform_19, window_bounds = array<i64: 1, 32>}, {transform_indices = @transform_20, window_bounds = array<i64: 1, 4, 32>}]} {
    %c0 = arith.constant 0 : index
    %c0_0 = arith.constant 0 : index
    %c0_1 = arith.constant 0 : index
    %0 = vector.load %arg1[%c0, %c0_0, %c0_1] : memref<1x16x8xf32, #tpu.memory_space<vmem>>, vector<1x16x8xf32>
    %1 = vector.shape_cast %0 : vector<1x16x8xf32> to vector<16x8xf32>
    %c0_2 = arith.constant 0 : index
    %c0_3 = arith.constant 0 : index
    %2 = vector.load %arg2[%c0_2, %c0_3] : memref<8x32xbf16, #tpu.memory_space<vmem>>, vector<8x32xbf16>
    %c0_4 = arith.constant 0 : index
    %c0_5 = arith.constant 0 : index
    %3 = vector.load %arg3[%c0_4, %c0_5] : memref<1x32xf32, #tpu.memory_space<vmem>>, vector<1x32xf32>
    %4 = arith.truncf %1 : vector<16x8xf32> to vector<16x8xbf16>
    %cst = arith.constant dense<0.000000e+00> : vector<16x32xf32>
    %5 = tpu.matmul %4, %2, %cst {dimension_numbers = #tpu.dot_dimension_numbers<[1], [0], [0], [1], [0, 0, 1, 1], [], []>} : vector<16x8xbf16>, vector<8x32xbf16>, vector<16x32xf32> -> vector<16x32xf32>
    %6 = vector.broadcast %3 : vector<1x32xf32> to vector<16x32xf32>
    %7 = arith.addf %5, %6 : vector<16x32xf32>
    %8 = arith.truncf %7 : vector<16x32xf32> to vector<16x32xbf16>
    %c0_6 = arith.constant 0 : index
    %c0_7 = arith.constant 0 : index
    %c0_8 = arith.constant 0 : index
    %c0_9 = arith.constant 0 : index
    %9 = vector.load %arg4[%c0_6, %c0_7, %c0_8, %c0_9] : memref<2x5x32x32xbf16, #tpu.memory_space<vmem>>, vector<1x5x32x32xbf16>
    %10 = vector.shape_cast %9 : vector<1x5x32x32xbf16> to vector<5x32x32xbf16>
    %11 = tpu.iota {dimensions = array<i32: 0>} : vector<8x16xi32>
    %12 = tpu.iota {dimensions = array<i32: 1>} : vector<8x16xi32>
    %cst_10 = arith.constant 0.000000e+00 : f32
    %13 = vector.broadcast %cst_10 : f32 to vector<8x32xf32>
    %c2_i32 = arith.constant 2 : i32
    %14 = vector.broadcast %c2_i32 : i32 to vector<8x16xi32>
    %15 = arith.muli %14, %11 : vector<8x16xi32>
    %c-2_i32 = arith.constant -2 : i32
    %16 = vector.broadcast %c-2_i32 : i32 to vector<8x16xi32>
    %17 = arith.addi %15, %16 : vector<8x16xi32>
    %18 = arith.cmpi eq, %12, %17 : vector<8x16xi32>
    %19 = arith.extui %18 : vector<8x16xi1> to vector<8x16xi32>
    %20 = arith.sitofp %19 : vector<8x16xi32> to vector<8x16xf32>
    %21 = arith.truncf %20 : vector<8x16xf32> to vector<8x16xbf16>
    %cst_11 = arith.constant dense<0.000000e+00> : vector<8x32xf32>
    %22 = tpu.matmul %21, %8, %cst_11 {dimension_numbers = #tpu.dot_dimension_numbers<[1], [0], [0], [1], [0, 0, 1, 1], [], []>} : vector<8x16xbf16>, vector<16x32xbf16>, vector<8x32xf32> -> vector<8x32xf32>
    %23 = arith.truncf %22 : vector<8x32xf32> to vector<8x32xbf16>
    %24 = vector.extract_strided_slice %10 {offsets = [0, 0, 0], sizes = [1, 32, 32], strides = [1, 1, 1]} : vector<5x32x32xbf16> to vector<1x32x32xbf16>
    %25 = vector.shape_cast %24 : vector<1x32x32xbf16> to vector<32x32xbf16>
    %cst_12 = arith.constant dense<0.000000e+00> : vector<8x32xf32>
    %26 = tpu.matmul %23, %25, %cst_12 {dimension_numbers = #tpu.dot_dimension_numbers<[1], [0], [0], [1], [0, 0, 1, 1], [], []>} : vector<8x32xbf16>, vector<32x32xbf16>, vector<8x32xf32> -> vector<8x32xf32>
    %27 = arith.addf %13, %26 : vector<8x32xf32>
    %c2_i32_13 = arith.constant 2 : i32
    %28 = vector.broadcast %c2_i32_13 : i32 to vector<8x16xi32>
    %29 = arith.muli %28, %11 : vector<8x16xi32>
    %c-1_i32 = arith.constant -1 : i32
    %30 = vector.broadcast %c-1_i32 : i32 to vector<8x16xi32>
    %31 = arith.addi %29, %30 : vector<8x16xi32>
    %32 = arith.cmpi eq, %12, %31 : vector<8x16xi32>
    %33 = arith.extui %32 : vector<8x16xi1> to vector<8x16xi32>
    %34 = arith.sitofp %33 : vector<8x16xi32> to vector<8x16xf32>
    %35 = arith.truncf %34 : vector<8x16xf32> to vector<8x16xbf16>
    %cst_14 = arith.constant dense<0.000000e+00> : vector<8x32xf32>
    %36 = tpu.matmul %35, %8, %cst_14 {dimension_numbers = #tpu.dot_dimension_numbers<[1], [0], [0], [1], [0, 0, 1, 1], [], []>} : vector<8x16xbf16>, vector<16x32xbf16>, vector<8x32xf32> -> vector<8x32xf32>
    %37 = arith.truncf %36 : vector<8x32xf32> to vector<8x32xbf16>
    %38 = vector.extract_strided_slice %10 {offsets = [1, 0, 0], sizes = [1, 32, 32], strides = [1, 1, 1]} : vector<5x32x32xbf16> to vector<1x32x32xbf16>
    %39 = vector.shape_cast %38 : vector<1x32x32xbf16> to vector<32x32xbf16>
    %cst_15 = arith.constant dense<0.000000e+00> : vector<8x32xf32>
    %40 = tpu.matmul %37, %39, %cst_15 {dimension_numbers = #tpu.dot_dimension_numbers<[1], [0], [0], [1], [0, 0, 1, 1], [], []>} : vector<8x32xbf16>, vector<32x32xbf16>, vector<8x32xf32> -> vector<8x32xf32>
    %41 = arith.addf %27, %40 : vector<8x32xf32>
    %c2_i32_16 = arith.constant 2 : i32
    %42 = vector.broadcast %c2_i32_16 : i32 to vector<8x16xi32>
    %43 = arith.muli %42, %11 : vector<8x16xi32>
    %c0_i32 = arith.constant 0 : i32
    %44 = vector.broadcast %c0_i32 : i32 to vector<8x16xi32>
    %45 = arith.addi %43, %44 : vector<8x16xi32>
    %46 = arith.cmpi eq, %12, %45 : vector<8x16xi32>
    %47 = arith.extui %46 : vector<8x16xi1> to vector<8x16xi32>
    %48 = arith.sitofp %47 : vector<8x16xi32> to vector<8x16xf32>
    %49 = arith.truncf %48 : vector<8x16xf32> to vector<8x16xbf16>
    %cst_17 = arith.constant dense<0.000000e+00> : vector<8x32xf32>
    %50 = tpu.matmul %49, %8, %cst_17 {dimension_numbers = #tpu.dot_dimension_numbers<[1], [0], [0], [1], [0, 0, 1, 1], [], []>} : vector<8x16xbf16>, vector<16x32xbf16>, vector<8x32xf32> -> vector<8x32xf32>
    %51 = arith.truncf %50 : vector<8x32xf32> to vector<8x32xbf16>
    %52 = vector.extract_strided_slice %10 {offsets = [2, 0, 0], sizes = [1, 32, 32], strides = [1, 1, 1]} : vector<5x32x32xbf16> to vector<1x32x32xbf16>
    %53 = vector.shape_cast %52 : vector<1x32x32xbf16> to vector<32x32xbf16>
    %cst_18 = arith.constant dense<0.000000e+00> : vector<8x32xf32>
    %54 = tpu.matmul %51, %53, %cst_18 {dimension_numbers = #tpu.dot_dimension_numbers<[1], [0], [0], [1], [0, 0, 1, 1], [], []>} : vector<8x32xbf16>, vector<32x32xbf16>, vector<8x32xf32> -> vector<8x32xf32>
    %55 = arith.addf %41, %54 : vector<8x32xf32>
    %c2_i32_19 = arith.constant 2 : i32
    %56 = vector.broadcast %c2_i32_19 : i32 to vector<8x16xi32>
    %57 = arith.muli %56, %11 : vector<8x16xi32>
    %c1_i32 = arith.constant 1 : i32
    %58 = vector.broadcast %c1_i32 : i32 to vector<8x16xi32>
    %59 = arith.addi %57, %58 : vector<8x16xi32>
    %60 = arith.cmpi eq, %12, %59 : vector<8x16xi32>
    %61 = arith.extui %60 : vector<8x16xi1> to vector<8x16xi32>
    %62 = arith.sitofp %61 : vector<8x16xi32> to vector<8x16xf32>
    %63 = arith.truncf %62 : vector<8x16xf32> to vector<8x16xbf16>
    %cst_20 = arith.constant dense<0.000000e+00> : vector<8x32xf32>
    %64 = tpu.matmul %63, %8, %cst_20 {dimension_numbers = #tpu.dot_dimension_numbers<[1], [0], [0], [1], [0, 0, 1, 1], [], []>} : vector<8x16xbf16>, vector<16x32xbf16>, vector<8x32xf32> -> vector<8x32xf32>
    %65 = arith.truncf %64 : vector<8x32xf32> to vector<8x32xbf16>
    %66 = vector.extract_strided_slice %10 {offsets = [3, 0, 0], sizes = [1, 32, 32], strides = [1, 1, 1]} : vector<5x32x32xbf16> to vector<1x32x32xbf16>
    %67 = vector.shape_cast %66 : vector<1x32x32xbf16> to vector<32x32xbf16>
    %cst_21 = arith.constant dense<0.000000e+00> : vector<8x32xf32>
    %68 = tpu.matmul %65, %67, %cst_21 {dimension_numbers = #tpu.dot_dimension_numbers<[1], [0], [0], [1], [0, 0, 1, 1], [], []>} : vector<8x32xbf16>, vector<32x32xbf16>, vector<8x32xf32> -> vector<8x32xf32>
    %69 = arith.addf %55, %68 : vector<8x32xf32>
    %c2_i32_22 = arith.constant 2 : i32
    %70 = vector.broadcast %c2_i32_22 : i32 to vector<8x16xi32>
    %71 = arith.muli %70, %11 : vector<8x16xi32>
    %c2_i32_23 = arith.constant 2 : i32
    %72 = vector.broadcast %c2_i32_23 : i32 to vector<8x16xi32>
    %73 = arith.addi %71, %72 : vector<8x16xi32>
    %74 = arith.cmpi eq, %12, %73 : vector<8x16xi32>
    %75 = arith.extui %74 : vector<8x16xi1> to vector<8x16xi32>
    %76 = arith.sitofp %75 : vector<8x16xi32> to vector<8x16xf32>
    %77 = arith.truncf %76 : vector<8x16xf32> to vector<8x16xbf16>
    %cst_24 = arith.constant dense<0.000000e+00> : vector<8x32xf32>
    %78 = tpu.matmul %77, %8, %cst_24 {dimension_numbers = #tpu.dot_dimension_numbers<[1], [0], [0], [1], [0, 0, 1, 1], [], []>} : vector<8x16xbf16>, vector<16x32xbf16>, vector<8x32xf32> -> vector<8x32xf32>
    %79 = arith.truncf %78 : vector<8x32xf32> to vector<8x32xbf16>
    %80 = vector.extract_strided_slice %10 {offsets = [4, 0, 0], sizes = [1, 32, 32], strides = [1, 1, 1]} : vector<5x32x32xbf16> to vector<1x32x32xbf16>
    %81 = vector.shape_cast %80 : vector<1x32x32xbf16> to vector<32x32xbf16>
    %cst_25 = arith.constant dense<0.000000e+00> : vector<8x32xf32>
    %82 = tpu.matmul %79, %81, %cst_25 {dimension_numbers = #tpu.dot_dimension_numbers<[1], [0], [0], [1], [0, 0, 1, 1], [], []>} : vector<8x32xbf16>, vector<32x32xbf16>, vector<8x32xf32> -> vector<8x32xf32>
    %83 = arith.addf %69, %82 : vector<8x32xf32>
    %c0_26 = arith.constant 0 : index
    %c0_27 = arith.constant 0 : index
    %c0_28 = arith.constant 0 : index
    %84 = vector.load %arg5[%c0_26, %c0_27, %c0_28] : memref<2x1x32xf32, #tpu.memory_space<vmem>>, vector<1x1x32xf32>
    %85 = vector.shape_cast %84 : vector<1x1x32xf32> to vector<1x32xf32>
    %86 = vector.broadcast %85 : vector<1x32xf32> to vector<8x32xf32>
    %87 = arith.addf %83, %86 : vector<8x32xf32>
    %cst_29 = arith.constant 0.000000e+00 : f32
    %88 = vector.broadcast %cst_29 : f32 to vector<8x32xf32>
    %89 = arith.maximumf %87, %88 : vector<8x32xf32>
    %90 = arith.truncf %89 : vector<8x32xf32> to vector<8x32xbf16>
    %c1 = arith.constant 1 : index
    %c0_30 = arith.constant 0 : index
    %c0_31 = arith.constant 0 : index
    %c0_32 = arith.constant 0 : index
    %91 = vector.load %arg4[%c1, %c0_30, %c0_31, %c0_32] : memref<2x5x32x32xbf16, #tpu.memory_space<vmem>>, vector<1x5x32x32xbf16>
    %92 = vector.shape_cast %91 : vector<1x5x32x32xbf16> to vector<5x32x32xbf16>
    %93 = tpu.iota {dimensions = array<i32: 0>} : vector<4x8xi32>
    %94 = tpu.iota {dimensions = array<i32: 1>} : vector<4x8xi32>
    %cst_33 = arith.constant 0.000000e+00 : f32
    %95 = vector.broadcast %cst_33 : f32 to vector<4x32xf32>
    %c2_i32_34 = arith.constant 2 : i32
    %96 = vector.broadcast %c2_i32_34 : i32 to vector<4x8xi32>
    %97 = arith.muli %96, %93 : vector<4x8xi32>
    %c-2_i32_35 = arith.constant -2 : i32
    %98 = vector.broadcast %c-2_i32_35 : i32 to vector<4x8xi32>
    %99 = arith.addi %97, %98 : vector<4x8xi32>
    %100 = arith.cmpi eq, %94, %99 : vector<4x8xi32>
    %101 = arith.extui %100 : vector<4x8xi1> to vector<4x8xi32>
    %102 = arith.sitofp %101 : vector<4x8xi32> to vector<4x8xf32>
    %103 = arith.truncf %102 : vector<4x8xf32> to vector<4x8xbf16>
    %cst_36 = arith.constant dense<0.000000e+00> : vector<4x32xf32>
    %104 = tpu.matmul %103, %90, %cst_36 {dimension_numbers = #tpu.dot_dimension_numbers<[1], [0], [0], [1], [0, 0, 1, 1], [], []>} : vector<4x8xbf16>, vector<8x32xbf16>, vector<4x32xf32> -> vector<4x32xf32>
    %105 = arith.truncf %104 : vector<4x32xf32> to vector<4x32xbf16>
    %106 = vector.extract_strided_slice %92 {offsets = [0, 0, 0], sizes = [1, 32, 32], strides = [1, 1, 1]} : vector<5x32x32xbf16> to vector<1x32x32xbf16>
    %107 = vector.shape_cast %106 : vector<1x32x32xbf16> to vector<32x32xbf16>
    %cst_37 = arith.constant dense<0.000000e+00> : vector<4x32xf32>
    %108 = tpu.matmul %105, %107, %cst_37 {dimension_numbers = #tpu.dot_dimension_numbers<[1], [0], [0], [1], [0, 0, 1, 1], [], []>} : vector<4x32xbf16>, vector<32x32xbf16>, vector<4x32xf32> -> vector<4x32xf32>
    %109 = arith.addf %95, %108 : vector<4x32xf32>
    %c2_i32_38 = arith.constant 2 : i32
    %110 = vector.broadcast %c2_i32_38 : i32 to vector<4x8xi32>
    %111 = arith.muli %110, %93 : vector<4x8xi32>
    %c-1_i32_39 = arith.constant -1 : i32
    %112 = vector.broadcast %c-1_i32_39 : i32 to vector<4x8xi32>
    %113 = arith.addi %111, %112 : vector<4x8xi32>
    %114 = arith.cmpi eq, %94, %113 : vector<4x8xi32>
    %115 = arith.extui %114 : vector<4x8xi1> to vector<4x8xi32>
    %116 = arith.sitofp %115 : vector<4x8xi32> to vector<4x8xf32>
    %117 = arith.truncf %116 : vector<4x8xf32> to vector<4x8xbf16>
    %cst_40 = arith.constant dense<0.000000e+00> : vector<4x32xf32>
    %118 = tpu.matmul %117, %90, %cst_40 {dimension_numbers = #tpu.dot_dimension_numbers<[1], [0], [0], [1], [0, 0, 1, 1], [], []>} : vector<4x8xbf16>, vector<8x32xbf16>, vector<4x32xf32> -> vector<4x32xf32>
    %119 = arith.truncf %118 : vector<4x32xf32> to vector<4x32xbf16>
    %120 = vector.extract_strided_slice %92 {offsets = [1, 0, 0], sizes = [1, 32, 32], strides = [1, 1, 1]} : vector<5x32x32xbf16> to vector<1x32x32xbf16>
    %121 = vector.shape_cast %120 : vector<1x32x32xbf16> to vector<32x32xbf16>
    %cst_41 = arith.constant dense<0.000000e+00> : vector<4x32xf32>
    %122 = tpu.matmul %119, %121, %cst_41 {dimension_numbers = #tpu.dot_dimension_numbers<[1], [0], [0], [1], [0, 0, 1, 1], [], []>} : vector<4x32xbf16>, vector<32x32xbf16>, vector<4x32xf32> -> vector<4x32xf32>
    %123 = arith.addf %109, %122 : vector<4x32xf32>
    %c2_i32_42 = arith.constant 2 : i32
    %124 = vector.broadcast %c2_i32_42 : i32 to vector<4x8xi32>
    %125 = arith.muli %124, %93 : vector<4x8xi32>
    %c0_i32_43 = arith.constant 0 : i32
    %126 = vector.broadcast %c0_i32_43 : i32 to vector<4x8xi32>
    %127 = arith.addi %125, %126 : vector<4x8xi32>
    %128 = arith.cmpi eq, %94, %127 : vector<4x8xi32>
    %129 = arith.extui %128 : vector<4x8xi1> to vector<4x8xi32>
    %130 = arith.sitofp %129 : vector<4x8xi32> to vector<4x8xf32>
    %131 = arith.truncf %130 : vector<4x8xf32> to vector<4x8xbf16>
    %cst_44 = arith.constant dense<0.000000e+00> : vector<4x32xf32>
    %132 = tpu.matmul %131, %90, %cst_44 {dimension_numbers = #tpu.dot_dimension_numbers<[1], [0], [0], [1], [0, 0, 1, 1], [], []>} : vector<4x8xbf16>, vector<8x32xbf16>, vector<4x32xf32> -> vector<4x32xf32>
    %133 = arith.truncf %132 : vector<4x32xf32> to vector<4x32xbf16>
    %134 = vector.extract_strided_slice %92 {offsets = [2, 0, 0], sizes = [1, 32, 32], strides = [1, 1, 1]} : vector<5x32x32xbf16> to vector<1x32x32xbf16>
    %135 = vector.shape_cast %134 : vector<1x32x32xbf16> to vector<32x32xbf16>
    %cst_45 = arith.constant dense<0.000000e+00> : vector<4x32xf32>
    %136 = tpu.matmul %133, %135, %cst_45 {dimension_numbers = #tpu.dot_dimension_numbers<[1], [0], [0], [1], [0, 0, 1, 1], [], []>} : vector<4x32xbf16>, vector<32x32xbf16>, vector<4x32xf32> -> vector<4x32xf32>
    %137 = arith.addf %123, %136 : vector<4x32xf32>
    %c2_i32_46 = arith.constant 2 : i32
    %138 = vector.broadcast %c2_i32_46 : i32 to vector<4x8xi32>
    %139 = arith.muli %138, %93 : vector<4x8xi32>
    %c1_i32_47 = arith.constant 1 : i32
    %140 = vector.broadcast %c1_i32_47 : i32 to vector<4x8xi32>
    %141 = arith.addi %139, %140 : vector<4x8xi32>
    %142 = arith.cmpi eq, %94, %141 : vector<4x8xi32>
    %143 = arith.extui %142 : vector<4x8xi1> to vector<4x8xi32>
    %144 = arith.sitofp %143 : vector<4x8xi32> to vector<4x8xf32>
    %145 = arith.truncf %144 : vector<4x8xf32> to vector<4x8xbf16>
    %cst_48 = arith.constant dense<0.000000e+00> : vector<4x32xf32>
    %146 = tpu.matmul %145, %90, %cst_48 {dimension_numbers = #tpu.dot_dimension_numbers<[1], [0], [0], [1], [0, 0, 1, 1], [], []>} : vector<4x8xbf16>, vector<8x32xbf16>, vector<4x32xf32> -> vector<4x32xf32>
    %147 = arith.truncf %146 : vector<4x32xf32> to vector<4x32xbf16>
    %148 = vector.extract_strided_slice %92 {offsets = [3, 0, 0], sizes = [1, 32, 32], strides = [1, 1, 1]} : vector<5x32x32xbf16> to vector<1x32x32xbf16>
    %149 = vector.shape_cast %148 : vector<1x32x32xbf16> to vector<32x32xbf16>
    %cst_49 = arith.constant dense<0.000000e+00> : vector<4x32xf32>
    %150 = tpu.matmul %147, %149, %cst_49 {dimension_numbers = #tpu.dot_dimension_numbers<[1], [0], [0], [1], [0, 0, 1, 1], [], []>} : vector<4x32xbf16>, vector<32x32xbf16>, vector<4x32xf32> -> vector<4x32xf32>
    %151 = arith.addf %137, %150 : vector<4x32xf32>
    %c2_i32_50 = arith.constant 2 : i32
    %152 = vector.broadcast %c2_i32_50 : i32 to vector<4x8xi32>
    %153 = arith.muli %152, %93 : vector<4x8xi32>
    %c2_i32_51 = arith.constant 2 : i32
    %154 = vector.broadcast %c2_i32_51 : i32 to vector<4x8xi32>
    %155 = arith.addi %153, %154 : vector<4x8xi32>
    %156 = arith.cmpi eq, %94, %155 : vector<4x8xi32>
    %157 = arith.extui %156 : vector<4x8xi1> to vector<4x8xi32>
    %158 = arith.sitofp %157 : vector<4x8xi32> to vector<4x8xf32>
    %159 = arith.truncf %158 : vector<4x8xf32> to vector<4x8xbf16>
    %cst_52 = arith.constant dense<0.000000e+00> : vector<4x32xf32>
    %160 = tpu.matmul %159, %90, %cst_52 {dimension_numbers = #tpu.dot_dimension_numbers<[1], [0], [0], [1], [0, 0, 1, 1], [], []>} : vector<4x8xbf16>, vector<8x32xbf16>, vector<4x32xf32> -> vector<4x32xf32>
    %161 = arith.truncf %160 : vector<4x32xf32> to vector<4x32xbf16>
    %162 = vector.extract_strided_slice %92 {offsets = [4, 0, 0], sizes = [1, 32, 32], strides = [1, 1, 1]} : vector<5x32x32xbf16> to vector<1x32x32xbf16>
    %163 = vector.shape_cast %162 : vector<1x32x32xbf16> to vector<32x32xbf16>
    %cst_53 = arith.constant dense<0.000000e+00> : vector<4x32xf32>
    %164 = tpu.matmul %161, %163, %cst_53 {dimension_numbers = #tpu.dot_dimension_numbers<[1], [0], [0], [1], [0, 0, 1, 1], [], []>} : vector<4x32xbf16>, vector<32x32xbf16>, vector<4x32xf32> -> vector<4x32xf32>
    %165 = arith.addf %151, %164 : vector<4x32xf32>
    %c1_54 = arith.constant 1 : index
    %c0_55 = arith.constant 0 : index
    %c0_56 = arith.constant 0 : index
    %166 = vector.load %arg5[%c1_54, %c0_55, %c0_56] : memref<2x1x32xf32, #tpu.memory_space<vmem>>, vector<1x1x32xf32>
    %167 = vector.shape_cast %166 : vector<1x1x32xf32> to vector<1x32xf32>
    %168 = vector.broadcast %167 : vector<1x32xf32> to vector<4x32xf32>
    %169 = arith.addf %165, %168 : vector<4x32xf32>
    %cst_57 = arith.constant 0.000000e+00 : f32
    %170 = vector.broadcast %cst_57 : f32 to vector<4x32xf32>
    %171 = arith.maximumf %169, %170 : vector<4x32xf32>
    %c0_58 = arith.constant 0 : index
    %c0_59 = arith.constant 0 : index
    %172 = vector.load %arg6[%c0_58, %c0_59] : memref<4x32xf32, #tpu.memory_space<vmem>>, vector<4x32xf32>
    %173 = arith.addf %171, %172 : vector<4x32xf32>
    %c0_60 = arith.constant 0 : index
    %c0_61 = arith.constant 0 : index
    %c0_62 = arith.constant 0 : index
    %174 = vector.load %arg7[%c0_60, %c0_61, %c0_62] : memref<2x1x32xf32, #tpu.memory_space<vmem>>, vector<1x1x32xf32>
    %175 = vector.shape_cast %174 : vector<1x1x32xf32> to vector<1x32xf32>
    %c0_63 = arith.constant 0 : index
    %c0_64 = arith.constant 0 : index
    %c0_65 = arith.constant 0 : index
    %176 = vector.load %arg8[%c0_63, %c0_64, %c0_65] : memref<2x1x32xf32, #tpu.memory_space<vmem>>, vector<1x1x32xf32>
    %177 = vector.shape_cast %176 : vector<1x1x32xf32> to vector<1x32xf32>
    %cst_66 = arith.constant dense<0.000000e+00> : vector<4xf32>
    %178 = vector.multi_reduction <add>, %173, %cst_66 [1] : vector<4x32xf32> to vector<4xf32>
    %179 = vector.shape_cast %178 : vector<4xf32> to vector<4x1xf32>
    %cst_67 = arith.constant 3.200000e+01 : f32
    %180 = vector.broadcast %cst_67 : f32 to vector<4x1xf32>
    %181 = arith.divf %179, %180 : vector<4x1xf32>
    %182 = vector.broadcast %181 : vector<4x1xf32> to vector<4x32xf32>
    %183 = arith.subf %173, %182 : vector<4x32xf32>
    %184 = arith.mulf %183, %183 : vector<4x32xf32>
    %cst_68 = arith.constant dense<0.000000e+00> : vector<4xf32>
    %185 = vector.multi_reduction <add>, %184, %cst_68 [1] : vector<4x32xf32> to vector<4xf32>
    %186 = vector.shape_cast %185 : vector<4xf32> to vector<4x1xf32>
    %cst_69 = arith.constant 3.200000e+01 : f32
    %187 = vector.broadcast %cst_69 : f32 to vector<4x1xf32>
    %188 = arith.divf %186, %187 : vector<4x1xf32>
    %189 = vector.broadcast %181 : vector<4x1xf32> to vector<4x32xf32>
    %190 = arith.subf %173, %189 : vector<4x32xf32>
    %cst_70 = arith.constant 9.99999974E-6 : f32
    %191 = vector.broadcast %cst_70 : f32 to vector<4x1xf32>
    %192 = arith.addf %188, %191 : vector<4x1xf32>
    %193 = math.rsqrt %192 : vector<4x1xf32>
    %194 = vector.broadcast %193 : vector<4x1xf32> to vector<4x32xf32>
    %195 = arith.mulf %190, %194 : vector<4x32xf32>
    %196 = vector.broadcast %175 : vector<1x32xf32> to vector<4x32xf32>
    %197 = arith.mulf %195, %196 : vector<4x32xf32>
    %198 = vector.broadcast %177 : vector<1x32xf32> to vector<4x32xf32>
    %199 = arith.addf %197, %198 : vector<4x32xf32>
    %c0_71 = arith.constant 0 : index
    %c0_72 = arith.constant 0 : index
    %c0_73 = arith.constant 0 : index
    %200 = vector.load %arg9[%c0_71, %c0_72, %c0_73] : memref<2x32x96xbf16, #tpu.memory_space<vmem>>, vector<1x32x96xbf16>
    %201 = vector.shape_cast %200 : vector<1x32x96xbf16> to vector<32x96xbf16>
    %c0_74 = arith.constant 0 : index
    %c0_75 = arith.constant 0 : index
    %c0_76 = arith.constant 0 : index
    %202 = vector.load %arg10[%c0_74, %c0_75, %c0_76] : memref<2x1x96xf32, #tpu.memory_space<vmem>>, vector<1x1x96xf32>
    %203 = vector.shape_cast %202 : vector<1x1x96xf32> to vector<1x96xf32>
    %204 = arith.truncf %199 : vector<4x32xf32> to vector<4x32xbf16>
    %cst_77 = arith.constant dense<0.000000e+00> : vector<4x96xf32>
    %205 = tpu.matmul %204, %201, %cst_77 {dimension_numbers = #tpu.dot_dimension_numbers<[1], [0], [0], [1], [0, 0, 1, 1], [], []>} : vector<4x32xbf16>, vector<32x96xbf16>, vector<4x96xf32> -> vector<4x96xf32>
    %206 = vector.broadcast %203 : vector<1x96xf32> to vector<4x96xf32>
    %207 = arith.addf %205, %206 : vector<4x96xf32>
    %208 = vector.extract_strided_slice %207 {offsets = [0, 0], sizes = [4, 32], strides = [1, 1]} : vector<4x96xf32> to vector<4x32xf32>
    %209 = vector.extract_strided_slice %207 {offsets = [0, 32], sizes = [4, 32], strides = [1, 1]} : vector<4x96xf32> to vector<4x32xf32>
    %210 = vector.extract_strided_slice %207 {offsets = [0, 64], sizes = [4, 32], strides = [1, 1]} : vector<4x96xf32> to vector<4x32xf32>
    %211 = vector.extract_strided_slice %208 {offsets = [0, 0], sizes = [4, 8], strides = [1, 1]} : vector<4x32xf32> to vector<4x8xf32>
    %212 = vector.extract_strided_slice %208 {offsets = [0, 8], sizes = [4, 8], strides = [1, 1]} : vector<4x32xf32> to vector<4x8xf32>
    %213 = vector.extract_strided_slice %208 {offsets = [0, 16], sizes = [4, 8], strides = [1, 1]} : vector<4x32xf32> to vector<4x8xf32>
    %214 = vector.extract_strided_slice %208 {offsets = [0, 24], sizes = [4, 8], strides = [1, 1]} : vector<4x32xf32> to vector<4x8xf32>
    %215 = vector.shape_cast %211 : vector<4x8xf32> to vector<1x4x8xf32>
    %216 = vector.shape_cast %212 : vector<4x8xf32> to vector<1x4x8xf32>
    %217 = vector.shape_cast %213 : vector<4x8xf32> to vector<1x4x8xf32>
    %218 = vector.shape_cast %214 : vector<4x8xf32> to vector<1x4x8xf32>
    %219 = tpu.concatenate %215, %216, %217, %218 in 0 : vector<1x4x8xf32>, vector<1x4x8xf32>, vector<1x4x8xf32>, vector<1x4x8xf32> -> vector<4x4x8xf32>
    %220 = arith.truncf %219 : vector<4x4x8xf32> to vector<4x4x8xbf16>
    %221 = vector.extract_strided_slice %209 {offsets = [0, 0], sizes = [4, 8], strides = [1, 1]} : vector<4x32xf32> to vector<4x8xf32>
    %222 = vector.extract_strided_slice %209 {offsets = [0, 8], sizes = [4, 8], strides = [1, 1]} : vector<4x32xf32> to vector<4x8xf32>
    %223 = vector.extract_strided_slice %209 {offsets = [0, 16], sizes = [4, 8], strides = [1, 1]} : vector<4x32xf32> to vector<4x8xf32>
    %224 = vector.extract_strided_slice %209 {offsets = [0, 24], sizes = [4, 8], strides = [1, 1]} : vector<4x32xf32> to vector<4x8xf32>
    %225 = vector.shape_cast %221 : vector<4x8xf32> to vector<1x4x8xf32>
    %226 = vector.shape_cast %222 : vector<4x8xf32> to vector<1x4x8xf32>
    %227 = vector.shape_cast %223 : vector<4x8xf32> to vector<1x4x8xf32>
    %228 = vector.shape_cast %224 : vector<4x8xf32> to vector<1x4x8xf32>
    %229 = tpu.concatenate %225, %226, %227, %228 in 0 : vector<1x4x8xf32>, vector<1x4x8xf32>, vector<1x4x8xf32>, vector<1x4x8xf32> -> vector<4x4x8xf32>
    %230 = arith.truncf %229 : vector<4x4x8xf32> to vector<4x4x8xbf16>
    %231 = vector.extract_strided_slice %210 {offsets = [0, 0], sizes = [4, 8], strides = [1, 1]} : vector<4x32xf32> to vector<4x8xf32>
    %232 = vector.extract_strided_slice %210 {offsets = [0, 8], sizes = [4, 8], strides = [1, 1]} : vector<4x32xf32> to vector<4x8xf32>
    %233 = vector.extract_strided_slice %210 {offsets = [0, 16], sizes = [4, 8], strides = [1, 1]} : vector<4x32xf32> to vector<4x8xf32>
    %234 = vector.extract_strided_slice %210 {offsets = [0, 24], sizes = [4, 8], strides = [1, 1]} : vector<4x32xf32> to vector<4x8xf32>
    %235 = vector.shape_cast %231 : vector<4x8xf32> to vector<1x4x8xf32>
    %236 = vector.shape_cast %232 : vector<4x8xf32> to vector<1x4x8xf32>
    %237 = vector.shape_cast %233 : vector<4x8xf32> to vector<1x4x8xf32>
    %238 = vector.shape_cast %234 : vector<4x8xf32> to vector<1x4x8xf32>
    %239 = tpu.concatenate %235, %236, %237, %238 in 0 : vector<1x4x8xf32>, vector<1x4x8xf32>, vector<1x4x8xf32>, vector<1x4x8xf32> -> vector<4x4x8xf32>
    %240 = arith.truncf %239 : vector<4x4x8xf32> to vector<4x4x8xbf16>
    "tpu.trace_start"() <{level = 10 : i32, message = "hqd,hkd->hqk"}> : () -> ()
    %cst_78 = arith.constant dense<0.000000e+00> : vector<4x4x4xf32>
    %241 = tpu.matmul %220, %230, %cst_78 {dimension_numbers = #tpu.dot_dimension_numbers<[2], [2], [1], [1], [0, 0, 0, 1, 1, 1], [0], [0]>} : vector<4x4x8xbf16>, vector<4x4x8xbf16>, vector<4x4x4xf32> -> vector<4x4x4xf32>
    "tpu.trace_stop"() : () -> ()
    %cst_79 = arith.constant dense<0xFF800000> : vector<4x4xf32>
    %242 = vector.multi_reduction <maximumf>, %241, %cst_79 [2] : vector<4x4x4xf32> to vector<4x4xf32>
    %243 = vector.shape_cast %242 : vector<4x4xf32> to vector<4x4x1xf32>
    %244 = vector.broadcast %243 : vector<4x4x1xf32> to vector<4x4x4xf32>
    %245 = arith.subf %241, %244 : vector<4x4x4xf32>
    %246 = math.exp %245 : vector<4x4x4xf32>
    %cst_80 = arith.constant dense<0.000000e+00> : vector<4x4xf32>
    %247 = vector.multi_reduction <add>, %246, %cst_80 [2] : vector<4x4x4xf32> to vector<4x4xf32>
    %248 = vector.shape_cast %247 : vector<4x4xf32> to vector<4x4x1xf32>
    %249 = vector.broadcast %248 : vector<4x4x1xf32> to vector<4x4x4xf32>
    %250 = arith.divf %246, %249 : vector<4x4x4xf32>
    %251 = arith.truncf %250 : vector<4x4x4xf32> to vector<4x4x4xbf16>
    "tpu.trace_start"() <{level = 10 : i32, message = "hqk,hkd->hqd"}> : () -> ()
    %cst_81 = arith.constant dense<0.000000e+00> : vector<4x4x8xf32>
    %252 = tpu.matmul %251, %240, %cst_81 {dimension_numbers = #tpu.dot_dimension_numbers<[2], [1], [1], [2], [0, 0, 0, 1, 1, 2], [0], [0]>} : vector<4x4x4xbf16>, vector<4x4x8xbf16>, vector<4x4x8xf32> -> vector<4x4x8xf32>
    "tpu.trace_stop"() : () -> ()
    %253 = vector.extract_strided_slice %252 {offsets = [0, 0, 0], sizes = [1, 4, 8], strides = [1, 1, 1]} : vector<4x4x8xf32> to vector<1x4x8xf32>
    %254 = vector.shape_cast %253 : vector<1x4x8xf32> to vector<4x8xf32>
    %255 = vector.extract_strided_slice %252 {offsets = [1, 0, 0], sizes = [1, 4, 8], strides = [1, 1, 1]} : vector<4x4x8xf32> to vector<1x4x8xf32>
    %256 = vector.shape_cast %255 : vector<1x4x8xf32> to vector<4x8xf32>
    %257 = vector.extract_strided_slice %252 {offsets = [2, 0, 0], sizes = [1, 4, 8], strides = [1, 1, 1]} : vector<4x4x8xf32> to vector<1x4x8xf32>
    %258 = vector.shape_cast %257 : vector<1x4x8xf32> to vector<4x8xf32>
    %259 = vector.extract_strided_slice %252 {offsets = [3, 0, 0], sizes = [1, 4, 8], strides = [1, 1, 1]} : vector<4x4x8xf32> to vector<1x4x8xf32>
    %260 = vector.shape_cast %259 : vector<1x4x8xf32> to vector<4x8xf32>
    %261 = tpu.concatenate %254, %256, %258, %260 in 1 : vector<4x8xf32>, vector<4x8xf32>, vector<4x8xf32>, vector<4x8xf32> -> vector<4x32xf32>
    %c0_82 = arith.constant 0 : index
    %c0_83 = arith.constant 0 : index
    %c0_84 = arith.constant 0 : index
    %262 = vector.load %arg11[%c0_82, %c0_83, %c0_84] : memref<2x32x32xbf16, #tpu.memory_space<vmem>>, vector<1x32x32xbf16>
    %263 = vector.shape_cast %262 : vector<1x32x32xbf16> to vector<32x32xbf16>
    %c0_85 = arith.constant 0 : index
    %c0_86 = arith.constant 0 : index
    %c0_87 = arith.constant 0 : index
    %264 = vector.load %arg12[%c0_85, %c0_86, %c0_87] : memref<2x1x32xf32, #tpu.memory_space<vmem>>, vector<1x1x32xf32>
    %265 = vector.shape_cast %264 : vector<1x1x32xf32> to vector<1x32xf32>
    %266 = arith.truncf %261 : vector<4x32xf32> to vector<4x32xbf16>
    %cst_88 = arith.constant dense<0.000000e+00> : vector<4x32xf32>
    %267 = tpu.matmul %266, %263, %cst_88 {dimension_numbers = #tpu.dot_dimension_numbers<[1], [0], [0], [1], [0, 0, 1, 1], [], []>} : vector<4x32xbf16>, vector<32x32xbf16>, vector<4x32xf32> -> vector<4x32xf32>
    %268 = vector.broadcast %265 : vector<1x32xf32> to vector<4x32xf32>
    %269 = arith.addf %267, %268 : vector<4x32xf32>
    %270 = arith.addf %173, %269 : vector<4x32xf32>
    %c0_89 = arith.constant 0 : index
    %c0_90 = arith.constant 0 : index
    %c0_91 = arith.constant 0 : index
    %271 = vector.load %arg13[%c0_89, %c0_90, %c0_91] : memref<2x1x32xf32, #tpu.memory_space<vmem>>, vector<1x1x32xf32>
    %272 = vector.shape_cast %271 : vector<1x1x32xf32> to vector<1x32xf32>
    %c0_92 = arith.constant 0 : index
    %c0_93 = arith.constant 0 : index
    %c0_94 = arith.constant 0 : index
    %273 = vector.load %arg14[%c0_92, %c0_93, %c0_94] : memref<2x1x32xf32, #tpu.memory_space<vmem>>, vector<1x1x32xf32>
    %274 = vector.shape_cast %273 : vector<1x1x32xf32> to vector<1x32xf32>
    %cst_95 = arith.constant dense<0.000000e+00> : vector<4xf32>
    %275 = vector.multi_reduction <add>, %270, %cst_95 [1] : vector<4x32xf32> to vector<4xf32>
    %276 = vector.shape_cast %275 : vector<4xf32> to vector<4x1xf32>
    %cst_96 = arith.constant 3.200000e+01 : f32
    %277 = vector.broadcast %cst_96 : f32 to vector<4x1xf32>
    %278 = arith.divf %276, %277 : vector<4x1xf32>
    %279 = vector.broadcast %278 : vector<4x1xf32> to vector<4x32xf32>
    %280 = arith.subf %270, %279 : vector<4x32xf32>
    %281 = arith.mulf %280, %280 : vector<4x32xf32>
    %cst_97 = arith.constant dense<0.000000e+00> : vector<4xf32>
    %282 = vector.multi_reduction <add>, %281, %cst_97 [1] : vector<4x32xf32> to vector<4xf32>
    %283 = vector.shape_cast %282 : vector<4xf32> to vector<4x1xf32>
    %cst_98 = arith.constant 3.200000e+01 : f32
    %284 = vector.broadcast %cst_98 : f32 to vector<4x1xf32>
    %285 = arith.divf %283, %284 : vector<4x1xf32>
    %286 = vector.broadcast %278 : vector<4x1xf32> to vector<4x32xf32>
    %287 = arith.subf %270, %286 : vector<4x32xf32>
    %cst_99 = arith.constant 9.99999974E-6 : f32
    %288 = vector.broadcast %cst_99 : f32 to vector<4x1xf32>
    %289 = arith.addf %285, %288 : vector<4x1xf32>
    %290 = math.rsqrt %289 : vector<4x1xf32>
    %291 = vector.broadcast %290 : vector<4x1xf32> to vector<4x32xf32>
    %292 = arith.mulf %287, %291 : vector<4x32xf32>
    %293 = vector.broadcast %272 : vector<1x32xf32> to vector<4x32xf32>
    %294 = arith.mulf %292, %293 : vector<4x32xf32>
    %295 = vector.broadcast %274 : vector<1x32xf32> to vector<4x32xf32>
    %296 = arith.addf %294, %295 : vector<4x32xf32>
    %c0_100 = arith.constant 0 : index
    %c0_101 = arith.constant 0 : index
    %c0_102 = arith.constant 0 : index
    %297 = vector.load %arg15[%c0_100, %c0_101, %c0_102] : memref<2x32x64xbf16, #tpu.memory_space<vmem>>, vector<1x32x64xbf16>
    %298 = vector.shape_cast %297 : vector<1x32x64xbf16> to vector<32x64xbf16>
    %c0_103 = arith.constant 0 : index
    %c0_104 = arith.constant 0 : index
    %c0_105 = arith.constant 0 : index
    %299 = vector.load %arg16[%c0_103, %c0_104, %c0_105] : memref<2x1x64xf32, #tpu.memory_space<vmem>>, vector<1x1x64xf32>
    %300 = vector.shape_cast %299 : vector<1x1x64xf32> to vector<1x64xf32>
    %301 = arith.truncf %296 : vector<4x32xf32> to vector<4x32xbf16>
    %cst_106 = arith.constant dense<0.000000e+00> : vector<4x64xf32>
    %302 = tpu.matmul %301, %298, %cst_106 {dimension_numbers = #tpu.dot_dimension_numbers<[1], [0], [0], [1], [0, 0, 1, 1], [], []>} : vector<4x32xbf16>, vector<32x64xbf16>, vector<4x64xf32> -> vector<4x64xf32>
    %303 = vector.broadcast %300 : vector<1x64xf32> to vector<4x64xf32>
    %304 = arith.addf %302, %303 : vector<4x64xf32>
    %cst_107 = arith.constant 0.000000e+00 : f32
    %305 = vector.broadcast %cst_107 : f32 to vector<4x64xf32>
    %306 = arith.maximumf %304, %305 : vector<4x64xf32>
    %c0_108 = arith.constant 0 : index
    %c0_109 = arith.constant 0 : index
    %c0_110 = arith.constant 0 : index
    %307 = vector.load %arg17[%c0_108, %c0_109, %c0_110] : memref<2x64x32xbf16, #tpu.memory_space<vmem>>, vector<1x64x32xbf16>
    %308 = vector.shape_cast %307 : vector<1x64x32xbf16> to vector<64x32xbf16>
    %c0_111 = arith.constant 0 : index
    %c0_112 = arith.constant 0 : index
    %c0_113 = arith.constant 0 : index
    %309 = vector.load %arg18[%c0_111, %c0_112, %c0_113] : memref<2x1x32xf32, #tpu.memory_space<vmem>>, vector<1x1x32xf32>
    %310 = vector.shape_cast %309 : vector<1x1x32xf32> to vector<1x32xf32>
    %311 = arith.truncf %306 : vector<4x64xf32> to vector<4x64xbf16>
    %cst_114 = arith.constant dense<0.000000e+00> : vector<4x32xf32>
    %312 = tpu.matmul %311, %308, %cst_114 {dimension_numbers = #tpu.dot_dimension_numbers<[1], [0], [0], [1], [0, 0, 1, 1], [], []>} : vector<4x64xbf16>, vector<64x32xbf16>, vector<4x32xf32> -> vector<4x32xf32>
    %313 = vector.broadcast %310 : vector<1x32xf32> to vector<4x32xf32>
    %314 = arith.addf %312, %313 : vector<4x32xf32>
    %315 = arith.addf %270, %314 : vector<4x32xf32>
    %c1_115 = arith.constant 1 : index
    %c0_116 = arith.constant 0 : index
    %c0_117 = arith.constant 0 : index
    %316 = vector.load %arg7[%c1_115, %c0_116, %c0_117] : memref<2x1x32xf32, #tpu.memory_space<vmem>>, vector<1x1x32xf32>
    %317 = vector.shape_cast %316 : vector<1x1x32xf32> to vector<1x32xf32>
    %c1_118 = arith.constant 1 : index
    %c0_119 = arith.constant 0 : index
    %c0_120 = arith.constant 0 : index
    %318 = vector.load %arg8[%c1_118, %c0_119, %c0_120] : memref<2x1x32xf32, #tpu.memory_space<vmem>>, vector<1x1x32xf32>
    %319 = vector.shape_cast %318 : vector<1x1x32xf32> to vector<1x32xf32>
    %cst_121 = arith.constant dense<0.000000e+00> : vector<4xf32>
    %320 = vector.multi_reduction <add>, %315, %cst_121 [1] : vector<4x32xf32> to vector<4xf32>
    %321 = vector.shape_cast %320 : vector<4xf32> to vector<4x1xf32>
    %cst_122 = arith.constant 3.200000e+01 : f32
    %322 = vector.broadcast %cst_122 : f32 to vector<4x1xf32>
    %323 = arith.divf %321, %322 : vector<4x1xf32>
    %324 = vector.broadcast %323 : vector<4x1xf32> to vector<4x32xf32>
    %325 = arith.subf %315, %324 : vector<4x32xf32>
    %326 = arith.mulf %325, %325 : vector<4x32xf32>
    %cst_123 = arith.constant dense<0.000000e+00> : vector<4xf32>
    %327 = vector.multi_reduction <add>, %326, %cst_123 [1] : vector<4x32xf32> to vector<4xf32>
    %328 = vector.shape_cast %327 : vector<4xf32> to vector<4x1xf32>
    %cst_124 = arith.constant 3.200000e+01 : f32
    %329 = vector.broadcast %cst_124 : f32 to vector<4x1xf32>
    %330 = arith.divf %328, %329 : vector<4x1xf32>
    %331 = vector.broadcast %323 : vector<4x1xf32> to vector<4x32xf32>
    %332 = arith.subf %315, %331 : vector<4x32xf32>
    %cst_125 = arith.constant 9.99999974E-6 : f32
    %333 = vector.broadcast %cst_125 : f32 to vector<4x1xf32>
    %334 = arith.addf %330, %333 : vector<4x1xf32>
    %335 = math.rsqrt %334 : vector<4x1xf32>
    %336 = vector.broadcast %335 : vector<4x1xf32> to vector<4x32xf32>
    %337 = arith.mulf %332, %336 : vector<4x32xf32>
    %338 = vector.broadcast %317 : vector<1x32xf32> to vector<4x32xf32>
    %339 = arith.mulf %337, %338 : vector<4x32xf32>
    %340 = vector.broadcast %319 : vector<1x32xf32> to vector<4x32xf32>
    %341 = arith.addf %339, %340 : vector<4x32xf32>
    %c1_126 = arith.constant 1 : index
    %c0_127 = arith.constant 0 : index
    %c0_128 = arith.constant 0 : index
    %342 = vector.load %arg9[%c1_126, %c0_127, %c0_128] : memref<2x32x96xbf16, #tpu.memory_space<vmem>>, vector<1x32x96xbf16>
    %343 = vector.shape_cast %342 : vector<1x32x96xbf16> to vector<32x96xbf16>
    %c1_129 = arith.constant 1 : index
    %c0_130 = arith.constant 0 : index
    %c0_131 = arith.constant 0 : index
    %344 = vector.load %arg10[%c1_129, %c0_130, %c0_131] : memref<2x1x96xf32, #tpu.memory_space<vmem>>, vector<1x1x96xf32>
    %345 = vector.shape_cast %344 : vector<1x1x96xf32> to vector<1x96xf32>
    %346 = arith.truncf %341 : vector<4x32xf32> to vector<4x32xbf16>
    %cst_132 = arith.constant dense<0.000000e+00> : vector<4x96xf32>
    %347 = tpu.matmul %346, %343, %cst_132 {dimension_numbers = #tpu.dot_dimension_numbers<[1], [0], [0], [1], [0, 0, 1, 1], [], []>} : vector<4x32xbf16>, vector<32x96xbf16>, vector<4x96xf32> -> vector<4x96xf32>
    %348 = vector.broadcast %345 : vector<1x96xf32> to vector<4x96xf32>
    %349 = arith.addf %347, %348 : vector<4x96xf32>
    %350 = vector.extract_strided_slice %349 {offsets = [0, 0], sizes = [4, 32], strides = [1, 1]} : vector<4x96xf32> to vector<4x32xf32>
    %351 = vector.extract_strided_slice %349 {offsets = [0, 32], sizes = [4, 32], strides = [1, 1]} : vector<4x96xf32> to vector<4x32xf32>
    %352 = vector.extract_strided_slice %349 {offsets = [0, 64], sizes = [4, 32], strides = [1, 1]} : vector<4x96xf32> to vector<4x32xf32>
    %353 = vector.extract_strided_slice %350 {offsets = [0, 0], sizes = [4, 8], strides = [1, 1]} : vector<4x32xf32> to vector<4x8xf32>
    %354 = vector.extract_strided_slice %350 {offsets = [0, 8], sizes = [4, 8], strides = [1, 1]} : vector<4x32xf32> to vector<4x8xf32>
    %355 = vector.extract_strided_slice %350 {offsets = [0, 16], sizes = [4, 8], strides = [1, 1]} : vector<4x32xf32> to vector<4x8xf32>
    %356 = vector.extract_strided_slice %350 {offsets = [0, 24], sizes = [4, 8], strides = [1, 1]} : vector<4x32xf32> to vector<4x8xf32>
    %357 = vector.shape_cast %353 : vector<4x8xf32> to vector<1x4x8xf32>
    %358 = vector.shape_cast %354 : vector<4x8xf32> to vector<1x4x8xf32>
    %359 = vector.shape_cast %355 : vector<4x8xf32> to vector<1x4x8xf32>
    %360 = vector.shape_cast %356 : vector<4x8xf32> to vector<1x4x8xf32>
    %361 = tpu.concatenate %357, %358, %359, %360 in 0 : vector<1x4x8xf32>, vector<1x4x8xf32>, vector<1x4x8xf32>, vector<1x4x8xf32> -> vector<4x4x8xf32>
    %362 = arith.truncf %361 : vector<4x4x8xf32> to vector<4x4x8xbf16>
    %363 = vector.extract_strided_slice %351 {offsets = [0, 0], sizes = [4, 8], strides = [1, 1]} : vector<4x32xf32> to vector<4x8xf32>
    %364 = vector.extract_strided_slice %351 {offsets = [0, 8], sizes = [4, 8], strides = [1, 1]} : vector<4x32xf32> to vector<4x8xf32>
    %365 = vector.extract_strided_slice %351 {offsets = [0, 16], sizes = [4, 8], strides = [1, 1]} : vector<4x32xf32> to vector<4x8xf32>
    %366 = vector.extract_strided_slice %351 {offsets = [0, 24], sizes = [4, 8], strides = [1, 1]} : vector<4x32xf32> to vector<4x8xf32>
    %367 = vector.shape_cast %363 : vector<4x8xf32> to vector<1x4x8xf32>
    %368 = vector.shape_cast %364 : vector<4x8xf32> to vector<1x4x8xf32>
    %369 = vector.shape_cast %365 : vector<4x8xf32> to vector<1x4x8xf32>
    %370 = vector.shape_cast %366 : vector<4x8xf32> to vector<1x4x8xf32>
    %371 = tpu.concatenate %367, %368, %369, %370 in 0 : vector<1x4x8xf32>, vector<1x4x8xf32>, vector<1x4x8xf32>, vector<1x4x8xf32> -> vector<4x4x8xf32>
    %372 = arith.truncf %371 : vector<4x4x8xf32> to vector<4x4x8xbf16>
    %373 = vector.extract_strided_slice %352 {offsets = [0, 0], sizes = [4, 8], strides = [1, 1]} : vector<4x32xf32> to vector<4x8xf32>
    %374 = vector.extract_strided_slice %352 {offsets = [0, 8], sizes = [4, 8], strides = [1, 1]} : vector<4x32xf32> to vector<4x8xf32>
    %375 = vector.extract_strided_slice %352 {offsets = [0, 16], sizes = [4, 8], strides = [1, 1]} : vector<4x32xf32> to vector<4x8xf32>
    %376 = vector.extract_strided_slice %352 {offsets = [0, 24], sizes = [4, 8], strides = [1, 1]} : vector<4x32xf32> to vector<4x8xf32>
    %377 = vector.shape_cast %373 : vector<4x8xf32> to vector<1x4x8xf32>
    %378 = vector.shape_cast %374 : vector<4x8xf32> to vector<1x4x8xf32>
    %379 = vector.shape_cast %375 : vector<4x8xf32> to vector<1x4x8xf32>
    %380 = vector.shape_cast %376 : vector<4x8xf32> to vector<1x4x8xf32>
    %381 = tpu.concatenate %377, %378, %379, %380 in 0 : vector<1x4x8xf32>, vector<1x4x8xf32>, vector<1x4x8xf32>, vector<1x4x8xf32> -> vector<4x4x8xf32>
    %382 = arith.truncf %381 : vector<4x4x8xf32> to vector<4x4x8xbf16>
    "tpu.trace_start"() <{level = 10 : i32, message = "hqd,hkd->hqk"}> : () -> ()
    %cst_133 = arith.constant dense<0.000000e+00> : vector<4x4x4xf32>
    %383 = tpu.matmul %362, %372, %cst_133 {dimension_numbers = #tpu.dot_dimension_numbers<[2], [2], [1], [1], [0, 0, 0, 1, 1, 1], [0], [0]>} : vector<4x4x8xbf16>, vector<4x4x8xbf16>, vector<4x4x4xf32> -> vector<4x4x4xf32>
    "tpu.trace_stop"() : () -> ()
    %cst_134 = arith.constant dense<0xFF800000> : vector<4x4xf32>
    %384 = vector.multi_reduction <maximumf>, %383, %cst_134 [2] : vector<4x4x4xf32> to vector<4x4xf32>
    %385 = vector.shape_cast %384 : vector<4x4xf32> to vector<4x4x1xf32>
    %386 = vector.broadcast %385 : vector<4x4x1xf32> to vector<4x4x4xf32>
    %387 = arith.subf %383, %386 : vector<4x4x4xf32>
    %388 = math.exp %387 : vector<4x4x4xf32>
    %cst_135 = arith.constant dense<0.000000e+00> : vector<4x4xf32>
    %389 = vector.multi_reduction <add>, %388, %cst_135 [2] : vector<4x4x4xf32> to vector<4x4xf32>
    %390 = vector.shape_cast %389 : vector<4x4xf32> to vector<4x4x1xf32>
    %391 = vector.broadcast %390 : vector<4x4x1xf32> to vector<4x4x4xf32>
    %392 = arith.divf %388, %391 : vector<4x4x4xf32>
    %393 = arith.truncf %392 : vector<4x4x4xf32> to vector<4x4x4xbf16>
    "tpu.trace_start"() <{level = 10 : i32, message = "hqk,hkd->hqd"}> : () -> ()
    %cst_136 = arith.constant dense<0.000000e+00> : vector<4x4x8xf32>
    %394 = tpu.matmul %393, %382, %cst_136 {dimension_numbers = #tpu.dot_dimension_numbers<[2], [1], [1], [2], [0, 0, 0, 1, 1, 2], [0], [0]>} : vector<4x4x4xbf16>, vector<4x4x8xbf16>, vector<4x4x8xf32> -> vector<4x4x8xf32>
    "tpu.trace_stop"() : () -> ()
    %395 = vector.extract_strided_slice %394 {offsets = [0, 0, 0], sizes = [1, 4, 8], strides = [1, 1, 1]} : vector<4x4x8xf32> to vector<1x4x8xf32>
    %396 = vector.shape_cast %395 : vector<1x4x8xf32> to vector<4x8xf32>
    %397 = vector.extract_strided_slice %394 {offsets = [1, 0, 0], sizes = [1, 4, 8], strides = [1, 1, 1]} : vector<4x4x8xf32> to vector<1x4x8xf32>
    %398 = vector.shape_cast %397 : vector<1x4x8xf32> to vector<4x8xf32>
    %399 = vector.extract_strided_slice %394 {offsets = [2, 0, 0], sizes = [1, 4, 8], strides = [1, 1, 1]} : vector<4x4x8xf32> to vector<1x4x8xf32>
    %400 = vector.shape_cast %399 : vector<1x4x8xf32> to vector<4x8xf32>
    %401 = vector.extract_strided_slice %394 {offsets = [3, 0, 0], sizes = [1, 4, 8], strides = [1, 1, 1]} : vector<4x4x8xf32> to vector<1x4x8xf32>
    %402 = vector.shape_cast %401 : vector<1x4x8xf32> to vector<4x8xf32>
    %403 = tpu.concatenate %396, %398, %400, %402 in 1 : vector<4x8xf32>, vector<4x8xf32>, vector<4x8xf32>, vector<4x8xf32> -> vector<4x32xf32>
    %c1_137 = arith.constant 1 : index
    %c0_138 = arith.constant 0 : index
    %c0_139 = arith.constant 0 : index
    %404 = vector.load %arg11[%c1_137, %c0_138, %c0_139] : memref<2x32x32xbf16, #tpu.memory_space<vmem>>, vector<1x32x32xbf16>
    %405 = vector.shape_cast %404 : vector<1x32x32xbf16> to vector<32x32xbf16>
    %c1_140 = arith.constant 1 : index
    %c0_141 = arith.constant 0 : index
    %c0_142 = arith.constant 0 : index
    %406 = vector.load %arg12[%c1_140, %c0_141, %c0_142] : memref<2x1x32xf32, #tpu.memory_space<vmem>>, vector<1x1x32xf32>
    %407 = vector.shape_cast %406 : vector<1x1x32xf32> to vector<1x32xf32>
    %408 = arith.truncf %403 : vector<4x32xf32> to vector<4x32xbf16>
    %cst_143 = arith.constant dense<0.000000e+00> : vector<4x32xf32>
    %409 = tpu.matmul %408, %405, %cst_143 {dimension_numbers = #tpu.dot_dimension_numbers<[1], [0], [0], [1], [0, 0, 1, 1], [], []>} : vector<4x32xbf16>, vector<32x32xbf16>, vector<4x32xf32> -> vector<4x32xf32>
    %410 = vector.broadcast %407 : vector<1x32xf32> to vector<4x32xf32>
    %411 = arith.addf %409, %410 : vector<4x32xf32>
    %412 = arith.addf %315, %411 : vector<4x32xf32>
    %c1_144 = arith.constant 1 : index
    %c0_145 = arith.constant 0 : index
    %c0_146 = arith.constant 0 : index
    %413 = vector.load %arg13[%c1_144, %c0_145, %c0_146] : memref<2x1x32xf32, #tpu.memory_space<vmem>>, vector<1x1x32xf32>
    %414 = vector.shape_cast %413 : vector<1x1x32xf32> to vector<1x32xf32>
    %c1_147 = arith.constant 1 : index
    %c0_148 = arith.constant 0 : index
    %c0_149 = arith.constant 0 : index
    %415 = vector.load %arg14[%c1_147, %c0_148, %c0_149] : memref<2x1x32xf32, #tpu.memory_space<vmem>>, vector<1x1x32xf32>
    %416 = vector.shape_cast %415 : vector<1x1x32xf32> to vector<1x32xf32>
    %cst_150 = arith.constant dense<0.000000e+00> : vector<4xf32>
    %417 = vector.multi_reduction <add>, %412, %cst_150 [1] : vector<4x32xf32> to vector<4xf32>
    %418 = vector.shape_cast %417 : vector<4xf32> to vector<4x1xf32>
    %cst_151 = arith.constant 3.200000e+01 : f32
    %419 = vector.broadcast %cst_151 : f32 to vector<4x1xf32>
    %420 = arith.divf %418, %419 : vector<4x1xf32>
    %421 = vector.broadcast %420 : vector<4x1xf32> to vector<4x32xf32>
    %422 = arith.subf %412, %421 : vector<4x32xf32>
    %423 = arith.mulf %422, %422 : vector<4x32xf32>
    %cst_152 = arith.constant dense<0.000000e+00> : vector<4xf32>
    %424 = vector.multi_reduction <add>, %423, %cst_152 [1] : vector<4x32xf32> to vector<4xf32>
    %425 = vector.shape_cast %424 : vector<4xf32> to vector<4x1xf32>
    %cst_153 = arith.constant 3.200000e+01 : f32
    %426 = vector.broadcast %cst_153 : f32 to vector<4x1xf32>
    %427 = arith.divf %425, %426 : vector<4x1xf32>
    %428 = vector.broadcast %420 : vector<4x1xf32> to vector<4x32xf32>
    %429 = arith.subf %412, %428 : vector<4x32xf32>
    %cst_154 = arith.constant 9.99999974E-6 : f32
    %430 = vector.broadcast %cst_154 : f32 to vector<4x1xf32>
    %431 = arith.addf %427, %430 : vector<4x1xf32>
    %432 = math.rsqrt %431 : vector<4x1xf32>
    %433 = vector.broadcast %432 : vector<4x1xf32> to vector<4x32xf32>
    %434 = arith.mulf %429, %433 : vector<4x32xf32>
    %435 = vector.broadcast %414 : vector<1x32xf32> to vector<4x32xf32>
    %436 = arith.mulf %434, %435 : vector<4x32xf32>
    %437 = vector.broadcast %416 : vector<1x32xf32> to vector<4x32xf32>
    %438 = arith.addf %436, %437 : vector<4x32xf32>
    %c1_155 = arith.constant 1 : index
    %c0_156 = arith.constant 0 : index
    %c0_157 = arith.constant 0 : index
    %439 = vector.load %arg15[%c1_155, %c0_156, %c0_157] : memref<2x32x64xbf16, #tpu.memory_space<vmem>>, vector<1x32x64xbf16>
    %440 = vector.shape_cast %439 : vector<1x32x64xbf16> to vector<32x64xbf16>
    %c1_158 = arith.constant 1 : index
    %c0_159 = arith.constant 0 : index
    %c0_160 = arith.constant 0 : index
    %441 = vector.load %arg16[%c1_158, %c0_159, %c0_160] : memref<2x1x64xf32, #tpu.memory_space<vmem>>, vector<1x1x64xf32>
    %442 = vector.shape_cast %441 : vector<1x1x64xf32> to vector<1x64xf32>
    %443 = arith.truncf %438 : vector<4x32xf32> to vector<4x32xbf16>
    %cst_161 = arith.constant dense<0.000000e+00> : vector<4x64xf32>
    %444 = tpu.matmul %443, %440, %cst_161 {dimension_numbers = #tpu.dot_dimension_numbers<[1], [0], [0], [1], [0, 0, 1, 1], [], []>} : vector<4x32xbf16>, vector<32x64xbf16>, vector<4x64xf32> -> vector<4x64xf32>
    %445 = vector.broadcast %442 : vector<1x64xf32> to vector<4x64xf32>
    %446 = arith.addf %444, %445 : vector<4x64xf32>
    %cst_162 = arith.constant 0.000000e+00 : f32
    %447 = vector.broadcast %cst_162 : f32 to vector<4x64xf32>
    %448 = arith.maximumf %446, %447 : vector<4x64xf32>
    %c1_163 = arith.constant 1 : index
    %c0_164 = arith.constant 0 : index
    %c0_165 = arith.constant 0 : index
    %449 = vector.load %arg17[%c1_163, %c0_164, %c0_165] : memref<2x64x32xbf16, #tpu.memory_space<vmem>>, vector<1x64x32xbf16>
    %450 = vector.shape_cast %449 : vector<1x64x32xbf16> to vector<64x32xbf16>
    %c1_166 = arith.constant 1 : index
    %c0_167 = arith.constant 0 : index
    %c0_168 = arith.constant 0 : index
    %451 = vector.load %arg18[%c1_166, %c0_167, %c0_168] : memref<2x1x32xf32, #tpu.memory_space<vmem>>, vector<1x1x32xf32>
    %452 = vector.shape_cast %451 : vector<1x1x32xf32> to vector<1x32xf32>
    %453 = arith.truncf %448 : vector<4x64xf32> to vector<4x64xbf16>
    %cst_169 = arith.constant dense<0.000000e+00> : vector<4x32xf32>
    %454 = tpu.matmul %453, %450, %cst_169 {dimension_numbers = #tpu.dot_dimension_numbers<[1], [0], [0], [1], [0, 0, 1, 1], [], []>} : vector<4x64xbf16>, vector<64x32xbf16>, vector<4x32xf32> -> vector<4x32xf32>
    %455 = vector.broadcast %452 : vector<1x32xf32> to vector<4x32xf32>
    %456 = arith.addf %454, %455 : vector<4x32xf32>
    %457 = arith.addf %412, %456 : vector<4x32xf32>
    %c0_170 = arith.constant 0 : index
    %c0_171 = arith.constant 0 : index
    %458 = vector.load %arg19[%c0_170, %c0_171] : memref<1x32xf32, #tpu.memory_space<vmem>>, vector<1x32xf32>
    %c0_172 = arith.constant 0 : index
    %c0_173 = arith.constant 0 : index
    %459 = vector.load %arg20[%c0_172, %c0_173] : memref<1x32xf32, #tpu.memory_space<vmem>>, vector<1x32xf32>
    %cst_174 = arith.constant dense<0.000000e+00> : vector<4xf32>
    %460 = vector.multi_reduction <add>, %457, %cst_174 [1] : vector<4x32xf32> to vector<4xf32>
    %461 = vector.shape_cast %460 : vector<4xf32> to vector<4x1xf32>
    %cst_175 = arith.constant 3.200000e+01 : f32
    %462 = vector.broadcast %cst_175 : f32 to vector<4x1xf32>
    %463 = arith.divf %461, %462 : vector<4x1xf32>
    %464 = vector.broadcast %463 : vector<4x1xf32> to vector<4x32xf32>
    %465 = arith.subf %457, %464 : vector<4x32xf32>
    %466 = arith.mulf %465, %465 : vector<4x32xf32>
    %cst_176 = arith.constant dense<0.000000e+00> : vector<4xf32>
    %467 = vector.multi_reduction <add>, %466, %cst_176 [1] : vector<4x32xf32> to vector<4xf32>
    %468 = vector.shape_cast %467 : vector<4xf32> to vector<4x1xf32>
    %cst_177 = arith.constant 3.200000e+01 : f32
    %469 = vector.broadcast %cst_177 : f32 to vector<4x1xf32>
    %470 = arith.divf %468, %469 : vector<4x1xf32>
    %471 = vector.broadcast %463 : vector<4x1xf32> to vector<4x32xf32>
    %472 = arith.subf %457, %471 : vector<4x32xf32>
    %cst_178 = arith.constant 9.99999974E-6 : f32
    %473 = vector.broadcast %cst_178 : f32 to vector<4x1xf32>
    %474 = arith.addf %470, %473 : vector<4x1xf32>
    %475 = math.rsqrt %474 : vector<4x1xf32>
    %476 = vector.broadcast %475 : vector<4x1xf32> to vector<4x32xf32>
    %477 = arith.mulf %472, %476 : vector<4x32xf32>
    %478 = vector.broadcast %458 : vector<1x32xf32> to vector<4x32xf32>
    %479 = arith.mulf %477, %478 : vector<4x32xf32>
    %480 = vector.broadcast %459 : vector<1x32xf32> to vector<4x32xf32>
    %481 = arith.addf %479, %480 : vector<4x32xf32>
    %c0_179 = arith.constant 0 : index
    %c0_180 = arith.constant 0 : index
    %c0_181 = arith.constant 0 : index
    %482 = vector.load %arg21[%c0_179, %c0_180, %c0_181] : memref<1x4x32xf32, #tpu.memory_space<vmem>>, vector<1x4x32xf32>
    %483 = vector.shape_cast %482 : vector<1x4x32xf32> to vector<4x32xf32>
    %484 = vector.shape_cast %481 : vector<4x32xf32> to vector<1x4x32xf32>
    tpu.vector_store %arg21[%c0_179, %c0_180, %c0_181], %484 {strides = array<i32>} : memref<1x4x32xf32, #tpu.memory_space<vmem>>, vector<1x4x32xf32>,
    return
  }
  func.func @transform_0(%arg0: i32) -> (i32, i32, i32) {
    %c0_i32 = arith.constant 0 : i32
    %c0_i32_0 = arith.constant 0 : i32
    %c0_i32_1 = arith.constant 0 : i32
    return %arg0, %c0_i32, %c0_i32_0 : i32, i32, i32
  }
  func.func @transform_1(%arg0: i32) -> (i32, i32) {
    %c0_i32 = arith.constant 0 : i32
    %c0_i32_0 = arith.constant 0 : i32
    %c0_i32_1 = arith.constant 0 : i32
    return %c0_i32, %c0_i32_0 : i32, i32
  }
  func.func @transform_2(%arg0: i32) -> (i32, i32) {
    %c0_i32 = arith.constant 0 : i32
    %c0_i32_0 = arith.constant 0 : i32
    %c0_i32_1 = arith.constant 0 : i32
    return %c0_i32, %c0_i32_0 : i32, i32
  }
  func.func @transform_3(%arg0: i32) -> (i32, i32, i32, i32) {
    %c0_i32 = arith.constant 0 : i32
    %c0_i32_0 = arith.constant 0 : i32
    %c0_i32_1 = arith.constant 0 : i32
    %c0_i32_2 = arith.constant 0 : i32
    %c0_i32_3 = arith.constant 0 : i32
    return %c0_i32, %c0_i32_0, %c0_i32_1, %c0_i32_2 : i32, i32, i32, i32
  }
  func.func @transform_4(%arg0: i32) -> (i32, i32, i32) {
    %c0_i32 = arith.constant 0 : i32
    %c0_i32_0 = arith.constant 0 : i32
    %c0_i32_1 = arith.constant 0 : i32
    %c0_i32_2 = arith.constant 0 : i32
    return %c0_i32, %c0_i32_0, %c0_i32_1 : i32, i32, i32
  }
  func.func @transform_5(%arg0: i32) -> (i32, i32) {
    %c0_i32 = arith.constant 0 : i32
    %c0_i32_0 = arith.constant 0 : i32
    %c0_i32_1 = arith.constant 0 : i32
    return %c0_i32, %c0_i32_0 : i32, i32
  }
  func.func @transform_6(%arg0: i32) -> (i32, i32, i32) {
    %c0_i32 = arith.constant 0 : i32
    %c0_i32_0 = arith.constant 0 : i32
    %c0_i32_1 = arith.constant 0 : i32
    %c0_i32_2 = arith.constant 0 : i32
    return %c0_i32, %c0_i32_0, %c0_i32_1 : i32, i32, i32
  }
  func.func @transform_7(%arg0: i32) -> (i32, i32, i32) {
    %c0_i32 = arith.constant 0 : i32
    %c0_i32_0 = arith.constant 0 : i32
    %c0_i32_1 = arith.constant 0 : i32
    %c0_i32_2 = arith.constant 0 : i32
    return %c0_i32, %c0_i32_0, %c0_i32_1 : i32, i32, i32
  }
  func.func @transform_8(%arg0: i32) -> (i32, i32, i32) {
    %c0_i32 = arith.constant 0 : i32
    %c0_i32_0 = arith.constant 0 : i32
    %c0_i32_1 = arith.constant 0 : i32
    %c0_i32_2 = arith.constant 0 : i32
    return %c0_i32, %c0_i32_0, %c0_i32_1 : i32, i32, i32
  }
  func.func @transform_9(%arg0: i32) -> (i32, i32, i32) {
    %c0_i32 = arith.constant 0 : i32
    %c0_i32_0 = arith.constant 0 : i32
    %c0_i32_1 = arith.constant 0 : i32
    %c0_i32_2 = arith.constant 0 : i32
    return %c0_i32, %c0_i32_0, %c0_i32_1 : i32, i32, i32
  }
  func.func @transform_10(%arg0: i32) -> (i32, i32, i32) {
    %c0_i32 = arith.constant 0 : i32
    %c0_i32_0 = arith.constant 0 : i32
    %c0_i32_1 = arith.constant 0 : i32
    %c0_i32_2 = arith.constant 0 : i32
    return %c0_i32, %c0_i32_0, %c0_i32_1 : i32, i32, i32
  }
  func.func @transform_11(%arg0: i32) -> (i32, i32, i32) {
    %c0_i32 = arith.constant 0 : i32
    %c0_i32_0 = arith.constant 0 : i32
    %c0_i32_1 = arith.constant 0 : i32
    %c0_i32_2 = arith.constant 0 : i32
    return %c0_i32, %c0_i32_0, %c0_i32_1 : i32, i32, i32
  }
  func.func @transform_12(%arg0: i32) -> (i32, i32, i32) {
    %c0_i32 = arith.constant 0 : i32
    %c0_i32_0 = arith.constant 0 : i32
    %c0_i32_1 = arith.constant 0 : i32
    %c0_i32_2 = arith.constant 0 : i32
    return %c0_i32, %c0_i32_0, %c0_i32_1 : i32, i32, i32
  }
  func.func @transform_13(%arg0: i32) -> (i32, i32, i32) {
    %c0_i32 = arith.constant 0 : i32
    %c0_i32_0 = arith.constant 0 : i32
    %c0_i32_1 = arith.constant 0 : i32
    %c0_i32_2 = arith.constant 0 : i32
    return %c0_i32, %c0_i32_0, %c0_i32_1 : i32, i32, i32
  }
  func.func @transform_14(%arg0: i32) -> (i32, i32, i32) {
    %c0_i32 = arith.constant 0 : i32
    %c0_i32_0 = arith.constant 0 : i32
    %c0_i32_1 = arith.constant 0 : i32
    %c0_i32_2 = arith.constant 0 : i32
    return %c0_i32, %c0_i32_0, %c0_i32_1 : i32, i32, i32
  }
  func.func @transform_15(%arg0: i32) -> (i32, i32, i32) {
    %c0_i32 = arith.constant 0 : i32
    %c0_i32_0 = arith.constant 0 : i32
    %c0_i32_1 = arith.constant 0 : i32
    %c0_i32_2 = arith.constant 0 : i32
    return %c0_i32, %c0_i32_0, %c0_i32_1 : i32, i32, i32
  }
  func.func @transform_16(%arg0: i32) -> (i32, i32, i32) {
    %c0_i32 = arith.constant 0 : i32
    %c0_i32_0 = arith.constant 0 : i32
    %c0_i32_1 = arith.constant 0 : i32
    %c0_i32_2 = arith.constant 0 : i32
    return %c0_i32, %c0_i32_0, %c0_i32_1 : i32, i32, i32
  }
  func.func @transform_17(%arg0: i32) -> (i32, i32, i32) {
    %c0_i32 = arith.constant 0 : i32
    %c0_i32_0 = arith.constant 0 : i32
    %c0_i32_1 = arith.constant 0 : i32
    %c0_i32_2 = arith.constant 0 : i32
    return %c0_i32, %c0_i32_0, %c0_i32_1 : i32, i32, i32
  }
  func.func @transform_18(%arg0: i32) -> (i32, i32) {
    %c0_i32 = arith.constant 0 : i32
    %c0_i32_0 = arith.constant 0 : i32
    %c0_i32_1 = arith.constant 0 : i32
    return %c0_i32, %c0_i32_0 : i32, i32
  }
  func.func @transform_19(%arg0: i32) -> (i32, i32) {
    %c0_i32 = arith.constant 0 : i32
    %c0_i32_0 = arith.constant 0 : i32
    %c0_i32_1 = arith.constant 0 : i32
    return %c0_i32, %c0_i32_0 : i32, i32
  }
  func.func @transform_20(%arg0: i32) -> (i32, i32, i32) {
    %c0_i32 = arith.constant 0 : i32
    %c0_i32_0 = arith.constant 0 : i32
    %c0_i32_1 = arith.constant 0 : i32
    return %arg0, %c0_i32, %c0_i32_0 : i32, i32, i32
  }
}

</mosaic_0001>

<llo_original>
// kernel: tpu_custom_call.1
$region0: #{tpu_custom_call.1}
  #allocation0 [shape = 'u32[]', space=smem, size = 0x4, offset = 0x4, fixed_abs, tag = 'smem constant byte address 0x4 - core index']
  #allocation1 [shape = 'u32[144,128]{1,0:T(1,128)}', space=vmem, size = 0x12000, scoped, tag = 'internal scratch']
  %s0 = inlined_call_operand.vmem [shape: f32[2,16,8], index: 0, kind: input, shape index: {}]
  %s1 = inlined_call_operand.vmem [shape: bf16[8,32], index: 1, kind: input, shape index: {}]
  %s2 = inlined_call_operand.vmem [shape: f32[1,32], index: 2, kind: input, shape index: {}]
  %s3 = inlined_call_operand.hbm [shape: bf16[2,5,32,32], index: 3, kind: input, shape index: {}]
  %s4 = inlined_call_operand.vmem [shape: f32[2,1,32], index: 4, kind: input, shape index: {}]
  %s5 = inlined_call_operand.vmem [shape: f32[4,32], index: 5, kind: input, shape index: {}]
  %s6 = inlined_call_operand.vmem [shape: f32[2,1,32], index: 6, kind: input, shape index: {}]
  %s7 = inlined_call_operand.vmem [shape: f32[2,1,32], index: 7, kind: input, shape index: {}]
  %s8 = inlined_call_operand.vmem [shape: bf16[2,32,96], index: 8, kind: input, shape index: {}]
  %s9 = inlined_call_operand.vmem [shape: f32[2,1,96], index: 9, kind: input, shape index: {}]
  %s10 = inlined_call_operand.vmem [shape: bf16[2,32,32], index: 10, kind: input, shape index: {}]
  %s11 = inlined_call_operand.vmem [shape: f32[2,1,32], index: 11, kind: input, shape index: {}]
  %s12 = inlined_call_operand.vmem [shape: f32[2,1,32], index: 12, kind: input, shape index: {}]
  %s13 = inlined_call_operand.vmem [shape: f32[2,1,32], index: 13, kind: input, shape index: {}]
  %s14 = inlined_call_operand.vmem [shape: bf16[2,32,64], index: 14, kind: input, shape index: {}]
  %s15 = inlined_call_operand.vmem [shape: f32[2,1,64], index: 15, kind: input, shape index: {}]
  %s16 = inlined_call_operand.vmem [shape: bf16[2,64,32], index: 16, kind: input, shape index: {}]
  %s17 = inlined_call_operand.vmem [shape: f32[2,1,32], index: 17, kind: input, shape index: {}]
  %s18 = inlined_call_operand.vmem [shape: f32[1,32], index: 18, kind: input, shape index: {}]
  %s19 = inlined_call_operand.vmem [shape: f32[1,32], index: 19, kind: input, shape index: {}]
  %s20 = inlined_call_operand.hbm [shape: f32[2,4,32], index: 20, kind: output, shape index: {}]
  %s21 = sld [smem:[#allocation0]]
  $region117: #{tpu_custom_call.1} parent=0
    _
  %s23 = ssub.s32 1, %s21
  %s24 = scalar_select 0, %s23, %s21
  $region1: #{tpu_custom_call.1} parent=0
    #allocation2 [shape = 'u8[81920]{0}', space=vmem, size = 0x14000, scoped, tag = 'input window, operand 3, single buffered']
    #allocation3 [shape = 's32[2]{0}', space=sflag, size = 0x8, scoped, tag = 'scoped memory for tpu_custom_call.1']
    #allocation4 [shape = 's32[2]{0}', space=sflag, size = 0x8, scoped, tag = 'scoped memory for tpu_custom_call.1']
    #allocation5 [shape = 'u8[4096]{0}', space=vmem, size = 0x1000, scoped, tag = 'output window, operand 0']
    %25 = vsyncpa [#allocation3], 0
    %26 = vsyncpa [#allocation4], 0
    %s27 = scalar_lea.sflag [#allocation4], 1
    %28 = vsyncpa %s27, 0
    loop: start=0, step=1, limit=4
    $region2: #{tpu_custom_call.1} parent=1 // loop_pre_header
      _
    $region3: #{tpu_custom_call.1} parent=1 // loop_header
      %s30 = sphi 0, %s34
      %p31 = scmp.ge.s32.totalorder %s30, 4
      %s40 = sphi 0, %s42
      %s43 = sphi 0, %s40
      %s44 = sphi 0, %s43
      %s60 = sphi 0, %s44
      %s64 = sphi 0, %s64
      %s66 = sphi 0, %s64
      %s67 = sphi 0, %s66
      %s81 = sphi 0, %s67
      %s85 = sphi 0, %s85
      %s87 = sphi 0, %s85
      %s88 = sphi 0, %s87
      %s102 = sphi 0, %s88
      %s106 = sphi 0, %s106
      %s108 = sphi 0, %s106
      %s109 = sphi 0, %s108
      %s123 = sphi 0, %s109
      %s127 = sphi 0, %s127
      %s129 = sphi 0, %s127
      %s130 = sphi 0, %s129
      %s144 = sphi 0, %s130
      %s148 = sphi 0, %s148
      %s150 = sphi 0, %s148
      %s151 = sphi 0, %s150
      %s165 = sphi 0, %s151
      %s169 = sphi 0, %s169
      %s171 = sphi 0, %s169
      %s172 = sphi 0, %s171
      %s186 = sphi 0, %s172
      %s190 = sphi 0, %s190
      %s192 = sphi 0, %s190
      %s193 = sphi 0, %s192
      %s207 = sphi 0, %s193
      %s211 = sphi 0, %s211
      %s213 = sphi 0, %s211
      %s214 = sphi 0, %s213
      %s228 = sphi 0, %s214
      %s232 = sphi 0, %s232
      %s234 = sphi 0, %s232
      %s235 = sphi 0, %s234
      %s249 = sphi 0, %s235
      %s253 = sphi 0, %s253
      %s255 = sphi 0, %s253
      %s256 = sphi 0, %s255
      %s270 = sphi 0, %s256
      %s274 = sphi 0, %s274
      %s276 = sphi 0, %s274
      %s277 = sphi 0, %s276
      %s291 = sphi 0, %s277
      %s295 = sphi 0, %s295
      %s297 = sphi 0, %s295
      %s298 = sphi 0, %s297
      %s312 = sphi 0, %s298
      %s316 = sphi 0, %s316
      %s318 = sphi 0, %s316
      %s319 = sphi 0, %s318
      %s333 = sphi 0, %s319
      %s337 = sphi 0, %s337
      %s339 = sphi 0, %s337
      %s340 = sphi 0, %s339
      %s354 = sphi 0, %s340
      %s358 = sphi 0, %s358
      %s360 = sphi 0, %s358
      %s361 = sphi 0, %s360
      %s375 = sphi 0, %s361
      %s379 = sphi 0, %s379
      %s381 = sphi 0, %s379
      %s382 = sphi 0, %s381
      %s396 = sphi 0, %s382
      %s400 = sphi 0, %s400
      %s402 = sphi 0, %s400
      %s403 = sphi 0, %s402
      %s417 = sphi 0, %s403
      %s421 = sphi 0, %s421
      %s423 = sphi 0, %s421
      %s424 = sphi 0, %s423
      %s438 = sphi 0, %s424
      %s442 = sphi 0, %s442
      %s444 = sphi 0, %s442
      %s445 = sphi 0, %s444
      %s459 = sphi 0, %s445
      %s465 = sphi 0, %s467
      %s468 = sphi 0, %s465
      %s469 = sphi 0, %s468
      %s485 = sphi 0, %s469
    $region4: #{tpu_custom_call.1} parent=1 // loop_header_branch
      %33 = sbr.rel (%p31) target = $region8
    $region5: #{tpu_custom_call.1} parent=1 // loop_body
      %s35 = ssub.s32 %s30, 1
      %s36 = ssub.s32 %s30, 2
      %s37 = sadd.s32 %s30, 1
      %s38 = ssub.s32 %s30, %s37
      %p39 = scmp.eq.s32.totalorder %s38, 0
      %s41 = sadd.s32 %s40, 1
      %s42 = scalar_select %p39, %s40, %s41
      %p45 = pneg %p39
      %p46 = scmp.eq.s32.totalorder %s30, 1
      %p47 = por %p45, %p46
      %p48 = scmp.ne.s32.totalorder %s40, %s43
      %p49 = scmp.eq.s32.totalorder %s30, 0
      %p50 = por %p48, %p49
      %p51 = scmp.ne.s32.totalorder %s40, %s43
      %p52 = scmp.eq.s32.totalorder %s35, 1
      %p53 = por %p51, %p52
      %p54 = scmp.ne.s32.totalorder %s43, %s44
      %p55 = scmp.eq.s32.totalorder %s35, 0
      %p56 = por %p54, %p55
      %p57 = scmp.ne.s32.totalorder %s43, %s44
      %p58 = scmp.eq.s32.totalorder %s36, 1
      %p59 = por %p57, %p58
      %p61 = scmp.ne.s32.totalorder %s44, %s60
      %p62 = scmp.eq.s32.totalorder %s36, 0
      %p63 = por %p61, %p62
      %s65 = sadd.s32 %s64, 1
      %p68 = scmp.eq.s32.totalorder %s30, 1
      %p69 = scmp.ne.s32.totalorder %s64, %s66
      %p70 = scmp.eq.s32.totalorder %s30, 0
      %p71 = por %p69, %p70
      %p72 = scmp.ne.s32.totalorder %s64, %s66
      %p73 = scmp.eq.s32.totalorder %s35, 1
      %p74 = por %p72, %p73
      %p75 = scmp.ne.s32.totalorder %s66, %s67
      %p76 = scmp.eq.s32.totalorder %s35, 0
      %p77 = por %p75, %p76
      %p78 = scmp.ne.s32.totalorder %s66, %s67
      %p79 = scmp.eq.s32.totalorder %s36, 1
      %p80 = por %p78, %p79
      %p82 = scmp.ne.s32.totalorder %s67, %s81
      %p83 = scmp.eq.s32.totalorder %s36, 0
      %p84 = por %p82, %p83
      %s86 = sadd.s32 %s85, 1
      %p89 = scmp.eq.s32.totalorder %s30, 1
      %p90 = scmp.ne.s32.totalorder %s85, %s87
      %p91 = scmp.eq.s32.totalorder %s30, 0
      %p92 = por %p90, %p91
      %p93 = scmp.ne.s32.totalorder %s85, %s87
      %p94 = scmp.eq.s32.totalorder %s35, 1
      %p95 = por %p93, %p94
      %p96 = scmp.ne.s32.totalorder %s87, %s88
      %p97 = scmp.eq.s32.totalorder %s35, 0
      %p98 = por %p96, %p97
      %p99 = scmp.ne.s32.totalorder %s87, %s88
      %p100 = scmp.eq.s32.totalorder %s36, 1
      %p101 = por %p99, %p100
      %p103 = scmp.ne.s32.totalorder %s88, %s102
      %p104 = scmp.eq.s32.totalorder %s36, 0
      %p105 = por %p103, %p104
      %s107 = sadd.s32 %s106, 1
      %p110 = scmp.eq.s32.totalorder %s30, 1
      %p111 = scmp.ne.s32.totalorder %s106, %s108
      %p112 = scmp.eq.s32.totalorder %s30, 0
      %p113 = por %p111, %p112
      %p114 = scmp.ne.s32.totalorder %s106, %s108
      %p115 = scmp.eq.s32.totalorder %s35, 1
      %p116 = por %p114, %p115
      %p117 = scmp.ne.s32.totalorder %s108, %s109
      %p118 = scmp.eq.s32.totalorder %s35, 0
      %p119 = por %p117, %p118
      %p120 = scmp.ne.s32.totalorder %s108, %s109
      %p121 = scmp.eq.s32.totalorder %s36, 1
      %p122 = por %p120, %p121
      %p124 = scmp.ne.s32.totalorder %s109, %s123
      %p125 = scmp.eq.s32.totalorder %s36, 0
      %p126 = por %p124, %p125
      %s128 = sadd.s32 %s127, 1
      %p131 = scmp.eq.s32.totalorder %s30, 1
      %p132 = scmp.ne.s32.totalorder %s127, %s129
      %p133 = scmp.eq.s32.totalorder %s30, 0
      %p134 = por %p132, %p133
      %p135 = scmp.ne.s32.totalorder %s127, %s129
      %p136 = scmp.eq.s32.totalorder %s35, 1
      %p137 = por %p135, %p136
      %p138 = scmp.ne.s32.totalorder %s129, %s130
      %p139 = scmp.eq.s32.totalorder %s35, 0
      %p140 = por %p138, %p139
      %p141 = scmp.ne.s32.totalorder %s129, %s130
      %p142 = scmp.eq.s32.totalorder %s36, 1
      %p143 = por %p141, %p142
      %p145 = scmp.ne.s32.totalorder %s130, %s144
      %p146 = scmp.eq.s32.totalorder %s36, 0
      %p147 = por %p145, %p146
      %s149 = sadd.s32 %s148, 1
      %p152 = scmp.eq.s32.totalorder %s30, 1
      %p153 = scmp.ne.s32.totalorder %s148, %s150
      %p154 = scmp.eq.s32.totalorder %s30, 0
      %p155 = por %p153, %p154
      %p156 = scmp.ne.s32.totalorder %s148, %s150
      %p157 = scmp.eq.s32.totalorder %s35, 1
      %p158 = por %p156, %p157
      %p159 = scmp.ne.s32.totalorder %s150, %s151
      %p160 = scmp.eq.s32.totalorder %s35, 0
      %p161 = por %p159, %p160
      %p162 = scmp.ne.s32.totalorder %s150, %s151
      %p163 = scmp.eq.s32.totalorder %s36, 1
      %p164 = por %p162, %p163
      %p166 = scmp.ne.s32.totalorder %s151, %s165
      %p167 = scmp.eq.s32.totalorder %s36, 0
      %p168 = por %p166, %p167
      %s170 = sadd.s32 %s169, 1
      %p173 = scmp.eq.s32.totalorder %s30, 1
      %p174 = scmp.ne.s32.totalorder %s169, %s171
      %p175 = scmp.eq.s32.totalorder %s30, 0
      %p176 = por %p174, %p175
      %p177 = scmp.ne.s32.totalorder %s169, %s171
      %p178 = scmp.eq.s32.totalorder %s35, 1
      %p179 = por %p177, %p178
      %p180 = scmp.ne.s32.totalorder %s171, %s172
      %p181 = scmp.eq.s32.totalorder %s35, 0
      %p182 = por %p180, %p181
      %p183 = scmp.ne.s32.totalorder %s171, %s172
      %p184 = scmp.eq.s32.totalorder %s36, 1
      %p185 = por %p183, %p184
      %p187 = scmp.ne.s32.totalorder %s172, %s186
      %p188 = scmp.eq.s32.totalorder %s36, 0
      %p189 = por %p187, %p188
      %s191 = sadd.s32 %s190, 1
      %p194 = scmp.eq.s32.totalorder %s30, 1
      %p195 = scmp.ne.s32.totalorder %s190, %s192
      %p196 = scmp.eq.s32.totalorder %s30, 0
      %p197 = por %p195, %p196
      %p198 = scmp.ne.s32.totalorder %s190, %s192
      %p199 = scmp.eq.s32.totalorder %s35, 1
      %p200 = por %p198, %p199
      %p201 = scmp.ne.s32.totalorder %s192, %s193
      %p202 = scmp.eq.s32.totalorder %s35, 0
      %p203 = por %p201, %p202
      %p204 = scmp.ne.s32.totalorder %s192, %s193
      %p205 = scmp.eq.s32.totalorder %s36, 1
      %p206 = por %p204, %p205
      %p208 = scmp.ne.s32.totalorder %s193, %s207
      %p209 = scmp.eq.s32.totalorder %s36, 0
      %p210 = por %p208, %p209
      %s212 = sadd.s32 %s211, 1
      %p215 = scmp.eq.s32.totalorder %s30, 1
      %p216 = scmp.ne.s32.totalorder %s211, %s213
      %p217 = scmp.eq.s32.totalorder %s30, 0
      %p218 = por %p216, %p217
      %p219 = scmp.ne.s32.totalorder %s211, %s213
      %p220 = scmp.eq.s32.totalorder %s35, 1
      %p221 = por %p219, %p220
      %p222 = scmp.ne.s32.totalorder %s213, %s214
      %p223 = scmp.eq.s32.totalorder %s35, 0
      %p224 = por %p222, %p223
      %p225 = scmp.ne.s32.totalorder %s213, %s214
      %p226 = scmp.eq.s32.totalorder %s36, 1
      %p227 = por %p225, %p226
      %p229 = scmp.ne.s32.totalorder %s214, %s228
      %p230 = scmp.eq.s32.totalorder %s36, 0
      %p231 = por %p229, %p230
      %s233 = sadd.s32 %s232, 1
      %p236 = scmp.eq.s32.totalorder %s30, 1
      %p237 = scmp.ne.s32.totalorder %s232, %s234
      %p238 = scmp.eq.s32.totalorder %s30, 0
      %p239 = por %p237, %p238
      %p240 = scmp.ne.s32.totalorder %s232, %s234
      %p241 = scmp.eq.s32.totalorder %s35, 1
      %p242 = por %p240, %p241
      %p243 = scmp.ne.s32.totalorder %s234, %s235
      %p244 = scmp.eq.s32.totalorder %s35, 0
      %p245 = por %p243, %p244
      %p246 = scmp.ne.s32.totalorder %s234, %s235
      %p247 = scmp.eq.s32.totalorder %s36, 1
      %p248 = por %p246, %p247
      %p250 = scmp.ne.s32.totalorder %s235, %s249
      %p251 = scmp.eq.s32.totalorder %s36, 0
      %p252 = por %p250, %p251
      %s254 = sadd.s32 %s253, 1
      %p257 = scmp.eq.s32.totalorder %s30, 1
      %p258 = scmp.ne.s32.totalorder %s253, %s255
      %p259 = scmp.eq.s32.totalorder %s30, 0
      %p260 = por %p258, %p259
      %p261 = scmp.ne.s32.totalorder %s253, %s255
      %p262 = scmp.eq.s32.totalorder %s35, 1
      %p263 = por %p261, %p262
      %p264 = scmp.ne.s32.totalorder %s255, %s256
      %p265 = scmp.eq.s32.totalorder %s35, 0
      %p266 = por %p264, %p265
      %p267 = scmp.ne.s32.totalorder %s255, %s256
      %p268 = scmp.eq.s32.totalorder %s36, 1
      %p269 = por %p267, %p268
      %p271 = scmp.ne.s32.totalorder %s256, %s270
      %p272 = scmp.eq.s32.totalorder %s36, 0
      %p273 = por %p271, %p272
      %s275 = sadd.s32 %s274, 1
      %p278 = scmp.eq.s32.totalorder %s30, 1
      %p279 = scmp.ne.s32.totalorder %s274, %s276
      %p280 = scmp.eq.s32.totalorder %s30, 0
      %p281 = por %p279, %p280
      %p282 = scmp.ne.s32.totalorder %s274, %s276
      %p283 = scmp.eq.s32.totalorder %s35, 1
      %p284 = por %p282, %p283
      %p285 = scmp.ne.s32.totalorder %s276, %s277
      %p286 = scmp.eq.s32.totalorder %s35, 0
      %p287 = por %p285, %p286
      %p288 = scmp.ne.s32.totalorder %s276, %s277
      %p289 = scmp.eq.s32.totalorder %s36, 1
      %p290 = por %p288, %p289
      %p292 = scmp.ne.s32.totalorder %s277, %s291
      %p293 = scmp.eq.s32.totalorder %s36, 0
      %p294 = por %p292, %p293
      %s296 = sadd.s32 %s295, 1
      %p299 = scmp.eq.s32.totalorder %s30, 1
      %p300 = scmp.ne.s32.totalorder %s295, %s297
      %p301 = scmp.eq.s32.totalorder %s30, 0
      %p302 = por %p300, %p301
      %p303 = scmp.ne.s32.totalorder %s295, %s297
      %p304 = scmp.eq.s32.totalorder %s35, 1
      %p305 = por %p303, %p304
      %p306 = scmp.ne.s32.totalorder %s297, %s298
      %p307 = scmp.eq.s32.totalorder %s35, 0
      %p308 = por %p306, %p307
      %p309 = scmp.ne.s32.totalorder %s297, %s298
      %p310 = scmp.eq.s32.totalorder %s36, 1
      %p311 = por %p309, %p310
      %p313 = scmp.ne.s32.totalorder %s298, %s312
      %p314 = scmp.eq.s32.totalorder %s36, 0
      %p315 = por %p313, %p314
      %s317 = sadd.s32 %s316, 1
      %p320 = scmp.eq.s32.totalorder %s30, 1
      %p321 = scmp.ne.s32.totalorder %s316, %s318
      %p322 = scmp.eq.s32.totalorder %s30, 0
      %p323 = por %p321, %p322
      %p324 = scmp.ne.s32.totalorder %s316, %s318
      %p325 = scmp.eq.s32.totalorder %s35, 1
      %p326 = por %p324, %p325
      %p327 = scmp.ne.s32.totalorder %s318, %s319
      %p328 = scmp.eq.s32.totalorder %s35, 0
      %p329 = por %p327, %p328
      %p330 = scmp.ne.s32.totalorder %s318, %s319
      %p331 = scmp.eq.s32.totalorder %s36, 1
      %p332 = por %p330, %p331
      %p334 = scmp.ne.s32.totalorder %s319, %s333
      %p335 = scmp.eq.s32.totalorder %s36, 0
      %p336 = por %p334, %p335
      %s338 = sadd.s32 %s337, 1
      %p341 = scmp.eq.s32.totalorder %s30, 1
      %p342 = scmp.ne.s32.totalorder %s337, %s339
      %p343 = scmp.eq.s32.totalorder %s30, 0
      %p344 = por %p342, %p343
      %p345 = scmp.ne.s32.totalorder %s337, %s339
      %p346 = scmp.eq.s32.totalorder %s35, 1
      %p347 = por %p345, %p346
      %p348 = scmp.ne.s32.totalorder %s339, %s340
      %p349 = scmp.eq.s32.totalorder %s35, 0
      %p350 = por %p348, %p349
      %p351 = scmp.ne.s32.totalorder %s339, %s340
      %p352 = scmp.eq.s32.totalorder %s36, 1
      %p353 = por %p351, %p352
      %p355 = scmp.ne.s32.totalorder %s340, %s354
      %p356 = scmp.eq.s32.totalorder %s36, 0
      %p357 = por %p355, %p356
      %s359 = sadd.s32 %s358, 1
      %p362 = scmp.eq.s32.totalorder %s30, 1
      %p363 = scmp.ne.s32.totalorder %s358, %s360
      %p364 = scmp.eq.s32.totalorder %s30, 0
      %p365 = por %p363, %p364
      %p366 = scmp.ne.s32.totalorder %s358, %s360
      %p367 = scmp.eq.s32.totalorder %s35, 1
      %p368 = por %p366, %p367
      %p369 = scmp.ne.s32.totalorder %s360, %s361
      %p370 = scmp.eq.s32.totalorder %s35, 0
      %p371 = por %p369, %p370
      %p372 = scmp.ne.s32.totalorder %s360, %s361
      %p373 = scmp.eq.s32.totalorder %s36, 1
      %p374 = por %p372, %p373
      %p376 = scmp.ne.s32.totalorder %s361, %s375
      %p377 = scmp.eq.s32.totalorder %s36, 0
      %p378 = por %p376, %p377
      %s380 = sadd.s32 %s379, 1
      %p383 = scmp.eq.s32.totalorder %s30, 1
      %p384 = scmp.ne.s32.totalorder %s379, %s381
      %p385 = scmp.eq.s32.totalorder %s30, 0
      %p386 = por %p384, %p385
      %p387 = scmp.ne.s32.totalorder %s379, %s381
      %p388 = scmp.eq.s32.totalorder %s35, 1
      %p389 = por %p387, %p388
      %p390 = scmp.ne.s32.totalorder %s381, %s382
      %p391 = scmp.eq.s32.totalorder %s35, 0
      %p392 = por %p390, %p391
      %p393 = scmp.ne.s32.totalorder %s381, %s382
      %p394 = scmp.eq.s32.totalorder %s36, 1
      %p395 = por %p393, %p394
      %p397 = scmp.ne.s32.totalorder %s382, %s396
      %p398 = scmp.eq.s32.totalorder %s36, 0
      %p399 = por %p397, %p398
      %s401 = sadd.s32 %s400, 1
      %p404 = scmp.eq.s32.totalorder %s30, 1
      %p405 = scmp.ne.s32.totalorder %s400, %s402
      %p406 = scmp.eq.s32.totalorder %s30, 0
      %p407 = por %p405, %p406
      %p408 = scmp.ne.s32.totalorder %s400, %s402
      %p409 = scmp.eq.s32.totalorder %s35, 1
      %p410 = por %p408, %p409
      %p411 = scmp.ne.s32.totalorder %s402, %s403
      %p412 = scmp.eq.s32.totalorder %s35, 0
      %p413 = por %p411, %p412
      %p414 = scmp.ne.s32.totalorder %s402, %s403
      %p415 = scmp.eq.s32.totalorder %s36, 1
      %p416 = por %p414, %p415
      %p418 = scmp.ne.s32.totalorder %s403, %s417
      %p419 = scmp.eq.s32.totalorder %s36, 0
      %p420 = por %p418, %p419
      %s422 = sadd.s32 %s421, 1
      %p425 = scmp.eq.s32.totalorder %s30, 1
      %p426 = scmp.ne.s32.totalorder %s421, %s423
      %p427 = scmp.eq.s32.totalorder %s30, 0
      %p428 = por %p426, %p427
      %p429 = scmp.ne.s32.totalorder %s421, %s423
      %p430 = scmp.eq.s32.totalorder %s35, 1
      %p431 = por %p429, %p430
      %p432 = scmp.ne.s32.totalorder %s423, %s424
      %p433 = scmp.eq.s32.totalorder %s35, 0
      %p434 = por %p432, %p433
      %p435 = scmp.ne.s32.totalorder %s423, %s424
      %p436 = scmp.eq.s32.totalorder %s36, 1
      %p437 = por %p435, %p436
      %p439 = scmp.ne.s32.totalorder %s424, %s438
      %p440 = scmp.eq.s32.totalorder %s36, 0
      %p441 = por %p439, %p440
      %s443 = sadd.s32 %s442, 1
      %p446 = scmp.eq.s32.totalorder %s30, 1
      %p447 = scmp.ne.s32.totalorder %s442, %s444
      %p448 = scmp.eq.s32.totalorder %s30, 0
      %p449 = por %p447, %p448
      %p450 = scmp.ne.s32.totalorder %s442, %s444
      %p451 = scmp.eq.s32.totalorder %s35, 1
      %p452 = por %p450, %p451
      %p453 = scmp.ne.s32.totalorder %s444, %s445
      %p454 = scmp.eq.s32.totalorder %s35, 0
      %p455 = por %p453, %p454
      %p456 = scmp.ne.s32.totalorder %s444, %s445
      %p457 = scmp.eq.s32.totalorder %s36, 1
      %p458 = por %p456, %p457
      %p460 = scmp.ne.s32.totalorder %s445, %s459
      %p461 = scmp.eq.s32.totalorder %s36, 0
      %p462 = por %p460, %p461
      %s463 = ssub.s32 %s30, %s37
      %p464 = scmp.eq.s32.totalorder %s463, 0
      %s466 = sadd.s32 %s465, 1
      %s467 = scalar_select %p464, %s465, %s466
      %p470 = pneg %p464
      %p471 = scmp.eq.s32.totalorder %s30, 1
      %p472 = por %p470, %p471
      %p473 = scmp.ne.s32.totalorder %s465, %s468
      %p474 = scmp.eq.s32.totalorder %s30, 0
      %p475 = por %p473, %p474
      %p476 = scmp.ne.s32.totalorder %s465, %s468
      %p477 = scmp.eq.s32.totalorder %s35, 1
      %p478 = por %p476, %p477
      %p479 = scmp.ne.s32.totalorder %s468, %s469
      %p480 = scmp.eq.s32.totalorder %s35, 0
      %p481 = por %p479, %p480
      %p482 = scmp.ne.s32.totalorder %s468, %s469
      %p483 = scmp.eq.s32.totalorder %s36, 1
      %p484 = por %p482, %p483
      %p486 = scmp.ne.s32.totalorder %s469, %s485
      %p487 = scmp.eq.s32.totalorder %s36, 0
      %p488 = por %p486, %p487
      %p489 = scmp.le.s32.totalorder 1, %s30
      %p490 = scmp.lt.s32.totalorder %s30, 3
      %p491 = pnand %p489, %p490
      %p492 = pneg %p491
      // Predicated region
      $region9: #{tpu_custom_call.1} parent=5 // pred_check
        _
      $region10: #{tpu_custom_call.1} parent=5 // pred_check_branch
        %494 = sbr.rel (%p491) target = $region12
      $region11: #{tpu_custom_call.1} parent=5 // pred_region
        %s495 = ssub.s32 %s30, 1
        // Predicated region
        $region13: #{tpu_custom_call.1} parent=11 // pred_check
          %p496 = pneg %p77
        $region14: #{tpu_custom_call.1} parent=11 // pred_check_branch
          %498 = sbr.rel (%p496) target = $region16
        $region15: #{tpu_custom_call.1} parent=11 // pred_region
          _
        $region16: #{tpu_custom_call.1} parent=11 // pred_fallthru
          _
        // Predicated region
        $region17: #{tpu_custom_call.1} parent=11 // pred_check
          %p499 = pneg %p98
        $region18: #{tpu_custom_call.1} parent=11 // pred_check_branch
          %501 = sbr.rel (%p499) target = $region20
        $region19: #{tpu_custom_call.1} parent=11 // pred_region
          _
        $region20: #{tpu_custom_call.1} parent=11 // pred_fallthru
          _
        // Predicated region
        $region21: #{tpu_custom_call.1} parent=11 // pred_check
          %p502 = pneg %p119
        $region22: #{tpu_custom_call.1} parent=11 // pred_check_branch
          %504 = sbr.rel (%p502) target = $region24
        $region23: #{tpu_custom_call.1} parent=11 // pred_region
          %s506 = ssub.s32 2560, 2560
          %507 = vsyncadd [#allocation3], %s506
          %s508 = sshll.u32 [#allocation2], 4
          %s509 = int_to_ptr.vmem [resolvable:$true] %s508
          %514 = dma.hbm_to_vmem [thread:$0]  %s3, 2560, %s509, [#allocation3], 64, 64, 4
        $region24: #{tpu_custom_call.1} parent=11 // pred_fallthru
          _
        // Predicated region
        $region25: #{tpu_custom_call.1} parent=11 // pred_check
          %p515 = pneg %p140
        $region26: #{tpu_custom_call.1} parent=11 // pred_check_branch
          %517 = sbr.rel (%p515) target = $region28
        $region27: #{tpu_custom_call.1} parent=11 // pred_region
          _
        $region28: #{tpu_custom_call.1} parent=11 // pred_fallthru
          _
        // Predicated region
        $region29: #{tpu_custom_call.1} parent=11 // pred_check
          %p518 = pneg %p161
        $region30: #{tpu_custom_call.1} parent=11 // pred_check_branch
          %520 = sbr.rel (%p518) target = $region32
        $region31: #{tpu_custom_call.1} parent=11 // pred_region
          _
        $region32: #{tpu_custom_call.1} parent=11 // pred_fallthru
          _
        // Predicated region
        $region33: #{tpu_custom_call.1} parent=11 // pred_check
          %p521 = pneg %p182
        $region34: #{tpu_custom_call.1} parent=11 // pred_check_branch
          %523 = sbr.rel (%p521) target = $region36
        $region35: #{tpu_custom_call.1} parent=11 // pred_region
          _
        $region36: #{tpu_custom_call.1} parent=11 // pred_fallthru
          _
        // Predicated region
        $region37: #{tpu_custom_call.1} parent=11 // pred_check
          %p524 = pneg %p203
        $region38: #{tpu_custom_call.1} parent=11 // pred_check_branch
          %526 = sbr.rel (%p524) target = $region40
        $region39: #{tpu_custom_call.1} parent=11 // pred_region
          _
        $region40: #{tpu_custom_call.1} parent=11 // pred_fallthru
          _
        // Predicated region
        $region41: #{tpu_custom_call.1} parent=11 // pred_check
          %p527 = pneg %p224
        $region42: #{tpu_custom_call.1} parent=11 // pred_check_branch
          %529 = sbr.rel (%p527) target = $region44
        $region43: #{tpu_custom_call.1} parent=11 // pred_region
          _
        $region44: #{tpu_custom_call.1} parent=11 // pred_fallthru
          _
        // Predicated region
        $region45: #{tpu_custom_call.1} parent=11 // pred_check
          %p530 = pneg %p245
        $region46: #{tpu_custom_call.1} parent=11 // pred_check_branch
          %532 = sbr.rel (%p530) target = $region48
        $region47: #{tpu_custom_call.1} parent=11 // pred_region
          _
        $region48: #{tpu_custom_call.1} parent=11 // pred_fallthru
          _
        // Predicated region
        $region49: #{tpu_custom_call.1} parent=11 // pred_check
          %p533 = pneg %p266
        $region50: #{tpu_custom_call.1} parent=11 // pred_check_branch
          %535 = sbr.rel (%p533) target = $region52
        $region51: #{tpu_custom_call.1} parent=11 // pred_region
          _
        $region52: #{tpu_custom_call.1} parent=11 // pred_fallthru
          _
        // Predicated region
        $region53: #{tpu_custom_call.1} parent=11 // pred_check
          %p536 = pneg %p287
        $region54: #{tpu_custom_call.1} parent=11 // pred_check_branch
          %538 = sbr.rel (%p536) target = $region56
        $region55: #{tpu_custom_call.1} parent=11 // pred_region
          _
        $region56: #{tpu_custom_call.1} parent=11 // pred_fallthru
          _
        // Predicated region
        $region57: #{tpu_custom_call.1} parent=11 // pred_check
          %p539 = pneg %p308
        $region58: #{tpu_custom_call.1} parent=11 // pred_check_branch
          %541 = sbr.rel (%p539) target = $region60
        $region59: #{tpu_custom_call.1} parent=11 // pred_region
          _
        $region60: #{tpu_custom_call.1} parent=11 // pred_fallthru
          _
        // Predicated region
        $region61: #{tpu_custom_call.1} parent=11 // pred_check
          %p542 = pneg %p329
        $region62: #{tpu_custom_call.1} parent=11 // pred_check_branch
          %544 = sbr.rel (%p542) target = $region64
        $region63: #{tpu_custom_call.1} parent=11 // pred_region
          _
        $region64: #{tpu_custom_call.1} parent=11 // pred_fallthru
          _
        // Predicated region
        $region65: #{tpu_custom_call.1} parent=11 // pred_check
          %p545 = pneg %p350
        $region66: #{tpu_custom_call.1} parent=11 // pred_check_branch
          %547 = sbr.rel (%p545) target = $region68
        $region67: #{tpu_custom_call.1} parent=11 // pred_region
          _
        $region68: #{tpu_custom_call.1} parent=11 // pred_fallthru
          _
        // Predicated region
        $region69: #{tpu_custom_call.1} parent=11 // pred_check
          %p548 = pneg %p371
        $region70: #{tpu_custom_call.1} parent=11 // pred_check_branch
          %550 = sbr.rel (%p548) target = $region72
        $region71: #{tpu_custom_call.1} parent=11 // pred_region
          _
        $region72: #{tpu_custom_call.1} parent=11 // pred_fallthru
          _
        // Predicated region
        $region73: #{tpu_custom_call.1} parent=11 // pred_check
          %p551 = pneg %p392
        $region74: #{tpu_custom_call.1} parent=11 // pred_check_branch
          %553 = sbr.rel (%p551) target = $region76
        $region75: #{tpu_custom_call.1} parent=11 // pred_region
          _
        $region76: #{tpu_custom_call.1} parent=11 // pred_fallthru
          _
        // Predicated region
        $region77: #{tpu_custom_call.1} parent=11 // pred_check
          %p554 = pneg %p413
        $region78: #{tpu_custom_call.1} parent=11 // pred_check_branch
          %556 = sbr.rel (%p554) target = $region80
        $region79: #{tpu_custom_call.1} parent=11 // pred_region
          _
        $region80: #{tpu_custom_call.1} parent=11 // pred_fallthru
          _
        // Predicated region
        $region81: #{tpu_custom_call.1} parent=11 // pred_check
          %p557 = pneg %p434
        $region82: #{tpu_custom_call.1} parent=11 // pred_check_branch
          %559 = sbr.rel (%p557) target = $region84
        $region83: #{tpu_custom_call.1} parent=11 // pred_region
          _
        $region84: #{tpu_custom_call.1} parent=11 // pred_fallthru
          _
        // Predicated region
        $region85: #{tpu_custom_call.1} parent=11 // pred_check
          %p560 = pneg %p455
        $region86: #{tpu_custom_call.1} parent=11 // pred_check_branch
          %562 = sbr.rel (%p560) target = $region88
        $region87: #{tpu_custom_call.1} parent=11 // pred_region
          _
        $region88: #{tpu_custom_call.1} parent=11 // pred_fallthru
          _
      $region12: #{tpu_custom_call.1} parent=5 // pred_fallthru
        _
      %p563 = scmp.lt.s32.totalorder %s30, 2
      // Predicated region
      $region89: #{tpu_custom_call.1} parent=5 // pred_check
        %p564 = pneg %p563
      $region90: #{tpu_custom_call.1} parent=5 // pred_check_branch
        %566 = sbr.rel (%p564) target = $region92
      $region91: #{tpu_custom_call.1} parent=5 // pred_region
        // Predicated region
        $region93: #{tpu_custom_call.1} parent=91 // pred_check
          %p567 = pneg %p50
        $region94: #{tpu_custom_call.1} parent=91 // pred_check_branch
          %569 = sbr.rel (%p567) target = $region96
        $region95: #{tpu_custom_call.1} parent=91 // pred_region
          %p570 = scmp.lt.s32.totalorder %s30, 1
          %s571 = scalar_select %p570, %s30, 1
          %s572 = smul.addr %s571, 2
          %s573 = smul.addr %s572, 8
          %s574 = scalar_lea.vmem %s0, %s573
        $region96: #{tpu_custom_call.1} parent=91 // pred_fallthru
          _
      $region92: #{tpu_custom_call.1} parent=5 // pred_fallthru
        _
      %p575 = scmp.le.s32.totalorder 1, %s30
      %p576 = scmp.lt.s32.totalorder %s30, 3
      %p577 = pnand %p575, %p576
      %p578 = pneg %p577
      // Predicated region
      $region97: #{tpu_custom_call.1} parent=5 // pred_check
        _
      $region98: #{tpu_custom_call.1} parent=5 // pred_check_branch
        %580 = sbr.rel (%p577) target = $region100
      $region99: #{tpu_custom_call.1} parent=5 // pred_region
        %s581 = ssub.s32 %s30, 1
        // Predicated region
        $region101: #{tpu_custom_call.1} parent=99 // pred_check
          %p582 = pneg %p119
        $region102: #{tpu_custom_call.1} parent=99 // pred_check_branch
          %584 = sbr.rel (%p582) target = $region104
        $region103: #{tpu_custom_call.1} parent=99 // pred_region
          %585 = dma.done [#allocation3], 2560
        $region104: #{tpu_custom_call.1} parent=99 // pred_fallthru
          _
        %p586 = scmp.lt.s32.totalorder %s35, 1
        %s587 = scalar_select %p586, %s35, 1
        %s588 = smul.addr %s587, 2
        %s589 = smul.addr %s588, 8
        %s590 = scalar_lea.vmem %s0, %s589
        %p591 = pneg %p56
        %p592 = pneg %p53
        %p593 = pneg %p77
        %p594 = pneg %p74
        %p595 = pneg %p98
        %p596 = pneg %p95
        %p597 = pneg %p119
        %p598 = pneg %p116
        %p599 = pneg %p140
        %p600 = pneg %p137
        %p601 = pneg %p161
        %p602 = pneg %p158
        %p603 = pneg %p182
        %p604 = pneg %p179
        %p605 = pneg %p203
        %p606 = pneg %p200
        %p607 = pneg %p224
        %p608 = pneg %p221
        %p609 = pneg %p245
        %p610 = pneg %p242
        %p611 = pneg %p266
        %p612 = pneg %p263
        %p613 = pneg %p287
        %p614 = pneg %p284
        %p615 = pneg %p308
        %p616 = pneg %p305
        %p617 = pneg %p329
        %p618 = pneg %p326
        %p619 = pneg %p350
        %p620 = pneg %p347
        %p621 = pneg %p371
        %p622 = pneg %p368
        %p623 = pneg %p392
        %p624 = pneg %p389
        %p625 = pneg %p413
        %p626 = pneg %p410
        %p627 = pneg %p434
        %p628 = pneg %p431
        %p629 = pneg %p455
        %p630 = pneg %p452
        %p631 = pneg %p481
        %p632 = pneg %p478
        %s633 = sand.u32 %s468, 1
        %s634 = scalar_lea.sflag [#allocation4], %s633
        %s635 = sand.u32 %s468, 1
        %s636 = smul.addr %s635, 4
        %s637 = scalar_lea.vmem [#allocation5], %s636
        %p638 = scmp.lt.s32.totalorder %s35, 1
        %s639 = scalar_select %p638, %s35, 1
        %s640 = smul.addr %s639, 2
        %s641 = smul.addr %s640, 8
        %s642 = scalar_lea.vmem %s0, %s641
        %v644 = vld [vmem:[%s642] sm:$0xff]
        %v645 = vld [vmem:[%s642 + $0x8] sm:$0xff]
        %v646 = vld [vmem:[%s1] sm:$0xf]
        %v647 = vld [vmem:[%s2] sm:$0x1]
        %v648 = vpack.c.bf16 %v645, %v644
        %v650 = vlaneseq
        %v651 = vshrl.u32 %v650, 7
        %v652 = vsub.s32 0, %v651
        %v653 = vrot.slane %v647, %v652
        %vm655 = vcmask 64512
        %v657 = vsel %vm655, %v648, 0
        %vm659 = vcmask 1043456
        %v661 = vsel %vm659, %v646, 0
        %663 = vmatprep.subr.bf16.mxu0 0
        %664 = vmatpush1.bf16.msra.mxu0 %v661
        %665 = vmatprep.subr.bf16.mxu0 0
        %666 = vmatpush1.bf16.msra.mxu0 0
        %667 = vmatprep.subr.bf16.mxu0 0
        %668 = vmatpush1.bf16.msra.mxu0 0
        %669 = vmatprep.subr.bf16.mxu0 0
        %670 = vmatpush1.bf16.msra.mxu0 0
        %671 = vmatprep.subr.bf16.mxu0 0
        %672 = vmatpush1.bf16.msra.mxu0 0
        %673 = vmatprep.subr.bf16.mxu0 0
        %674 = vmatpush1.bf16.msra.mxu0 0
        %675 = vmatprep.subr.bf16.mxu0 0
        %676 = vmatpush1.bf16.msra.mxu0 0
        %677 = vmatprep.subr.bf16.mxu0 0
        %678 = vmatpush1.bf16.msra.mxu0 0
        %679 = vmatprep.subr.bf16.mxu0 0
        %680 = vmatpush1.bf16.msra.mxu0 0
        %681 = vmatprep.subr.bf16.mxu0 0
        %682 = vmatpush1.bf16.msra.mxu0 0
        %683 = vmatprep.subr.bf16.mxu0 0
        %684 = vmatpush1.bf16.msra.mxu0 0
        %685 = vmatprep.subr.bf16.mxu0 0
        %686 = vmatpush1.bf16.msra.mxu0 0
        %687 = vmatprep.subr.bf16.mxu0 0
        %688 = vmatpush1.bf16.msra.mxu0 0
        %689 = vmatprep.subr.bf16.mxu0 0
        %690 = vmatpush1.bf16.msra.mxu0 0
        %691 = vmatprep.subr.bf16.mxu0 0
        %692 = vmatpush1.bf16.msra.mxu0 0
        %693 = vmatprep.subr.bf16.mxu0 0
        %694 = vmatpush1.bf16.msra.mxu0 0
        %695 = vmatprep.mubr.bf16.mxu0 0
        %696 = vmatmul.mubr.bf16.gmra.mrb[0].mxu0 %v657
        %v697 = vpop.f32.mrb[0].mxu0
        %v698 = vadd.f32 %v653, %v697
        %v699 = vpop.f32.mrb[0].mxu0
        %v700 = vpop.f32.mrb[0].mxu0
        %v701 = vadd.f32 %v653, %v700
        %v702 = vpop.f32.mrb[0].mxu0
        %703 = vdwg.mxu0
        %v704 = vpack.c.bf16 %v701, %v698
        %v705 = vld [vmem:[#allocation2] sm:$0xf]
        %v706 = vld [vmem:[#allocation2 + $0x4] sm:$0xf]
        %v707 = vld [vmem:[#allocation2 + $0x8] sm:$0xf]
        %v708 = vld [vmem:[#allocation2 + $0xc] sm:$0xf]
        %v709 = vld [vmem:[#allocation2 + $0x10] sm:$0xf]
        %v710 = vld [vmem:[#allocation2 + $0x14] sm:$0xf]
        %v711 = vld [vmem:[#allocation2 + $0x18] sm:$0xf]
        %v712 = vld [vmem:[#allocation2 + $0x1c] sm:$0xf]
        %v713 = vld [vmem:[#allocation2 + $0x20] sm:$0xf]
        %v714 = vld [vmem:[#allocation2 + $0x24] sm:$0xf]
        %v715 = vld [vmem:[#allocation2 + $0x28] sm:$0xf]
        %v716 = vld [vmem:[#allocation2 + $0x2c] sm:$0xf]
        %v717 = vld [vmem:[#allocation2 + $0x30] sm:$0xf]
        %v718 = vld [vmem:[#allocation2 + $0x34] sm:$0xf]
        %v719 = vld [vmem:[#allocation2 + $0x38] sm:$0xf]
        %v720 = vld [vmem:[#allocation2 + $0x3c] sm:$0xf]
        %v721 = vld [vmem:[#allocation2 + $0x40] sm:$0xf]
        %v722 = vld [vmem:[#allocation2 + $0x44] sm:$0xf]
        %v723 = vld [vmem:[#allocation2 + $0x48] sm:$0xf]
        %v724 = vld [vmem:[#allocation2 + $0x4c] sm:$0xf]
        %v725 = vlaneseq
        %v726 = vshrl.u32 %v725, 7
        %v727 = vlaneseq
        %v728 = vand.u32 %v727, 127
        %v729 = vmul.u32 %v726, 2
        %v730 = vadd.s32 %v729, 4294967294
        %vm731 = vcmp.eq.s32.totalorder %v728, %v730
        %v732 = vsel %vm731, 1, 0
        %v733 = vcvt.s32.f32 %v732
        %v734 = vpack.c.bf16 %v733, %v733
        %vm735 = vcmask 130048
        %v737 = vsel %vm735, %v734, 0
        %739 = vmatprep.subr.bf16.mxu0 0
        %740 = vmatpush1.bf16.msra.mxu0 %v704
        %741 = vmatprep.subr.bf16.mxu0 0
        %742 = vmatpush1.bf16.msra.mxu0 0
        %743 = vmatprep.subr.bf16.mxu0 0
        %744 = vmatpush1.bf16.msra.mxu0 0
        %745 = vmatprep.subr.bf16.mxu0 0
        %746 = vmatpush1.bf16.msra.mxu0 0
        %747 = vmatprep.subr.bf16.mxu0 0
        %748 = vmatpush1.bf16.msra.mxu0 0
        %749 = vmatprep.subr.bf16.mxu0 0
        %750 = vmatpush1.bf16.msra.mxu0 0
        %751 = vmatprep.subr.bf16.mxu0 0
        %752 = vmatpush1.bf16.msra.mxu0 0
        %753 = vmatprep.subr.bf16.mxu0 0
        %754 = vmatpush1.bf16.msra.mxu0 0
        %755 = vmatprep.subr.bf16.mxu0 0
        %756 = vmatpush1.bf16.msra.mxu0 0
        %757 = vmatprep.subr.bf16.mxu0 0
        %758 = vmatpush1.bf16.msra.mxu0 0
        %759 = vmatprep.subr.bf16.mxu0 0
        %760 = vmatpush1.bf16.msra.mxu0 0
        %761 = vmatprep.subr.bf16.mxu0 0
        %762 = vmatpush1.bf16.msra.mxu0 0
        %763 = vmatprep.subr.bf16.mxu0 0
        %764 = vmatpush1.bf16.msra.mxu0 0
        %765 = vmatprep.subr.bf16.mxu0 0
        %766 = vmatpush1.bf16.msra.mxu0 0
        %767 = vmatprep.subr.bf16.mxu0 0
        %768 = vmatpush1.bf16.msra.mxu0 0
        %769 = vmatprep.subr.bf16.mxu0 0
        %770 = vmatpush1.bf16.msra.mxu0 0
        %771 = vmatprep.mubr.bf16.mxu0 0
        %772 = vmatmul.mubr.bf16.gmra.mrb[0].mxu0 %v737
        %v773 = vpop.f32.mrb[0].mxu0
        %v774 = vadd.f32 0.0, %v773
        %v775 = vpop.f32.mrb[0].mxu0
        %v776 = vpop.f32.mrb[0].mxu0
        %v777 = vpop.f32.mrb[0].mxu0
        %778 = vdwg.mxu0
        %v779 = vpack.c.bf16 %v774, %v774
        %v780 = vadd.s32 %v729, 4294967295
        %vm781 = vcmp.eq.s32.totalorder %v728, %v780
        %v782 = vsel %vm781, 1, 0
        %v783 = vcvt.s32.f32 %v782
        %v784 = vpack.c.bf16 %v783, %v783
        %v786 = vsel %vm735, %v784, 0
        %788 = vmatprep.subr.bf16.mxu0 0
        %789 = vmatpush1.bf16.msra.mxu0 %v704
        %790 = vmatprep.subr.bf16.mxu0 0
        %791 = vmatpush1.bf16.msra.mxu0 0
        %792 = vmatprep.subr.bf16.mxu0 0
        %793 = vmatpush1.bf16.msra.mxu0 0
        %794 = vmatprep.subr.bf16.mxu0 0
        %795 = vmatpush1.bf16.msra.mxu0 0
        %796 = vmatprep.subr.bf16.mxu0 0
        %797 = vmatpush1.bf16.msra.mxu0 0
        %798 = vmatprep.subr.bf16.mxu0 0
        %799 = vmatpush1.bf16.msra.mxu0 0
        %800 = vmatprep.subr.bf16.mxu0 0
        %801 = vmatpush1.bf16.msra.mxu0 0
        %802 = vmatprep.subr.bf16.mxu0 0
        %803 = vmatpush1.bf16.msra.mxu0 0
        %804 = vmatprep.subr.bf16.mxu0 0
        %805 = vmatpush1.bf16.msra.mxu0 0
        %806 = vmatprep.subr.bf16.mxu0 0
        %807 = vmatpush1.bf16.msra.mxu0 0
        %808 = vmatprep.subr.bf16.mxu0 0
        %809 = vmatpush1.bf16.msra.mxu0 0
        %810 = vmatprep.subr.bf16.mxu0 0
        %811 = vmatpush1.bf16.msra.mxu0 0
        %812 = vmatprep.subr.bf16.mxu0 0
        %813 = vmatpush1.bf16.msra.mxu0 0
        %814 = vmatprep.subr.bf16.mxu0 0
        %815 = vmatpush1.bf16.msra.mxu0 0
        %816 = vmatprep.subr.bf16.mxu0 0
        %817 = vmatpush1.bf16.msra.mxu0 0
        %818 = vmatprep.subr.bf16.mxu0 0
        %819 = vmatpush1.bf16.msra.mxu0 0
        %820 = vmatprep.mubr.bf16.mxu0 0
        %821 = vmatmul.mubr.bf16.gmra.mrb[0].mxu0 %v786
        %v822 = vpop.f32.mrb[0].mxu0
        %v823 = vadd.f32 0.0, %v822
        %v824 = vpop.f32.mrb[0].mxu0
        %v825 = vpop.f32.mrb[0].mxu0
        %v826 = vpop.f32.mrb[0].mxu0
        %827 = vdwg.mxu0
        %v828 = vpack.c.bf16 %v823, %v823
        %v833 = vunpack.c.l.b16 %v709
        %v834 = vunpack.c.l.b16 %v710
        %v835 = vunpack.c.l.b16 %v711
        %v836 = vunpack.c.l.b16 %v712
        %v837 = vpack.c.b16 %v834, %v833
        %v838 = vpack.c.b16 %v836, %v835
        %vm841 = vcmask 261120
        %v843 = vsel %vm841, %v828, 0
        %845 = vmatprep.subr.bf16.mxu0 0
        %846 = vmatpush1.bf16.msra.mxu0 %v837
        %847 = vmatprep.subr.bf16.mxu0 0
        %848 = vmatpush1.bf16.msra.mxu0 %v838
        %849 = vmatprep.subr.bf16.mxu0 0
        %850 = vmatpush1.bf16.msra.mxu0 0
        %851 = vmatprep.subr.bf16.mxu0 0
        %852 = vmatpush1.bf16.msra.mxu0 0
        %853 = vmatprep.subr.bf16.mxu0 0
        %854 = vmatpush1.bf16.msra.mxu0 0
        %855 = vmatprep.subr.bf16.mxu0 0
        %856 = vmatpush1.bf16.msra.mxu0 0
        %857 = vmatprep.subr.bf16.mxu0 0
        %858 = vmatpush1.bf16.msra.mxu0 0
        %859 = vmatprep.subr.bf16.mxu0 0
        %860 = vmatpush1.bf16.msra.mxu0 0
        %861 = vmatprep.subr.bf16.mxu0 0
        %862 = vmatpush1.bf16.msra.mxu0 0
        %863 = vmatprep.subr.bf16.mxu0 0
        %864 = vmatpush1.bf16.msra.mxu0 0
        %865 = vmatprep.subr.bf16.mxu0 0
        %866 = vmatpush1.bf16.msra.mxu0 0
        %867 = vmatprep.subr.bf16.mxu0 0
        %868 = vmatpush1.bf16.msra.mxu0 0
        %869 = vmatprep.subr.bf16.mxu0 0
        %870 = vmatpush1.bf16.msra.mxu0 0
        %871 = vmatprep.subr.bf16.mxu0 0
        %872 = vmatpush1.bf16.msra.mxu0 0
        %873 = vmatprep.subr.bf16.mxu0 0
        %874 = vmatpush1.bf16.msra.mxu0 0
        %875 = vmatprep.subr.bf16.mxu0 0
        %876 = vmatpush1.bf16.msra.mxu0 0
        %877 = vmatprep.mubr.bf16.mxu0 0
        %878 = vmatmul.mubr.bf16.gmra.mrb[0].mxu0 %v843
        %v879 = vpop.f32.mrb[0].mxu0
        %v880 = vadd.f32 0.0, %v879
        %v881 = vpop.f32.mrb[0].mxu0
        %v882 = vpop.f32.mrb[0].mxu0
        %v883 = vpop.f32.mrb[0].mxu0
        %884 = vdwg.mxu0
        %v889 = vunpack.c.l.b16 %v705
        %v890 = vunpack.c.l.b16 %v706
        %v891 = vunpack.c.l.b16 %v707
        %v892 = vunpack.c.l.b16 %v708
        %v893 = vpack.c.b16 %v890, %v889
        %v894 = vpack.c.b16 %v892, %v891
        %v898 = vsel %vm841, %v779, 0
        %900 = vmatprep.subr.bf16.mxu0 0
        %901 = vmatpush1.bf16.msra.mxu0 %v893
        %902 = vmatprep.subr.bf16.mxu0 0
        %903 = vmatpush1.bf16.msra.mxu0 %v894
        %904 = vmatprep.subr.bf16.mxu0 0
        %905 = vmatpush1.bf16.msra.mxu0 0
        %906 = vmatprep.subr.bf16.mxu0 0
        %907 = vmatpush1.bf16.msra.mxu0 0
        %908 = vmatprep.subr.bf16.mxu0 0
        %909 = vmatpush1.bf16.msra.mxu0 0
        %910 = vmatprep.subr.bf16.mxu0 0
        %911 = vmatpush1.bf16.msra.mxu0 0
        %912 = vmatprep.subr.bf16.mxu0 0
        %913 = vmatpush1.bf16.msra.mxu0 0
        %914 = vmatprep.subr.bf16.mxu0 0
        %915 = vmatpush1.bf16.msra.mxu0 0
        %916 = vmatprep.subr.bf16.mxu0 0
        %917 = vmatpush1.bf16.msra.mxu0 0
        %918 = vmatprep.subr.bf16.mxu0 0
        %919 = vmatpush1.bf16.msra.mxu0 0
        %920 = vmatprep.subr.bf16.mxu0 0
        %921 = vmatpush1.bf16.msra.mxu0 0
        %922 = vmatprep.subr.bf16.mxu0 0
        %923 = vmatpush1.bf16.msra.mxu0 0
        %924 = vmatprep.subr.bf16.mxu0 0
        %925 = vmatpush1.bf16.msra.mxu0 0
        %926 = vmatprep.subr.bf16.mxu0 0
        %927 = vmatpush1.bf16.msra.mxu0 0
        %928 = vmatprep.subr.bf16.mxu0 0
        %929 = vmatpush1.bf16.msra.mxu0 0
        %930 = vmatprep.subr.bf16.mxu0 0
        %931 = vmatpush1.bf16.msra.mxu0 0
        %932 = vmatprep.mubr.bf16.mxu0 0
        %933 = vmatmul.mubr.bf16.gmra.mrb[0].mxu0 %v898
        %v934 = vpop.f32.mrb[0].mxu0
        %v935 = vadd.f32 %v880, %v934
        %v936 = vpop.f32.mrb[0].mxu0
        %v937 = vpop.f32.mrb[0].mxu0
        %v938 = vpop.f32.mrb[0].mxu0
        %939 = vdwg.mxu0
        %vm940 = vcmp.eq.s32.totalorder %v728, %v729
        %v941 = vsel %vm940, 1, 0
        %v942 = vcvt.s32.f32 %v941
        %v943 = vpack.c.bf16 %v942, %v942
        %v945 = vsel %vm735, %v943, 0
        %947 = vmatprep.subr.bf16.mxu0 0
        %948 = vmatpush1.bf16.msra.mxu0 %v704
        %949 = vmatprep.subr.bf16.mxu0 0
        %950 = vmatpush1.bf16.msra.mxu0 0
        %951 = vmatprep.subr.bf16.mxu0 0
        %952 = vmatpush1.bf16.msra.mxu0 0
        %953 = vmatprep.subr.bf16.mxu0 0
        %954 = vmatpush1.bf16.msra.mxu0 0
        %955 = vmatprep.subr.bf16.mxu0 0
        %956 = vmatpush1.bf16.msra.mxu0 0
        %957 = vmatprep.subr.bf16.mxu0 0
        %958 = vmatpush1.bf16.msra.mxu0 0
        %959 = vmatprep.subr.bf16.mxu0 0
        %960 = vmatpush1.bf16.msra.mxu0 0
        %961 = vmatprep.subr.bf16.mxu0 0
        %962 = vmatpush1.bf16.msra.mxu0 0
        %963 = vmatprep.subr.bf16.mxu0 0
        %964 = vmatpush1.bf16.msra.mxu0 0
        %965 = vmatprep.subr.bf16.mxu0 0
        %966 = vmatpush1.bf16.msra.mxu0 0
        %967 = vmatprep.subr.bf16.mxu0 0
        %968 = vmatpush1.bf16.msra.mxu0 0
        %969 = vmatprep.subr.bf16.mxu0 0
        %970 = vmatpush1.bf16.msra.mxu0 0
        %971 = vmatprep.subr.bf16.mxu0 0
        %972 = vmatpush1.bf16.msra.mxu0 0
        %973 = vmatprep.subr.bf16.mxu0 0
        %974 = vmatpush1.bf16.msra.mxu0 0
        %975 = vmatprep.subr.bf16.mxu0 0
        %976 = vmatpush1.bf16.msra.mxu0 0
        %977 = vmatprep.subr.bf16.mxu0 0
        %978 = vmatpush1.bf16.msra.mxu0 0
        %979 = vmatprep.mubr.bf16.mxu0 0
        %980 = vmatmul.mubr.bf16.gmra.mrb[0].mxu0 %v945
        %v981 = vpop.f32.mrb[0].mxu0
        %v982 = vadd.f32 0.0, %v981
        %v983 = vpop.f32.mrb[0].mxu0
        %v984 = vpop.f32.mrb[0].mxu0
        %v985 = vpop.f32.mrb[0].mxu0
        %986 = vdwg.mxu0
        %v987 = vpack.c.bf16 %v982, %v982
        %v992 = vunpack.c.l.b16 %v713
        %v993 = vunpack.c.l.b16 %v714
        %v994 = vunpack.c.l.b16 %v715
        %v995 = vunpack.c.l.b16 %v716
        %v996 = vpack.c.b16 %v993, %v992
        %v997 = vpack.c.b16 %v995, %v994
        %v1001 = vsel %vm841, %v987, 0
        %1003 = vmatprep.subr.bf16.mxu0 0
        %1004 = vmatpush1.bf16.msra.mxu0 %v996
        %1005 = vmatprep.subr.bf16.mxu0 0
        %1006 = vmatpush1.bf16.msra.mxu0 %v997
        %1007 = vmatprep.subr.bf16.mxu0 0
        %1008 = vmatpush1.bf16.msra.mxu0 0
        %1009 = vmatprep.subr.bf16.mxu0 0
        %1010 = vmatpush1.bf16.msra.mxu0 0
        %1011 = vmatprep.subr.bf16.mxu0 0
        %1012 = vmatpush1.bf16.msra.mxu0 0
        %1013 = vmatprep.subr.bf16.mxu0 0
        %1014 = vmatpush1.bf16.msra.mxu0 0
        %1015 = vmatprep.subr.bf16.mxu0 0
        %1016 = vmatpush1.bf16.msra.mxu0 0
        %1017 = vmatprep.subr.bf16.mxu0 0
        %1018 = vmatpush1.bf16.msra.mxu0 0
        %1019 = vmatprep.subr.bf16.mxu0 0
        %1020 = vmatpush1.bf16.msra.mxu0 0
        %1021 = vmatprep.subr.bf16.mxu0 0
        %1022 = vmatpush1.bf16.msra.mxu0 0
        %1023 = vmatprep.subr.bf16.mxu0 0
        %1024 = vmatpush1.bf16.msra.mxu0 0
        %1025 = vmatprep.subr.bf16.mxu0 0
        %1026 = vmatpush1.bf16.msra.mxu0 0
        %1027 = vmatprep.subr.bf16.mxu0 0
        %1028 = vmatpush1.bf16.msra.mxu0 0
        %1029 = vmatprep.subr.bf16.mxu0 0
        %1030 = vmatpush1.bf16.msra.mxu0 0
        %1031 = vmatprep.subr.bf16.mxu0 0
        %1032 = vmatpush1.bf16.msra.mxu0 0
        %1033 = vmatprep.subr.bf16.mxu0 0
        %1034 = vmatpush1.bf16.msra.mxu0 0
        %1035 = vmatprep.mubr.bf16.mxu0 0
        %1036 = vmatmul.mubr.bf16.gmra.mrb[0].mxu0 %v1001
        %v1037 = vpop.f32.mrb[0].mxu0
        %v1038 = vadd.f32 0.0, %v1037
        %v1039 = vpop.f32.mrb[0].mxu0
        %v1040 = vpop.f32.mrb[0].mxu0
        %v1041 = vpop.f32.mrb[0].mxu0
        %1042 = vdwg.mxu0
        %v1043 = vadd.f32 %v935, %v1038
        %v1044 = vadd.s32 %v729, 1
        %vm1045 = vcmp.eq.s32.totalorder %v728, %v1044
        %v1046 = vsel %vm1045, 1, 0
        %v1047 = vcvt.s32.f32 %v1046
        %v1048 = vpack.c.bf16 %v1047, %v1047
        %v1050 = vsel %vm735, %v1048, 0
        %1052 = vmatprep.subr.bf16.mxu0 0
        %1053 = vmatpush1.bf16.msra.mxu0 %v704
        %1054 = vmatprep.subr.bf16.mxu0 0
        %1055 = vmatpush1.bf16.msra.mxu0 0
        %1056 = vmatprep.subr.bf16.mxu0 0
        %1057 = vmatpush1.bf16.msra.mxu0 0
        %1058 = vmatprep.subr.bf16.mxu0 0
        %1059 = vmatpush1.bf16.msra.mxu0 0
        %1060 = vmatprep.subr.bf16.mxu0 0
        %1061 = vmatpush1.bf16.msra.mxu0 0
        %1062 = vmatprep.subr.bf16.mxu0 0
        %1063 = vmatpush1.bf16.msra.mxu0 0
        %1064 = vmatprep.subr.bf16.mxu0 0
        %1065 = vmatpush1.bf16.msra.mxu0 0
        %1066 = vmatprep.subr.bf16.mxu0 0
        %1067 = vmatpush1.bf16.msra.mxu0 0
        %1068 = vmatprep.subr.bf16.mxu0 0
        %1069 = vmatpush1.bf16.msra.mxu0 0
        %1070 = vmatprep.subr.bf16.mxu0 0
        %1071 = vmatpush1.bf16.msra.mxu0 0
        %1072 = vmatprep.subr.bf16.mxu0 0
        %1073 = vmatpush1.bf16.msra.mxu0 0
        %1074 = vmatprep.subr.bf16.mxu0 0
        %1075 = vmatpush1.bf16.msra.mxu0 0
        %1076 = vmatprep.subr.bf16.mxu0 0
        %1077 = vmatpush1.bf16.msra.mxu0 0
        %1078 = vmatprep.subr.bf16.mxu0 0
        %1079 = vmatpush1.bf16.msra.mxu0 0
        %1080 = vmatprep.subr.bf16.mxu0 0
        %1081 = vmatpush1.bf16.msra.mxu0 0
        %1082 = vmatprep.subr.bf16.mxu0 0
        %1083 = vmatpush1.bf16.msra.mxu0 0
        %1084 = vmatprep.mubr.bf16.mxu0 0
        %1085 = vmatmul.mubr.bf16.gmra.mrb[0].mxu0 %v1050
        %v1086 = vpop.f32.mrb[0].mxu0
        %v1087 = vadd.f32 0.0, %v1086
        %v1088 = vpop.f32.mrb[0].mxu0
        %v1089 = vpop.f32.mrb[0].mxu0
        %v1090 = vpop.f32.mrb[0].mxu0
        %1091 = vdwg.mxu0
        %v1092 = vpack.c.bf16 %v1087, %v1087
        %v1097 = vunpack.c.l.b16 %v717
        %v1098 = vunpack.c.l.b16 %v718
        %v1099 = vunpack.c.l.b16 %v719
        %v1100 = vunpack.c.l.b16 %v720
        %v1101 = vpack.c.b16 %v1098, %v1097
        %v1102 = vpack.c.b16 %v1100, %v1099
        %v1106 = vsel %vm841, %v1092, 0
        %1108 = vmatprep.subr.bf16.mxu0 0
        %1109 = vmatpush1.bf16.msra.mxu0 %v1101
        %1110 = vmatprep.subr.bf16.mxu0 0
        %1111 = vmatpush1.bf16.msra.mxu0 %v1102
        %1112 = vmatprep.subr.bf16.mxu0 0
        %1113 = vmatpush1.bf16.msra.mxu0 0
        %1114 = vmatprep.subr.bf16.mxu0 0
        %1115 = vmatpush1.bf16.msra.mxu0 0
        %1116 = vmatprep.subr.bf16.mxu0 0
        %1117 = vmatpush1.bf16.msra.mxu0 0
        %1118 = vmatprep.subr.bf16.mxu0 0
        %1119 = vmatpush1.bf16.msra.mxu0 0
        %1120 = vmatprep.subr.bf16.mxu0 0
        %1121 = vmatpush1.bf16.msra.mxu0 0
        %1122 = vmatprep.subr.bf16.mxu0 0
        %1123 = vmatpush1.bf16.msra.mxu0 0
        %1124 = vmatprep.subr.bf16.mxu0 0
        %1125 = vmatpush1.bf16.msra.mxu0 0
        %1126 = vmatprep.subr.bf16.mxu0 0
        %1127 = vmatpush1.bf16.msra.mxu0 0
        %1128 = vmatprep.subr.bf16.mxu0 0
        %1129 = vmatpush1.bf16.msra.mxu0 0
        %1130 = vmatprep.subr.bf16.mxu0 0
        %1131 = vmatpush1.bf16.msra.mxu0 0
        %1132 = vmatprep.subr.bf16.mxu0 0
        %1133 = vmatpush1.bf16.msra.mxu0 0
        %1134 = vmatprep.subr.bf16.mxu0 0
        %1135 = vmatpush1.bf16.msra.mxu0 0
        %1136 = vmatprep.subr.bf16.mxu0 0
        %1137 = vmatpush1.bf16.msra.mxu0 0
        %1138 = vmatprep.subr.bf16.mxu0 0
        %1139 = vmatpush1.bf16.msra.mxu0 0
        %1140 = vmatprep.mubr.bf16.mxu0 0
        %1141 = vmatmul.mubr.bf16.gmra.mrb[0].mxu0 %v1106
        %v1142 = vpop.f32.mrb[0].mxu0
        %v1143 = vadd.f32 0.0, %v1142
        %v1144 = vpop.f32.mrb[0].mxu0
        %v1145 = vpop.f32.mrb[0].mxu0
        %v1146 = vpop.f32.mrb[0].mxu0
        %1147 = vdwg.mxu0
        %v1148 = vadd.f32 %v1043, %v1143
        %v1149 = vadd.s32 %v729, 2
        %vm1150 = vcmp.eq.s32.totalorder %v728, %v1149
        %v1151 = vsel %vm1150, 1, 0
        %v1152 = vcvt.s32.f32 %v1151
        %v1153 = vpack.c.bf16 %v1152, %v1152
        %v1155 = vsel %vm735, %v1153, 0
        %1157 = vmatprep.subr.bf16.mxu0 0
        %1158 = vmatpush1.bf16.msra.mxu0 %v704
        %1159 = vmatprep.subr.bf16.mxu0 0
        %1160 = vmatpush1.bf16.msra.mxu0 0
        %1161 = vmatprep.subr.bf16.mxu0 0
        %1162 = vmatpush1.bf16.msra.mxu0 0
        %1163 = vmatprep.subr.bf16.mxu0 0
        %1164 = vmatpush1.bf16.msra.mxu0 0
        %1165 = vmatprep.subr.bf16.mxu0 0
        %1166 = vmatpush1.bf16.msra.mxu0 0
        %1167 = vmatprep.subr.bf16.mxu0 0
        %1168 = vmatpush1.bf16.msra.mxu0 0
        %1169 = vmatprep.subr.bf16.mxu0 0
        %1170 = vmatpush1.bf16.msra.mxu0 0
        %1171 = vmatprep.subr.bf16.mxu0 0
        %1172 = vmatpush1.bf16.msra.mxu0 0
        %1173 = vmatprep.subr.bf16.mxu0 0
        %1174 = vmatpush1.bf16.msra.mxu0 0
        %1175 = vmatprep.subr.bf16.mxu0 0
        %1176 = vmatpush1.bf16.msra.mxu0 0
        %1177 = vmatprep.subr.bf16.mxu0 0
        %1178 = vmatpush1.bf16.msra.mxu0 0
        %1179 = vmatprep.subr.bf16.mxu0 0
        %1180 = vmatpush1.bf16.msra.mxu0 0
        %1181 = vmatprep.subr.bf16.mxu0 0
        %1182 = vmatpush1.bf16.msra.mxu0 0
        %1183 = vmatprep.subr.bf16.mxu0 0
        %1184 = vmatpush1.bf16.msra.mxu0 0
        %1185 = vmatprep.subr.bf16.mxu0 0
        %1186 = vmatpush1.bf16.msra.mxu0 0
        %1187 = vmatprep.subr.bf16.mxu0 0
        %1188 = vmatpush1.bf16.msra.mxu0 0
        %1189 = vmatprep.mubr.bf16.mxu0 0
        %1190 = vmatmul.mubr.bf16.gmra.mrb[0].mxu0 %v1155
        %v1191 = vpop.f32.mrb[0].mxu0
        %v1192 = vadd.f32 0.0, %v1191
        %v1193 = vpop.f32.mrb[0].mxu0
        %v1194 = vpop.f32.mrb[0].mxu0
        %v1195 = vpop.f32.mrb[0].mxu0
        %1196 = vdwg.mxu0
        %v1197 = vpack.c.bf16 %v1192, %v1192
        %v1202 = vunpack.c.l.b16 %v721
        %v1203 = vunpack.c.l.b16 %v722
        %v1204 = vunpack.c.l.b16 %v723
        %v1205 = vunpack.c.l.b16 %v724
        %v1206 = vpack.c.b16 %v1203, %v1202
        %v1207 = vpack.c.b16 %v1205, %v1204
        %v1211 = vsel %vm841, %v1197, 0
        %1213 = vmatprep.subr.bf16.mxu0 0
        %1214 = vmatpush1.bf16.msra.mxu0 %v1206
        %1215 = vmatprep.subr.bf16.mxu0 0
        %1216 = vmatpush1.bf16.msra.mxu0 %v1207
        %1217 = vmatprep.subr.bf16.mxu0 0
        %1218 = vmatpush1.bf16.msra.mxu0 0
        %1219 = vmatprep.subr.bf16.mxu0 0
        %1220 = vmatpush1.bf16.msra.mxu0 0
        %1221 = vmatprep.subr.bf16.mxu0 0
        %1222 = vmatpush1.bf16.msra.mxu0 0
        %1223 = vmatprep.subr.bf16.mxu0 0
        %1224 = vmatpush1.bf16.msra.mxu0 0
        %1225 = vmatprep.subr.bf16.mxu0 0
        %1226 = vmatpush1.bf16.msra.mxu0 0
        %1227 = vmatprep.subr.bf16.mxu0 0
        %1228 = vmatpush1.bf16.msra.mxu0 0
        %1229 = vmatprep.subr.bf16.mxu0 0
        %1230 = vmatpush1.bf16.msra.mxu0 0
        %1231 = vmatprep.subr.bf16.mxu0 0
        %1232 = vmatpush1.bf16.msra.mxu0 0
        %1233 = vmatprep.subr.bf16.mxu0 0
        %1234 = vmatpush1.bf16.msra.mxu0 0
        %1235 = vmatprep.subr.bf16.mxu0 0
        %1236 = vmatpush1.bf16.msra.mxu0 0
        %1237 = vmatprep.subr.bf16.mxu0 0
        %1238 = vmatpush1.bf16.msra.mxu0 0
        %1239 = vmatprep.subr.bf16.mxu0 0
        %1240 = vmatpush1.bf16.msra.mxu0 0
        %1241 = vmatprep.subr.bf16.mxu0 0
        %1242 = vmatpush1.bf16.msra.mxu0 0
        %1243 = vmatprep.subr.bf16.mxu0 0
        %1244 = vmatpush1.bf16.msra.mxu0 0
        %1245 = vmatprep.mubr.bf16.mxu0 0
        %1246 = vmatmul.mubr.bf16.gmra.mrb[0].mxu0 %v1211
        %v1247 = vpop.f32.mrb[0].mxu0
        %v1248 = vadd.f32 0.0, %v1247
        %v1249 = vpop.f32.mrb[0].mxu0
        %v1250 = vpop.f32.mrb[0].mxu0
        %v1251 = vpop.f32.mrb[0].mxu0
        %1252 = vdwg.mxu0
        %v1253 = vadd.f32 %v1148, %v1248
        %v1254 = vld [vmem:[%s4] sm:$0x1]
        %v1256 = vlaneseq
        %v1257 = vshrl.u32 %v1256, 7
        %v1258 = vsub.s32 0, %v1257
        %v1259 = vrot.slane %v1254, %v1258
        %v1261 = vadd.f32 %v1253, %v1259
        %v1262 = vmax.f32 %v1261, 0.0
        %v1263 = vpack.c.bf16 %v1262, %v1262
        %s1264 = scalar_lea.vmem [#allocation2], 80
        %v1265 = vld [vmem:[%s1264] sm:$0xf]
        %v1266 = vld [vmem:[%s1264 + $0x4] sm:$0xf]
        %v1267 = vld [vmem:[%s1264 + $0x8] sm:$0xf]
        %v1268 = vld [vmem:[%s1264 + $0xc] sm:$0xf]
        %v1269 = vld [vmem:[%s1264 + $0x10] sm:$0xf]
        %v1270 = vld [vmem:[%s1264 + $0x14] sm:$0xf]
        %v1271 = vld [vmem:[%s1264 + $0x18] sm:$0xf]
        %v1272 = vld [vmem:[%s1264 + $0x1c] sm:$0xf]
        %v1273 = vld [vmem:[%s1264 + $0x20] sm:$0xf]
        %v1274 = vld [vmem:[%s1264 + $0x24] sm:$0xf]
        %v1275 = vld [vmem:[%s1264 + $0x28] sm:$0xf]
        %v1276 = vld [vmem:[%s1264 + $0x2c] sm:$0xf]
        %v1277 = vld [vmem:[%s1264 + $0x30] sm:$0xf]
        %v1278 = vld [vmem:[%s1264 + $0x34] sm:$0xf]
        %v1279 = vld [vmem:[%s1264 + $0x38] sm:$0xf]
        %v1280 = vld [vmem:[%s1264 + $0x3c] sm:$0xf]
        %v1281 = vld [vmem:[%s1264 + $0x40] sm:$0xf]
        %v1282 = vld [vmem:[%s1264 + $0x44] sm:$0xf]
        %v1283 = vld [vmem:[%s1264 + $0x48] sm:$0xf]
        %v1284 = vld [vmem:[%s1264 + $0x4c] sm:$0xf]
        %v1285 = vsel %vm655, %v734, 0
        %v1288 = vsel %vm659, %v1263, 0
        %1290 = vmatprep.subr.bf16.mxu0 0
        %1291 = vmatpush1.bf16.msra.mxu0 %v1288
        %1292 = vmatprep.subr.bf16.mxu0 0
        %1293 = vmatpush1.bf16.msra.mxu0 0
        %1294 = vmatprep.subr.bf16.mxu0 0
        %1295 = vmatpush1.bf16.msra.mxu0 0
        %1296 = vmatprep.subr.bf16.mxu0 0
        %1297 = vmatpush1.bf16.msra.mxu0 0
        %1298 = vmatprep.subr.bf16.mxu0 0
        %1299 = vmatpush1.bf16.msra.mxu0 0
        %1300 = vmatprep.subr.bf16.mxu0 0
        %1301 = vmatpush1.bf16.msra.mxu0 0
        %1302 = vmatprep.subr.bf16.mxu0 0
        %1303 = vmatpush1.bf16.msra.mxu0 0
        %1304 = vmatprep.subr.bf16.mxu0 0
        %1305 = vmatpush1.bf16.msra.mxu0 0
        %1306 = vmatprep.subr.bf16.mxu0 0
        %1307 = vmatpush1.bf16.msra.mxu0 0
        %1308 = vmatprep.subr.bf16.mxu0 0
        %1309 = vmatpush1.bf16.msra.mxu0 0
        %1310 = vmatprep.subr.bf16.mxu0 0
        %1311 = vmatpush1.bf16.msra.mxu0 0
        %1312 = vmatprep.subr.bf16.mxu0 0
        %1313 = vmatpush1.bf16.msra.mxu0 0
        %1314 = vmatprep.subr.bf16.mxu0 0
        %1315 = vmatpush1.bf16.msra.mxu0 0
        %1316 = vmatprep.subr.bf16.mxu0 0
        %1317 = vmatpush1.bf16.msra.mxu0 0
        %1318 = vmatprep.subr.bf16.mxu0 0
        %1319 = vmatpush1.bf16.msra.mxu0 0
        %1320 = vmatprep.subr.bf16.mxu0 0
        %1321 = vmatpush1.bf16.msra.mxu0 0
        %1322 = vmatprep.mubr.bf16.mxu0 0
        %1323 = vmatmul.mubr.bf16.gmra.mrb[0].mxu0 %v1285
        %v1324 = vpop.f32.mrb[0].mxu0
        %v1325 = vadd.f32 0.0, %v1324
        %v1326 = vpop.f32.mrb[0].mxu0
        %v1327 = vpop.f32.mrb[0].mxu0
        %v1328 = vpop.f32.mrb[0].mxu0
        %1329 = vdwg.mxu0
        %v1330 = vpack.c.bf16 %v1325, %v1325
        %v1331 = vsel %vm655, %v784, 0
        %1333 = vmatprep.subr.bf16.mxu0 0
        %1334 = vmatpush1.bf16.msra.mxu0 %v1288
        %1335 = vmatprep.subr.bf16.mxu0 0
        %1336 = vmatpush1.bf16.msra.mxu0 0
        %1337 = vmatprep.subr.bf16.mxu0 0
        %1338 = vmatpush1.bf16.msra.mxu0 0
        %1339 = vmatprep.subr.bf16.mxu0 0
        %1340 = vmatpush1.bf16.msra.mxu0 0
        %1341 = vmatprep.subr.bf16.mxu0 0
        %1342 = vmatpush1.bf16.msra.mxu0 0
        %1343 = vmatprep.subr.bf16.mxu0 0
        %1344 = vmatpush1.bf16.msra.mxu0 0
        %1345 = vmatprep.subr.bf16.mxu0 0
        %1346 = vmatpush1.bf16.msra.mxu0 0
        %1347 = vmatprep.subr.bf16.mxu0 0
        %1348 = vmatpush1.bf16.msra.mxu0 0
        %1349 = vmatprep.subr.bf16.mxu0 0
        %1350 = vmatpush1.bf16.msra.mxu0 0
        %1351 = vmatprep.subr.bf16.mxu0 0
        %1352 = vmatpush1.bf16.msra.mxu0 0
        %1353 = vmatprep.subr.bf16.mxu0 0
        %1354 = vmatpush1.bf16.msra.mxu0 0
        %1355 = vmatprep.subr.bf16.mxu0 0
        %1356 = vmatpush1.bf16.msra.mxu0 0
        %1357 = vmatprep.subr.bf16.mxu0 0
        %1358 = vmatpush1.bf16.msra.mxu0 0
        %1359 = vmatprep.subr.bf16.mxu0 0
        %1360 = vmatpush1.bf16.msra.mxu0 0
        %1361 = vmatprep.subr.bf16.mxu0 0
        %1362 = vmatpush1.bf16.msra.mxu0 0
        %1363 = vmatprep.subr.bf16.mxu0 0
        %1364 = vmatpush1.bf16.msra.mxu0 0
        %1365 = vmatprep.mubr.bf16.mxu0 0
        %1366 = vmatmul.mubr.bf16.gmra.mrb[0].mxu0 %v1331
        %v1367 = vpop.f32.mrb[0].mxu0
        %v1368 = vadd.f32 0.0, %v1367
        %v1369 = vpop.f32.mrb[0].mxu0
        %v1370 = vpop.f32.mrb[0].mxu0
        %v1371 = vpop.f32.mrb[0].mxu0
        %1372 = vdwg.mxu0
        %v1373 = vpack.c.bf16 %v1368, %v1368
        %v1378 = vunpack.c.l.b16 %v1269
        %v1379 = vunpack.c.l.b16 %v1270
        %v1380 = vunpack.c.l.b16 %v1271
        %v1381 = vunpack.c.l.b16 %v1272
        %v1382 = vpack.c.b16 %v1379, %v1378
        %v1383 = vpack.c.b16 %v1381, %v1380
        %v1387 = vsel %vm841, %v1373, 0
        %1389 = vmatprep.subr.bf16.mxu0 0
        %1390 = vmatpush1.bf16.msra.mxu0 %v1382
        %1391 = vmatprep.subr.bf16.mxu0 0
        %1392 = vmatpush1.bf16.msra.mxu0 %v1383
        %1393 = vmatprep.subr.bf16.mxu0 0
        %1394 = vmatpush1.bf16.msra.mxu0 0
        %1395 = vmatprep.subr.bf16.mxu0 0
        %1396 = vmatpush1.bf16.msra.mxu0 0
        %1397 = vmatprep.subr.bf16.mxu0 0
        %1398 = vmatpush1.bf16.msra.mxu0 0
        %1399 = vmatprep.subr.bf16.mxu0 0
        %1400 = vmatpush1.bf16.msra.mxu0 0
        %1401 = vmatprep.subr.bf16.mxu0 0
        %1402 = vmatpush1.bf16.msra.mxu0 0
        %1403 = vmatprep.subr.bf16.mxu0 0
        %1404 = vmatpush1.bf16.msra.mxu0 0
        %1405 = vmatprep.subr.bf16.mxu0 0
        %1406 = vmatpush1.bf16.msra.mxu0 0
        %1407 = vmatprep.subr.bf16.mxu0 0
        %1408 = vmatpush1.bf16.msra.mxu0 0
        %1409 = vmatprep.subr.bf16.mxu0 0
        %1410 = vmatpush1.bf16.msra.mxu0 0
        %1411 = vmatprep.subr.bf16.mxu0 0
        %1412 = vmatpush1.bf16.msra.mxu0 0
        %1413 = vmatprep.subr.bf16.mxu0 0
        %1414 = vmatpush1.bf16.msra.mxu0 0
        %1415 = vmatprep.subr.bf16.mxu0 0
        %1416 = vmatpush1.bf16.msra.mxu0 0
        %1417 = vmatprep.subr.bf16.mxu0 0
        %1418 = vmatpush1.bf16.msra.mxu0 0
        %1419 = vmatprep.subr.bf16.mxu0 0
        %1420 = vmatpush1.bf16.msra.mxu0 0
        %1421 = vmatprep.mubr.bf16.mxu0 0
        %1422 = vmatmul.mubr.bf16.gmra.mrb[0].mxu0 %v1387
        %v1423 = vpop.f32.mrb[0].mxu0
        %v1424 = vadd.f32 0.0, %v1423
        %v1425 = vpop.f32.mrb[0].mxu0
        %v1426 = vpop.f32.mrb[0].mxu0
        %v1427 = vpop.f32.mrb[0].mxu0
        %1428 = vdwg.mxu0
        %v1433 = vunpack.c.l.b16 %v1265
        %v1434 = vunpack.c.l.b16 %v1266
        %v1435 = vunpack.c.l.b16 %v1267
        %v1436 = vunpack.c.l.b16 %v1268
        %v1437 = vpack.c.b16 %v1434, %v1433
        %v1438 = vpack.c.b16 %v1436, %v1435
        %v1442 = vsel %vm841, %v1330, 0
        %1444 = vmatprep.subr.bf16.mxu0 0
        %1445 = vmatpush1.bf16.msra.mxu0 %v1437
        %1446 = vmatprep.subr.bf16.mxu0 0
        %1447 = vmatpush1.bf16.msra.mxu0 %v1438
        %1448 = vmatprep.subr.bf16.mxu0 0
        %1449 = vmatpush1.bf16.msra.mxu0 0
        %1450 = vmatprep.subr.bf16.mxu0 0
        %1451 = vmatpush1.bf16.msra.mxu0 0
        %1452 = vmatprep.subr.bf16.mxu0 0
        %1453 = vmatpush1.bf16.msra.mxu0 0
        %1454 = vmatprep.subr.bf16.mxu0 0
        %1455 = vmatpush1.bf16.msra.mxu0 0
        %1456 = vmatprep.subr.bf16.mxu0 0
        %1457 = vmatpush1.bf16.msra.mxu0 0
        %1458 = vmatprep.subr.bf16.mxu0 0
        %1459 = vmatpush1.bf16.msra.mxu0 0
        %1460 = vmatprep.subr.bf16.mxu0 0
        %1461 = vmatpush1.bf16.msra.mxu0 0
        %1462 = vmatprep.subr.bf16.mxu0 0
        %1463 = vmatpush1.bf16.msra.mxu0 0
        %1464 = vmatprep.subr.bf16.mxu0 0
        %1465 = vmatpush1.bf16.msra.mxu0 0
        %1466 = vmatprep.subr.bf16.mxu0 0
        %1467 = vmatpush1.bf16.msra.mxu0 0
        %1468 = vmatprep.subr.bf16.mxu0 0
        %1469 = vmatpush1.bf16.msra.mxu0 0
        %1470 = vmatprep.subr.bf16.mxu0 0
        %1471 = vmatpush1.bf16.msra.mxu0 0
        %1472 = vmatprep.subr.bf16.mxu0 0
        %1473 = vmatpush1.bf16.msra.mxu0 0
        %1474 = vmatprep.subr.bf16.mxu0 0
        %1475 = vmatpush1.bf16.msra.mxu0 0
        %1476 = vmatprep.mubr.bf16.mxu0 0
        %1477 = vmatmul.mubr.bf16.gmra.mrb[0].mxu0 %v1442
        %v1478 = vpop.f32.mrb[0].mxu0
        %v1479 = vadd.f32 %v1424, %v1478
        %v1480 = vpop.f32.mrb[0].mxu0
        %v1481 = vpop.f32.mrb[0].mxu0
        %v1482 = vpop.f32.mrb[0].mxu0
        %1483 = vdwg.mxu0
        %v1484 = vsel %vm655, %v943, 0
        %1486 = vmatprep.subr.bf16.mxu0 0
        %1487 = vmatpush1.bf16.msra.mxu0 %v1288
        %1488 = vmatprep.subr.bf16.mxu0 0
        %1489 = vmatpush1.bf16.msra.mxu0 0
        %1490 = vmatprep.subr.bf16.mxu0 0
        %1491 = vmatpush1.bf16.msra.mxu0 0
        %1492 = vmatprep.subr.bf16.mxu0 0
        %1493 = vmatpush1.bf16.msra.mxu0 0
        %1494 = vmatprep.subr.bf16.mxu0 0
        %1495 = vmatpush1.bf16.msra.mxu0 0
        %1496 = vmatprep.subr.bf16.mxu0 0
        %1497 = vmatpush1.bf16.msra.mxu0 0
        %1498 = vmatprep.subr.bf16.mxu0 0
        %1499 = vmatpush1.bf16.msra.mxu0 0
        %1500 = vmatprep.subr.bf16.mxu0 0
        %1501 = vmatpush1.bf16.msra.mxu0 0
        %1502 = vmatprep.subr.bf16.mxu0 0
        %1503 = vmatpush1.bf16.msra.mxu0 0
        %1504 = vmatprep.subr.bf16.mxu0 0
        %1505 = vmatpush1.bf16.msra.mxu0 0
        %1506 = vmatprep.subr.bf16.mxu0 0
        %1507 = vmatpush1.bf16.msra.mxu0 0
        %1508 = vmatprep.subr.bf16.mxu0 0
        %1509 = vmatpush1.bf16.msra.mxu0 0
        %1510 = vmatprep.subr.bf16.mxu0 0
        %1511 = vmatpush1.bf16.msra.mxu0 0
        %1512 = vmatprep.subr.bf16.mxu0 0
        %1513 = vmatpush1.bf16.msra.mxu0 0
        %1514 = vmatprep.subr.bf16.mxu0 0
        %1515 = vmatpush1.bf16.msra.mxu0 0
        %1516 = vmatprep.subr.bf16.mxu0 0
        %1517 = vmatpush1.bf16.msra.mxu0 0
        %1518 = vmatprep.mubr.bf16.mxu0 0
        %1519 = vmatmul.mubr.bf16.gmra.mrb[0].mxu0 %v1484
        %v1520 = vpop.f32.mrb[0].mxu0
        %v1521 = vadd.f32 0.0, %v1520
        %v1522 = vpop.f32.mrb[0].mxu0
        %v1523 = vpop.f32.mrb[0].mxu0
        %v1524 = vpop.f32.mrb[0].mxu0
        %1525 = vdwg.mxu0
        %v1526 = vpack.c.bf16 %v1521, %v1521
        %v1531 = vunpack.c.l.b16 %v1273
        %v1532 = vunpack.c.l.b16 %v1274
        %v1533 = vunpack.c.l.b16 %v1275
        %v1534 = vunpack.c.l.b16 %v1276
        %v1535 = vpack.c.b16 %v1532, %v1531
        %v1536 = vpack.c.b16 %v1534, %v1533
        %v1540 = vsel %vm841, %v1526, 0
        %1542 = vmatprep.subr.bf16.mxu0 0
        %1543 = vmatpush1.bf16.msra.mxu0 %v1535
        %1544 = vmatprep.subr.bf16.mxu0 0
        %1545 = vmatpush1.bf16.msra.mxu0 %v1536
        %1546 = vmatprep.subr.bf16.mxu0 0
        %1547 = vmatpush1.bf16.msra.mxu0 0
        %1548 = vmatprep.subr.bf16.mxu0 0
        %1549 = vmatpush1.bf16.msra.mxu0 0
        %1550 = vmatprep.subr.bf16.mxu0 0
        %1551 = vmatpush1.bf16.msra.mxu0 0
        %1552 = vmatprep.subr.bf16.mxu0 0
        %1553 = vmatpush1.bf16.msra.mxu0 0
        %1554 = vmatprep.subr.bf16.mxu0 0
        %1555 = vmatpush1.bf16.msra.mxu0 0
        %1556 = vmatprep.subr.bf16.mxu0 0
        %1557 = vmatpush1.bf16.msra.mxu0 0
        %1558 = vmatprep.subr.bf16.mxu0 0
        %1559 = vmatpush1.bf16.msra.mxu0 0
        %1560 = vmatprep.subr.bf16.mxu0 0
        %1561 = vmatpush1.bf16.msra.mxu0 0
        %1562 = vmatprep.subr.bf16.mxu0 0
        %1563 = vmatpush1.bf16.msra.mxu0 0
        %1564 = vmatprep.subr.bf16.mxu0 0
        %1565 = vmatpush1.bf16.msra.mxu0 0
        %1566 = vmatprep.subr.bf16.mxu0 0
        %1567 = vmatpush1.bf16.msra.mxu0 0
        %1568 = vmatprep.subr.bf16.mxu0 0
        %1569 = vmatpush1.bf16.msra.mxu0 0
        %1570 = vmatprep.subr.bf16.mxu0 0
        %1571 = vmatpush1.bf16.msra.mxu0 0
        %1572 = vmatprep.subr.bf16.mxu0 0
        %1573 = vmatpush1.bf16.msra.mxu0 0
        %1574 = vmatprep.mubr.bf16.mxu0 0
        %1575 = vmatmul.mubr.bf16.gmra.mrb[0].mxu0 %v1540
        %v1576 = vpop.f32.mrb[0].mxu0
        %v1577 = vadd.f32 0.0, %v1576
        %v1578 = vpop.f32.mrb[0].mxu0
        %v1579 = vpop.f32.mrb[0].mxu0
        %v1580 = vpop.f32.mrb[0].mxu0
        %1581 = vdwg.mxu0
        %v1582 = vadd.f32 %v1479, %v1577
        %v1583 = vsel %vm655, %v1048, 0
        %1585 = vmatprep.subr.bf16.mxu0 0
        %1586 = vmatpush1.bf16.msra.mxu0 %v1288
        %1587 = vmatprep.subr.bf16.mxu0 0
        %1588 = vmatpush1.bf16.msra.mxu0 0
        %1589 = vmatprep.subr.bf16.mxu0 0
        %1590 = vmatpush1.bf16.msra.mxu0 0
        %1591 = vmatprep.subr.bf16.mxu0 0
        %1592 = vmatpush1.bf16.msra.mxu0 0
        %1593 = vmatprep.subr.bf16.mxu0 0
        %1594 = vmatpush1.bf16.msra.mxu0 0
        %1595 = vmatprep.subr.bf16.mxu0 0
        %1596 = vmatpush1.bf16.msra.mxu0 0
        %1597 = vmatprep.subr.bf16.mxu0 0
        %1598 = vmatpush1.bf16.msra.mxu0 0
        %1599 = vmatprep.subr.bf16.mxu0 0
        %1600 = vmatpush1.bf16.msra.mxu0 0
        %1601 = vmatprep.subr.bf16.mxu0 0
        %1602 = vmatpush1.bf16.msra.mxu0 0
        %1603 = vmatprep.subr.bf16.mxu0 0
        %1604 = vmatpush1.bf16.msra.mxu0 0
        %1605 = vmatprep.subr.bf16.mxu0 0
        %1606 = vmatpush1.bf16.msra.mxu0 0
        %1607 = vmatprep.subr.bf16.mxu0 0
        %1608 = vmatpush1.bf16.msra.mxu0 0
        %1609 = vmatprep.subr.bf16.mxu0 0
        %1610 = vmatpush1.bf16.msra.mxu0 0
        %1611 = vmatprep.subr.bf16.mxu0 0
        %1612 = vmatpush1.bf16.msra.mxu0 0
        %1613 = vmatprep.subr.bf16.mxu0 0
        %1614 = vmatpush1.bf16.msra.mxu0 0
        %1615 = vmatprep.subr.bf16.mxu0 0
        %1616 = vmatpush1.bf16.msra.mxu0 0
        %1617 = vmatprep.mubr.bf16.mxu0 0
        %1618 = vmatmul.mubr.bf16.gmra.mrb[0].mxu0 %v1583
        %v1619 = vpop.f32.mrb[0].mxu0
        %v1620 = vadd.f32 0.0, %v1619
        %v1621 = vpop.f32.mrb[0].mxu0
        %v1622 = vpop.f32.mrb[0].mxu0
        %v1623 = vpop.f32.mrb[0].mxu0
        %1624 = vdwg.mxu0
        %v1625 = vpack.c.bf16 %v1620, %v1620
        %v1630 = vunpack.c.l.b16 %v1277
        %v1631 = vunpack.c.l.b16 %v1278
        %v1632 = vunpack.c.l.b16 %v1279
        %v1633 = vunpack.c.l.b16 %v1280
        %v1634 = vpack.c.b16 %v1631, %v1630
        %v1635 = vpack.c.b16 %v1633, %v1632
        %v1639 = vsel %vm841, %v1625, 0
        %1641 = vmatprep.subr.bf16.mxu0 0
        %1642 = vmatpush1.bf16.msra.mxu0 %v1634
        %1643 = vmatprep.subr.bf16.mxu0 0
        %1644 = vmatpush1.bf16.msra.mxu0 %v1635
        %1645 = vmatprep.subr.bf16.mxu0 0
        %1646 = vmatpush1.bf16.msra.mxu0 0
        %1647 = vmatprep.subr.bf16.mxu0 0
        %1648 = vmatpush1.bf16.msra.mxu0 0
        %1649 = vmatprep.subr.bf16.mxu0 0
        %1650 = vmatpush1.bf16.msra.mxu0 0
        %1651 = vmatprep.subr.bf16.mxu0 0
        %1652 = vmatpush1.bf16.msra.mxu0 0
        %1653 = vmatprep.subr.bf16.mxu0 0
        %1654 = vmatpush1.bf16.msra.mxu0 0
        %1655 = vmatprep.subr.bf16.mxu0 0
        %1656 = vmatpush1.bf16.msra.mxu0 0
        %1657 = vmatprep.subr.bf16.mxu0 0
        %1658 = vmatpush1.bf16.msra.mxu0 0
        %1659 = vmatprep.subr.bf16.mxu0 0
        %1660 = vmatpush1.bf16.msra.mxu0 0
        %1661 = vmatprep.subr.bf16.mxu0 0
        %1662 = vmatpush1.bf16.msra.mxu0 0
        %1663 = vmatprep.subr.bf16.mxu0 0
        %1664 = vmatpush1.bf16.msra.mxu0 0
        %1665 = vmatprep.subr.bf16.mxu0 0
        %1666 = vmatpush1.bf16.msra.mxu0 0
        %1667 = vmatprep.subr.bf16.mxu0 0
        %1668 = vmatpush1.bf16.msra.mxu0 0
        %1669 = vmatprep.subr.bf16.mxu0 0
        %1670 = vmatpush1.bf16.msra.mxu0 0
        %1671 = vmatprep.subr.bf16.mxu0 0
        %1672 = vmatpush1.bf16.msra.mxu0 0
        %1673 = vmatprep.mubr.bf16.mxu0 0
        %1674 = vmatmul.mubr.bf16.gmra.mrb[0].mxu0 %v1639
        %v1675 = vpop.f32.mrb[0].mxu0
        %v1676 = vadd.f32 0.0, %v1675
        %v1677 = vpop.f32.mrb[0].mxu0
        %v1678 = vpop.f32.mrb[0].mxu0
        %v1679 = vpop.f32.mrb[0].mxu0
        %1680 = vdwg.mxu0
        %v1681 = vadd.f32 %v1582, %v1676
        %v1682 = vsel %vm655, %v1153, 0
        %1684 = vmatprep.subr.bf16.mxu0 0
        %1685 = vmatpush1.bf16.msra.mxu0 %v1288
        %1686 = vmatprep.subr.bf16.mxu0 0
        %1687 = vmatpush1.bf16.msra.mxu0 0
        %1688 = vmatprep.subr.bf16.mxu0 0
        %1689 = vmatpush1.bf16.msra.mxu0 0
        %1690 = vmatprep.subr.bf16.mxu0 0
        %1691 = vmatpush1.bf16.msra.mxu0 0
        %1692 = vmatprep.subr.bf16.mxu0 0
        %1693 = vmatpush1.bf16.msra.mxu0 0
        %1694 = vmatprep.subr.bf16.mxu0 0
        %1695 = vmatpush1.bf16.msra.mxu0 0
        %1696 = vmatprep.subr.bf16.mxu0 0
        %1697 = vmatpush1.bf16.msra.mxu0 0
        %1698 = vmatprep.subr.bf16.mxu0 0
        %1699 = vmatpush1.bf16.msra.mxu0 0
        %1700 = vmatprep.subr.bf16.mxu0 0
        %1701 = vmatpush1.bf16.msra.mxu0 0
        %1702 = vmatprep.subr.bf16.mxu0 0
        %1703 = vmatpush1.bf16.msra.mxu0 0
        %1704 = vmatprep.subr.bf16.mxu0 0
        %1705 = vmatpush1.bf16.msra.mxu0 0
        %1706 = vmatprep.subr.bf16.mxu0 0
        %1707 = vmatpush1.bf16.msra.mxu0 0
        %1708 = vmatprep.subr.bf16.mxu0 0
        %1709 = vmatpush1.bf16.msra.mxu0 0
        %1710 = vmatprep.subr.bf16.mxu0 0
        %1711 = vmatpush1.bf16.msra.mxu0 0
        %1712 = vmatprep.subr.bf16.mxu0 0
        %1713 = vmatpush1.bf16.msra.mxu0 0
        %1714 = vmatprep.subr.bf16.mxu0 0
        %1715 = vmatpush1.bf16.msra.mxu0 0
        %1716 = vmatprep.mubr.bf16.mxu0 0
        %1717 = vmatmul.mubr.bf16.gmra.mrb[0].mxu0 %v1682
        %v1718 = vpop.f32.mrb[0].mxu0
        %v1719 = vadd.f32 0.0, %v1718
        %v1720 = vpop.f32.mrb[0].mxu0
        %v1721 = vpop.f32.mrb[0].mxu0
        %v1722 = vpop.f32.mrb[0].mxu0
        %1723 = vdwg.mxu0
        %v1724 = vpack.c.bf16 %v1719, %v1719
        %v1729 = vunpack.c.l.b16 %v1281
        %v1730 = vunpack.c.l.b16 %v1282
        %v1731 = vunpack.c.l.b16 %v1283
        %v1732 = vunpack.c.l.b16 %v1284
        %v1733 = vpack.c.b16 %v1730, %v1729
        %v1734 = vpack.c.b16 %v1732, %v1731
        %v1738 = vsel %vm841, %v1724, 0
        %1740 = vmatprep.subr.bf16.mxu0 0
        %1741 = vmatpush1.bf16.msra.mxu0 %v1733
        %1742 = vmatprep.subr.bf16.mxu0 0
        %1743 = vmatpush1.bf16.msra.mxu0 %v1734
        %1744 = vmatprep.subr.bf16.mxu0 0
        %1745 = vmatpush1.bf16.msra.mxu0 0
        %1746 = vmatprep.subr.bf16.mxu0 0
        %1747 = vmatpush1.bf16.msra.mxu0 0
        %1748 = vmatprep.subr.bf16.mxu0 0
        %1749 = vmatpush1.bf16.msra.mxu0 0
        %1750 = vmatprep.subr.bf16.mxu0 0
        %1751 = vmatpush1.bf16.msra.mxu0 0
        %1752 = vmatprep.subr.bf16.mxu0 0
        %1753 = vmatpush1.bf16.msra.mxu0 0
        %1754 = vmatprep.subr.bf16.mxu0 0
        %1755 = vmatpush1.bf16.msra.mxu0 0
        %1756 = vmatprep.subr.bf16.mxu0 0
        %1757 = vmatpush1.bf16.msra.mxu0 0
        %1758 = vmatprep.subr.bf16.mxu0 0
        %1759 = vmatpush1.bf16.msra.mxu0 0
        %1760 = vmatprep.subr.bf16.mxu0 0
        %1761 = vmatpush1.bf16.msra.mxu0 0
        %1762 = vmatprep.subr.bf16.mxu0 0
        %1763 = vmatpush1.bf16.msra.mxu0 0
        %1764 = vmatprep.subr.bf16.mxu0 0
        %1765 = vmatpush1.bf16.msra.mxu0 0
        %1766 = vmatprep.subr.bf16.mxu0 0
        %1767 = vmatpush1.bf16.msra.mxu0 0
        %1768 = vmatprep.subr.bf16.mxu0 0
        %1769 = vmatpush1.bf16.msra.mxu0 0
        %1770 = vmatprep.subr.bf16.mxu0 0
        %1771 = vmatpush1.bf16.msra.mxu0 0
        %1772 = vmatprep.mubr.bf16.mxu0 0
        %1773 = vmatmul.mubr.bf16.gmra.mrb[0].mxu0 %v1738
        %v1774 = vpop.f32.mrb[0].mxu0
        %v1775 = vadd.f32 0.0, %v1774
        %v1776 = vpop.f32.mrb[0].mxu0
        %v1777 = vpop.f32.mrb[0].mxu0
        %v1778 = vpop.f32.mrb[0].mxu0
        %1779 = vdwg.mxu0
        %v1780 = vadd.f32 %v1681, %v1775
        %s1781 = scalar_lea.vmem %s4, 1
        %v1782 = vld [vmem:[%s1781] sm:$0x1]
        %v1784 = vlaneseq
        %v1785 = vshrl.u32 %v1784, 7
        %v1786 = vsub.s32 0, %v1785
        %v1787 = vrot.slane %v1782, %v1786
        %v1789 = vadd.f32 %v1780, %v1787
        %v1790 = vmax.f32 %v1789, 0.0
        %v1791 = vld [vmem:[%s5] sm:$0xf]
        %v1792 = vadd.f32 %v1790, %v1791
        %v1793 = vld [vmem:[%s6] sm:$0x1]
        %v1794 = vld [vmem:[%s7] sm:$0x1]
        %vm1795 = vcmask 257024
        %v1796 = vsel %vm1795, %v1792, 0.0
        %1797 = vadd.xlane.f32.xlu0 %v1796
        %v1798 = vpop.xlane.xlu0 %1797
        %v1799 = vrcp.pop 32.0
        %v1800 = vmul.f32 %v1798, %v1799
        %v1801 = vsub.f32 %v1792, %v1800
        %v1802 = vmul.f32 %v1801, %v1801
        %v1803 = vsel %vm1795, %v1802, 0.0
        %1804 = vadd.xlane.f32.xlu0 %v1803
        %v1805 = vpop.xlane.xlu0 %1804
        %v1806 = vmul.f32 %v1805, %v1799
        %v1807 = vadd.f32 %v1806, 1e-05
        %v1808 = vrsqrt.pop %v1807
        %v1809 = vmul.f32 %v1801, %v1808
        %v1811 = vlaneseq
        %v1812 = vshrl.u32 %v1811, 7
        %v1813 = vsub.s32 0, %v1812
        %v1814 = vrot.slane %v1793, %v1813
        %v1816 = vmul.f32 %v1809, %v1814
        %v1818 = vlaneseq
        %v1819 = vshrl.u32 %v1818, 7
        %v1820 = vsub.s32 0, %v1819
        %v1821 = vrot.slane %v1794, %v1820
        %v1823 = vadd.f32 %v1816, %v1821
        %v1824 = vld [vmem:[%s8] sm:$0xf]
        %v1825 = vld [vmem:[%s8 + $0x4] sm:$0xf]
        %v1826 = vld [vmem:[%s8 + $0x8] sm:$0xf]
        %v1827 = vld [vmem:[%s8 + $0xc] sm:$0xf]
        %v1828 = vld [vmem:[%s9] sm:$0x1]
        %v1829 = vpack.c.bf16 %v1823, %v1823
        %v1831 = vlaneseq
        %v1832 = vshrl.u32 %v1831, 7
        %v1833 = vsub.s32 0, %v1832
        %v1834 = vrot.slane %v1828, %v1833
        %v1840 = vunpack.c.l.b16 %v1824
        %v1841 = vunpack.c.l.b16 %v1825
        %v1842 = vunpack.c.l.b16 %v1826
        %v1843 = vunpack.c.l.b16 %v1827
        %v1844 = vpack.c.b16 %v1841, %v1840
        %v1845 = vpack.c.b16 %v1843, %v1842
        %v1849 = vsel %vm841, %v1829, 0
        %1851 = vmatprep.subr.bf16.mxu0 0
        %1852 = vmatpush1.bf16.msra.mxu0 %v1844
        %1853 = vmatprep.subr.bf16.mxu0 0
        %1854 = vmatpush1.bf16.msra.mxu0 %v1845
        %1855 = vmatprep.subr.bf16.mxu0 0
        %1856 = vmatpush1.bf16.msra.mxu0 0
        %1857 = vmatprep.subr.bf16.mxu0 0
        %1858 = vmatpush1.bf16.msra.mxu0 0
        %1859 = vmatprep.subr.bf16.mxu0 0
        %1860 = vmatpush1.bf16.msra.mxu0 0
        %1861 = vmatprep.subr.bf16.mxu0 0
        %1862 = vmatpush1.bf16.msra.mxu0 0
        %1863 = vmatprep.subr.bf16.mxu0 0
        %1864 = vmatpush1.bf16.msra.mxu0 0
        %1865 = vmatprep.subr.bf16.mxu0 0
        %1866 = vmatpush1.bf16.msra.mxu0 0
        %1867 = vmatprep.subr.bf16.mxu0 0
        %1868 = vmatpush1.bf16.msra.mxu0 0
        %1869 = vmatprep.subr.bf16.mxu0 0
        %1870 = vmatpush1.bf16.msra.mxu0 0
        %1871 = vmatprep.subr.bf16.mxu0 0
        %1872 = vmatpush1.bf16.msra.mxu0 0
        %1873 = vmatprep.subr.bf16.mxu0 0
        %1874 = vmatpush1.bf16.msra.mxu0 0
        %1875 = vmatprep.subr.bf16.mxu0 0
        %1876 = vmatpush1.bf16.msra.mxu0 0
        %1877 = vmatprep.subr.bf16.mxu0 0
        %1878 = vmatpush1.bf16.msra.mxu0 0
        %1879 = vmatprep.subr.bf16.mxu0 0
        %1880 = vmatpush1.bf16.msra.mxu0 0
        %1881 = vmatprep.subr.bf16.mxu0 0
        %1882 = vmatpush1.bf16.msra.mxu0 0
        %1883 = vmatprep.mubr.bf16.mxu0 0
        %1884 = vmatmul.mubr.bf16.gmra.mrb[0].mxu0 %v1849
        %v1885 = vpop.f32.mrb[0].mxu0
        %v1886 = vadd.f32 %v1834, %v1885
        %v1887 = vpop.f32.mrb[0].mxu0
        %v1888 = vpop.f32.mrb[0].mxu0
        %v1889 = vpop.f32.mrb[0].mxu0
        %1890 = vdwg.mxu0
        %1892 = vrot.lane.b32.xlu0 %v1886, 120
        %v1893 = vpop.permute.xlu0 %1892
        %1895 = vrot.lane.b32.xlu0 %v1886, 112
        %v1896 = vpop.permute.xlu0 %1895
        %1898 = vrot.lane.b32.xlu0 %v1886, 104
        %v1899 = vpop.permute.xlu0 %1898
        %v1901 = vpack.c.bf16 %v1886, %v1886
        %v1902 = vpack.c.bf16 %v1893, %v1893
        %v1903 = vpack.c.bf16 %v1896, %v1896
        %v1904 = vpack.c.bf16 %v1899, %v1899
        %1906 = vrot.lane.b32.xlu0 %v1901, 96
        %v1907 = vpop.permute.xlu0 %1906
        %v1909 = vsel %vm655, %v1901, 0
        %v1912 = vsel %vm655, %v1907, 0
        %1914 = vmatprep.subr.bf16.mxu0 0
        %1915 = vmatpush1.bf16.xpose.msra.mxu0 %v1912
        %1916 = vmatprep.subr.bf16.mxu0 0
        %1917 = vmatpush1.bf16.xpose.msra.mxu0 0
        %1918 = vmatprep.subr.bf16.mxu0 0
        %1919 = vmatpush1.bf16.xpose.msra.mxu0 0
        %1920 = vmatprep.subr.bf16.mxu0 0
        %1921 = vmatpush1.bf16.xpose.msra.mxu0 0
        %1922 = vmatprep.subr.bf16.mxu0 0
        %1923 = vmatpush1.bf16.xpose.msra.mxu0 0
        %1924 = vmatprep.subr.bf16.mxu0 0
        %1925 = vmatpush1.bf16.xpose.msra.mxu0 0
        %1926 = vmatprep.subr.bf16.mxu0 0
        %1927 = vmatpush1.bf16.xpose.msra.mxu0 0
        %1928 = vmatprep.subr.bf16.mxu0 0
        %1929 = vmatpush1.bf16.xpose.msra.mxu0 0
        %1930 = vmatprep.subr.bf16.mxu0 0
        %1931 = vmatpush1.bf16.xpose.msra.mxu0 0
        %1932 = vmatprep.subr.bf16.mxu0 0
        %1933 = vmatpush1.bf16.xpose.msra.mxu0 0
        %1934 = vmatprep.subr.bf16.mxu0 0
        %1935 = vmatpush1.bf16.xpose.msra.mxu0 0
        %1936 = vmatprep.subr.bf16.mxu0 0
        %1937 = vmatpush1.bf16.xpose.msra.mxu0 0
        %1938 = vmatprep.subr.bf16.mxu0 0
        %1939 = vmatpush1.bf16.xpose.msra.mxu0 0
        %1940 = vmatprep.subr.bf16.mxu0 0
        %1941 = vmatpush1.bf16.xpose.msra.mxu0 0
        %1942 = vmatprep.subr.bf16.mxu0 0
        %1943 = vmatpush1.bf16.xpose.msra.mxu0 0
        %1944 = vmatprep.subr.bf16.mxu0 0
        %1945 = vmatpush1.bf16.xpose.msra.mxu0 0
        %1946 = vmatprep.mubr.bf16.mxu0 0
        %1947 = vmatmul.mubr.bf16.gmra.mrb[0].mxu0 %v1909
        %v1948 = vpop.f32.mrb[0].mxu0
        %v1949 = vadd.f32 0.0, %v1948
        %v1950 = vpop.f32.mrb[0].mxu0
        %v1951 = vpop.f32.mrb[0].mxu0
        %v1952 = vpop.f32.mrb[0].mxu0
        %1953 = vdwg.mxu0
        %1955 = vrot.lane.b32.xlu0 %v1902, 96
        %v1956 = vpop.permute.xlu0 %1955
        %v1958 = vsel %vm655, %v1902, 0
        %v1961 = vsel %vm655, %v1956, 0
        %1963 = vmatprep.subr.bf16.mxu0 0
        %1964 = vmatpush1.bf16.xpose.msra.mxu0 %v1961
        %1965 = vmatprep.subr.bf16.mxu0 0
        %1966 = vmatpush1.bf16.xpose.msra.mxu0 0
        %1967 = vmatprep.subr.bf16.mxu0 0
        %1968 = vmatpush1.bf16.xpose.msra.mxu0 0
        %1969 = vmatprep.subr.bf16.mxu0 0
        %1970 = vmatpush1.bf16.xpose.msra.mxu0 0
        %1971 = vmatprep.subr.bf16.mxu0 0
        %1972 = vmatpush1.bf16.xpose.msra.mxu0 0
        %1973 = vmatprep.subr.bf16.mxu0 0
        %1974 = vmatpush1.bf16.xpose.msra.mxu0 0
        %1975 = vmatprep.subr.bf16.mxu0 0
        %1976 = vmatpush1.bf16.xpose.msra.mxu0 0
        %1977 = vmatprep.subr.bf16.mxu0 0
        %1978 = vmatpush1.bf16.xpose.msra.mxu0 0
        %1979 = vmatprep.subr.bf16.mxu0 0
        %1980 = vmatpush1.bf16.xpose.msra.mxu0 0
        %1981 = vmatprep.subr.bf16.mxu0 0
        %1982 = vmatpush1.bf16.xpose.msra.mxu0 0
        %1983 = vmatprep.subr.bf16.mxu0 0
        %1984 = vmatpush1.bf16.xpose.msra.mxu0 0
        %1985 = vmatprep.subr.bf16.mxu0 0
        %1986 = vmatpush1.bf16.xpose.msra.mxu0 0
        %1987 = vmatprep.subr.bf16.mxu0 0
        %1988 = vmatpush1.bf16.xpose.msra.mxu0 0
        %1989 = vmatprep.subr.bf16.mxu0 0
        %1990 = vmatpush1.bf16.xpose.msra.mxu0 0
        %1991 = vmatprep.subr.bf16.mxu0 0
        %1992 = vmatpush1.bf16.xpose.msra.mxu0 0
        %1993 = vmatprep.subr.bf16.mxu0 0
        %1994 = vmatpush1.bf16.xpose.msra.mxu0 0
        %1995 = vmatprep.mubr.bf16.mxu0 0
        %1996 = vmatmul.mubr.bf16.gmra.mrb[0].mxu0 %v1958
        %v1997 = vpop.f32.mrb[0].mxu0
        %v1998 = vadd.f32 0.0, %v1997
        %v1999 = vpop.f32.mrb[0].mxu0
        %v2000 = vpop.f32.mrb[0].mxu0
        %v2001 = vpop.f32.mrb[0].mxu0
        %2002 = vdwg.mxu0
        %2004 = vrot.lane.b32.xlu0 %v1903, 96
        %v2005 = vpop.permute.xlu0 %2004
        %v2007 = vsel %vm655, %v1903, 0
        %v2010 = vsel %vm655, %v2005, 0
        %2012 = vmatprep.subr.bf16.mxu0 0
        %2013 = vmatpush1.bf16.xpose.msra.mxu0 %v2010
        %2014 = vmatprep.subr.bf16.mxu0 0
        %2015 = vmatpush1.bf16.xpose.msra.mxu0 0
        %2016 = vmatprep.subr.bf16.mxu0 0
        %2017 = vmatpush1.bf16.xpose.msra.mxu0 0
        %2018 = vmatprep.subr.bf16.mxu0 0
        %2019 = vmatpush1.bf16.xpose.msra.mxu0 0
        %2020 = vmatprep.subr.bf16.mxu0 0
        %2021 = vmatpush1.bf16.xpose.msra.mxu0 0
        %2022 = vmatprep.subr.bf16.mxu0 0
        %2023 = vmatpush1.bf16.xpose.msra.mxu0 0
        %2024 = vmatprep.subr.bf16.mxu0 0
        %2025 = vmatpush1.bf16.xpose.msra.mxu0 0
        %2026 = vmatprep.subr.bf16.mxu0 0
        %2027 = vmatpush1.bf16.xpose.msra.mxu0 0
        %2028 = vmatprep.subr.bf16.mxu0 0
        %2029 = vmatpush1.bf16.xpose.msra.mxu0 0
        %2030 = vmatprep.subr.bf16.mxu0 0
        %2031 = vmatpush1.bf16.xpose.msra.mxu0 0
        %2032 = vmatprep.subr.bf16.mxu0 0
        %2033 = vmatpush1.bf16.xpose.msra.mxu0 0
        %2034 = vmatprep.subr.bf16.mxu0 0
        %2035 = vmatpush1.bf16.xpose.msra.mxu0 0
        %2036 = vmatprep.subr.bf16.mxu0 0
        %2037 = vmatpush1.bf16.xpose.msra.mxu0 0
        %2038 = vmatprep.subr.bf16.mxu0 0
        %2039 = vmatpush1.bf16.xpose.msra.mxu0 0
        %2040 = vmatprep.subr.bf16.mxu0 0
        %2041 = vmatpush1.bf16.xpose.msra.mxu0 0
        %2042 = vmatprep.subr.bf16.mxu0 0
        %2043 = vmatpush1.bf16.xpose.msra.mxu0 0
        %2044 = vmatprep.mubr.bf16.mxu0 0
        %2045 = vmatmul.mubr.bf16.gmra.mrb[0].mxu0 %v2007
        %v2046 = vpop.f32.mrb[0].mxu0
        %v2047 = vadd.f32 0.0, %v2046
        %v2048 = vpop.f32.mrb[0].mxu0
        %v2049 = vpop.f32.mrb[0].mxu0
        %v2050 = vpop.f32.mrb[0].mxu0
        %2051 = vdwg.mxu0
        %2053 = vrot.lane.b32.xlu0 %v1904, 96
        %v2054 = vpop.permute.xlu0 %2053
        %v2056 = vsel %vm655, %v1904, 0
        %v2059 = vsel %vm655, %v2054, 0
        %2061 = vmatprep.subr.bf16.mxu0 0
        %2062 = vmatpush1.bf16.xpose.msra.mxu0 %v2059
        %2063 = vmatprep.subr.bf16.mxu0 0
        %2064 = vmatpush1.bf16.xpose.msra.mxu0 0
        %2065 = vmatprep.subr.bf16.mxu0 0
        %2066 = vmatpush1.bf16.xpose.msra.mxu0 0
        %2067 = vmatprep.subr.bf16.mxu0 0
        %2068 = vmatpush1.bf16.xpose.msra.mxu0 0
        %2069 = vmatprep.subr.bf16.mxu0 0
        %2070 = vmatpush1.bf16.xpose.msra.mxu0 0
        %2071 = vmatprep.subr.bf16.mxu0 0
        %2072 = vmatpush1.bf16.xpose.msra.mxu0 0
        %2073 = vmatprep.subr.bf16.mxu0 0
        %2074 = vmatpush1.bf16.xpose.msra.mxu0 0
        %2075 = vmatprep.subr.bf16.mxu0 0
        %2076 = vmatpush1.bf16.xpose.msra.mxu0 0
        %2077 = vmatprep.subr.bf16.mxu0 0
        %2078 = vmatpush1.bf16.xpose.msra.mxu0 0
        %2079 = vmatprep.subr.bf16.mxu0 0
        %2080 = vmatpush1.bf16.xpose.msra.mxu0 0
        %2081 = vmatprep.subr.bf16.mxu0 0
        %2082 = vmatpush1.bf16.xpose.msra.mxu0 0
        %2083 = vmatprep.subr.bf16.mxu0 0
        %2084 = vmatpush1.bf16.xpose.msra.mxu0 0
        %2085 = vmatprep.subr.bf16.mxu0 0
        %2086 = vmatpush1.bf16.xpose.msra.mxu0 0
        %2087 = vmatprep.subr.bf16.mxu0 0
        %2088 = vmatpush1.bf16.xpose.msra.mxu0 0
        %2089 = vmatprep.subr.bf16.mxu0 0
        %2090 = vmatpush1.bf16.xpose.msra.mxu0 0
        %2091 = vmatprep.subr.bf16.mxu0 0
        %2092 = vmatpush1.bf16.xpose.msra.mxu0 0
        %2093 = vmatprep.mubr.bf16.mxu0 0
        %2094 = vmatmul.mubr.bf16.gmra.mrb[0].mxu0 %v2056
        %v2095 = vpop.f32.mrb[0].mxu0
        %v2096 = vadd.f32 0.0, %v2095
        %v2097 = vpop.f32.mrb[0].mxu0
        %v2098 = vpop.f32.mrb[0].mxu0
        %v2099 = vpop.f32.mrb[0].mxu0
        %2100 = vdwg.mxu0
        %vm2101 = vcmask 27648
        %v2102 = vsel %vm2101, %v1949, -inf
        %2103 = vmax.xlane.f32.xlu0 %v2102
        %v2104 = vpop.xlane.xlu0 %2103
        %v2105 = vsel %vm2101, %v1998, -inf
        %2106 = vmax.xlane.f32.xlu0 %v2105
        %v2107 = vpop.xlane.xlu0 %2106
        %v2108 = vsel %vm2101, %v2047, -inf
        %2109 = vmax.xlane.f32.xlu0 %v2108
        %v2110 = vpop.xlane.xlu0 %2109
        %v2111 = vsel %vm2101, %v2096, -inf
        %2112 = vmax.xlane.f32.xlu0 %v2111
        %v2113 = vpop.xlane.xlu0 %2112
        %v2114 = vsub.f32 %v1949, %v2104
        %v2115 = vsub.f32 %v1998, %v2107
        %v2116 = vsub.f32 %v2047, %v2110
        %v2117 = vsub.f32 %v2096, %v2113
        %v2118 = vmul.f32 %v2114, 1.442695
        %v2119 = vpow.pop %v2118
        %v2120 = vmul.f32 %v2115, 1.442695
        %v2121 = vpow.pop %v2120
        %v2122 = vmul.f32 %v2116, 1.442695
        %v2123 = vpow.pop %v2122
        %v2124 = vmul.f32 %v2117, 1.442695
        %v2125 = vpow.pop %v2124
        %v2126 = vsel %vm2101, %v2119, 0.0
        %2127 = vadd.xlane.f32.xlu0 %v2126
        %v2128 = vpop.xlane.xlu0 %2127
        %v2129 = vsel %vm2101, %v2121, 0.0
        %2130 = vadd.xlane.f32.xlu0 %v2129
        %v2131 = vpop.xlane.xlu0 %2130
        %v2132 = vsel %vm2101, %v2123, 0.0
        %2133 = vadd.xlane.f32.xlu0 %v2132
        %v2134 = vpop.xlane.xlu0 %2133
        %v2135 = vsel %vm2101, %v2125, 0.0
        %2136 = vadd.xlane.f32.xlu0 %v2135
        %v2137 = vpop.xlane.xlu0 %2136
        %v2138 = vrcp.pop %v2128
        %v2139 = vmul.f32 %v2119, %v2138
        %v2140 = vrcp.pop %v2131
        %v2141 = vmul.f32 %v2121, %v2140
        %v2142 = vrcp.pop %v2134
        %v2143 = vmul.f32 %v2123, %v2142
        %v2144 = vrcp.pop %v2137
        %v2145 = vmul.f32 %v2125, %v2144
        %v2146 = vpack.c.bf16 %v2139, %v2139
        %v2147 = vpack.c.bf16 %v2141, %v2141
        %v2148 = vpack.c.bf16 %v2143, %v2143
        %v2149 = vpack.c.bf16 %v2145, %v2145
        %2150 = vrot.lane.b32.xlu0 %v1901, 64
        %v2151 = vpop.permute.xlu0 %2150
        %vm2152 = vcmask 31744
        %v2154 = vsel %vm2152, %v2146, 0
        %vm2156 = vcmask 1041408
        %v2158 = vsel %vm2156, %v2151, 0
        %2160 = vmatprep.subr.bf16.mxu0 0
        %2161 = vmatpush1.bf16.msra.mxu0 %v2158
        %2162 = vmatprep.subr.bf16.mxu0 0
        %2163 = vmatpush1.bf16.msra.mxu0 0
        %2164 = vmatprep.subr.bf16.mxu0 0
        %2165 = vmatpush1.bf16.msra.mxu0 0
        %2166 = vmatprep.subr.bf16.mxu0 0
        %2167 = vmatpush1.bf16.msra.mxu0 0
        %2168 = vmatprep.subr.bf16.mxu0 0
        %2169 = vmatpush1.bf16.msra.mxu0 0
        %2170 = vmatprep.subr.bf16.mxu0 0
        %2171 = vmatpush1.bf16.msra.mxu0 0
        %2172 = vmatprep.subr.bf16.mxu0 0
        %2173 = vmatpush1.bf16.msra.mxu0 0
        %2174 = vmatprep.subr.bf16.mxu0 0
        %2175 = vmatpush1.bf16.msra.mxu0 0
        %2176 = vmatprep.subr.bf16.mxu0 0
        %2177 = vmatpush1.bf16.msra.mxu0 0
        %2178 = vmatprep.subr.bf16.mxu0 0
        %2179 = vmatpush1.bf16.msra.mxu0 0
        %2180 = vmatprep.subr.bf16.mxu0 0
        %2181 = vmatpush1.bf16.msra.mxu0 0
        %2182 = vmatprep.subr.bf16.mxu0 0
        %2183 = vmatpush1.bf16.msra.mxu0 0
        %2184 = vmatprep.subr.bf16.mxu0 0
        %2185 = vmatpush1.bf16.msra.mxu0 0
        %2186 = vmatprep.subr.bf16.mxu0 0
        %2187 = vmatpush1.bf16.msra.mxu0 0
        %2188 = vmatprep.subr.bf16.mxu0 0
        %2189 = vmatpush1.bf16.msra.mxu0 0
        %2190 = vmatprep.subr.bf16.mxu0 0
        %2191 = vmatpush1.bf16.msra.mxu0 0
        %2192 = vmatprep.mubr.bf16.mxu0 0
        %2193 = vmatmul.mubr.bf16.gmra.mrb[0].mxu0 %v2154
        %v2194 = vpop.f32.mrb[0].mxu0
        %v2195 = vadd.f32 0.0, %v2194
        %v2196 = vpop.f32.mrb[0].mxu0
        %v2197 = vpop.f32.mrb[0].mxu0
        %v2198 = vpop.f32.mrb[0].mxu0
        %2199 = vdwg.mxu0
        %2200 = vrot.lane.b32.xlu0 %v1902, 64
        %v2201 = vpop.permute.xlu0 %2200
        %v2203 = vsel %vm2152, %v2147, 0
        %v2206 = vsel %vm2156, %v2201, 0
        %2208 = vmatprep.subr.bf16.mxu0 0
        %2209 = vmatpush1.bf16.msra.mxu0 %v2206
        %2210 = vmatprep.subr.bf16.mxu0 0
        %2211 = vmatpush1.bf16.msra.mxu0 0
        %2212 = vmatprep.subr.bf16.mxu0 0
        %2213 = vmatpush1.bf16.msra.mxu0 0
        %2214 = vmatprep.subr.bf16.mxu0 0
        %2215 = vmatpush1.bf16.msra.mxu0 0
        %2216 = vmatprep.subr.bf16.mxu0 0
        %2217 = vmatpush1.bf16.msra.mxu0 0
        %2218 = vmatprep.subr.bf16.mxu0 0
        %2219 = vmatpush1.bf16.msra.mxu0 0
        %2220 = vmatprep.subr.bf16.mxu0 0
        %2221 = vmatpush1.bf16.msra.mxu0 0
        %2222 = vmatprep.subr.bf16.mxu0 0
        %2223 = vmatpush1.bf16.msra.mxu0 0
        %2224 = vmatprep.subr.bf16.mxu0 0
        %2225 = vmatpush1.bf16.msra.mxu0 0
        %2226 = vmatprep.subr.bf16.mxu0 0
        %2227 = vmatpush1.bf16.msra.mxu0 0
        %2228 = vmatprep.subr.bf16.mxu0 0
        %2229 = vmatpush1.bf16.msra.mxu0 0
        %2230 = vmatprep.subr.bf16.mxu0 0
        %2231 = vmatpush1.bf16.msra.mxu0 0
        %2232 = vmatprep.subr.bf16.mxu0 0
        %2233 = vmatpush1.bf16.msra.mxu0 0
        %2234 = vmatprep.subr.bf16.mxu0 0
        %2235 = vmatpush1.bf16.msra.mxu0 0
        %2236 = vmatprep.subr.bf16.mxu0 0
        %2237 = vmatpush1.bf16.msra.mxu0 0
        %2238 = vmatprep.subr.bf16.mxu0 0
        %2239 = vmatpush1.bf16.msra.mxu0 0
        %2240 = vmatprep.mubr.bf16.mxu0 0
        %2241 = vmatmul.mubr.bf16.gmra.mrb[0].mxu0 %v2203
        %v2242 = vpop.f32.mrb[0].mxu0
        %v2243 = vadd.f32 0.0, %v2242
        %v2244 = vpop.f32.mrb[0].mxu0
        %v2245 = vpop.f32.mrb[0].mxu0
        %v2246 = vpop.f32.mrb[0].mxu0
        %2247 = vdwg.mxu0
        %2248 = vrot.lane.b32.xlu0 %v1903, 64
        %v2249 = vpop.permute.xlu0 %2248
        %v2251 = vsel %vm2152, %v2148, 0
        %v2254 = vsel %vm2156, %v2249, 0
        %2256 = vmatprep.subr.bf16.mxu0 0
        %2257 = vmatpush1.bf16.msra.mxu0 %v2254
        %2258 = vmatprep.subr.bf16.mxu0 0
        %2259 = vmatpush1.bf16.msra.mxu0 0
        %2260 = vmatprep.subr.bf16.mxu0 0
        %2261 = vmatpush1.bf16.msra.mxu0 0
        %2262 = vmatprep.subr.bf16.mxu0 0
        %2263 = vmatpush1.bf16.msra.mxu0 0
        %2264 = vmatprep.subr.bf16.mxu0 0
        %2265 = vmatpush1.bf16.msra.mxu0 0
        %2266 = vmatprep.subr.bf16.mxu0 0
        %2267 = vmatpush1.bf16.msra.mxu0 0
        %2268 = vmatprep.subr.bf16.mxu0 0
        %2269 = vmatpush1.bf16.msra.mxu0 0
        %2270 = vmatprep.subr.bf16.mxu0 0
        %2271 = vmatpush1.bf16.msra.mxu0 0
        %2272 = vmatprep.subr.bf16.mxu0 0
        %2273 = vmatpush1.bf16.msra.mxu0 0
        %2274 = vmatprep.subr.bf16.mxu0 0
        %2275 = vmatpush1.bf16.msra.mxu0 0
        %2276 = vmatprep.subr.bf16.mxu0 0
        %2277 = vmatpush1.bf16.msra.mxu0 0
        %2278 = vmatprep.subr.bf16.mxu0 0
        %2279 = vmatpush1.bf16.msra.mxu0 0
        %2280 = vmatprep.subr.bf16.mxu0 0
        %2281 = vmatpush1.bf16.msra.mxu0 0
        %2282 = vmatprep.subr.bf16.mxu0 0
        %2283 = vmatpush1.bf16.msra.mxu0 0
        %2284 = vmatprep.subr.bf16.mxu0 0
        %2285 = vmatpush1.bf16.msra.mxu0 0
        %2286 = vmatprep.subr.bf16.mxu0 0
        %2287 = vmatpush1.bf16.msra.mxu0 0
        %2288 = vmatprep.mubr.bf16.mxu0 0
        %2289 = vmatmul.mubr.bf16.gmra.mrb[0].mxu0 %v2251
        %v2290 = vpop.f32.mrb[0].mxu0
        %v2291 = vadd.f32 0.0, %v2290
        %v2292 = vpop.f32.mrb[0].mxu0
        %v2293 = vpop.f32.mrb[0].mxu0
        %v2294 = vpop.f32.mrb[0].mxu0
        %2295 = vdwg.mxu0
        %2296 = vrot.lane.b32.xlu0 %v1904, 64
        %v2297 = vpop.permute.xlu0 %2296
        %v2299 = vsel %vm2152, %v2149, 0
        %v2302 = vsel %vm2156, %v2297, 0
        %2304 = vmatprep.subr.bf16.mxu0 0
        %2305 = vmatpush1.bf16.msra.mxu0 %v2302
        %2306 = vmatprep.subr.bf16.mxu0 0
        %2307 = vmatpush1.bf16.msra.mxu0 0
        %2308 = vmatprep.subr.bf16.mxu0 0
        %2309 = vmatpush1.bf16.msra.mxu0 0
        %2310 = vmatprep.subr.bf16.mxu0 0
        %2311 = vmatpush1.bf16.msra.mxu0 0
        %2312 = vmatprep.subr.bf16.mxu0 0
        %2313 = vmatpush1.bf16.msra.mxu0 0
        %2314 = vmatprep.subr.bf16.mxu0 0
        %2315 = vmatpush1.bf16.msra.mxu0 0
        %2316 = vmatprep.subr.bf16.mxu0 0
        %2317 = vmatpush1.bf16.msra.mxu0 0
        %2318 = vmatprep.subr.bf16.mxu0 0
        %2319 = vmatpush1.bf16.msra.mxu0 0
        %2320 = vmatprep.subr.bf16.mxu0 0
        %2321 = vmatpush1.bf16.msra.mxu0 0
        %2322 = vmatprep.subr.bf16.mxu0 0
        %2323 = vmatpush1.bf16.msra.mxu0 0
        %2324 = vmatprep.subr.bf16.mxu0 0
        %2325 = vmatpush1.bf16.msra.mxu0 0
        %2326 = vmatprep.subr.bf16.mxu0 0
        %2327 = vmatpush1.bf16.msra.mxu0 0
        %2328 = vmatprep.subr.bf16.mxu0 0
        %2329 = vmatpush1.bf16.msra.mxu0 0
        %2330 = vmatprep.subr.bf16.mxu0 0
        %2331 = vmatpush1.bf16.msra.mxu0 0
        %2332 = vmatprep.subr.bf16.mxu0 0
        %2333 = vmatpush1.bf16.msra.mxu0 0
        %2334 = vmatprep.subr.bf16.mxu0 0
        %2335 = vmatpush1.bf16.msra.mxu0 0
        %2336 = vmatprep.mubr.bf16.mxu0 0
        %2337 = vmatmul.mubr.bf16.gmra.mrb[0].mxu0 %v2299
        %v2338 = vpop.f32.mrb[0].mxu0
        %v2339 = vadd.f32 0.0, %v2338
        %v2340 = vpop.f32.mrb[0].mxu0
        %v2341 = vpop.f32.mrb[0].mxu0
        %v2342 = vpop.f32.mrb[0].mxu0
        %2343 = vdwg.mxu0
        %2345 = vrot.lane.b32.xlu0 %v2243, 8
        %v2346 = vpop.permute.xlu0 %2345
        %2349 = vrot.lane.b32.xlu0 %v2291, 16
        %v2350 = vpop.permute.xlu0 %2349
        %2353 = vrot.lane.b32.xlu0 %v2339, 24
        %v2354 = vpop.permute.xlu0 %2353
        %v2356 = vsel %vm655, %v2195, %v2346
        %v2357 = vsel %vm735, %v2356, %v2350
        %vm2358 = vcmask 195584
        %v2359 = vsel %vm2358, %v2357, %v2354
        %v2360 = vld [vmem:[%s10] sm:$0xf]
        %v2361 = vld [vmem:[%s10 + $0x4] sm:$0xf]
        %v2362 = vld [vmem:[%s10 + $0x8] sm:$0xf]
        %v2363 = vld [vmem:[%s10 + $0xc] sm:$0xf]
        %v2364 = vld [vmem:[%s11] sm:$0x1]
        %v2365 = vpack.c.bf16 %v2359, %v2359
        %v2367 = vlaneseq
        %v2368 = vshrl.u32 %v2367, 7
        %v2369 = vsub.s32 0, %v2368
        %v2370 = vrot.slane %v2364, %v2369
        %v2376 = vunpack.c.l.b16 %v2360
        %v2377 = vunpack.c.l.b16 %v2361
        %v2378 = vunpack.c.l.b16 %v2362
        %v2379 = vunpack.c.l.b16 %v2363
        %v2380 = vpack.c.b16 %v2377, %v2376
        %v2381 = vpack.c.b16 %v2379, %v2378
        %v2385 = vsel %vm841, %v2365, 0
        %2387 = vmatprep.subr.bf16.mxu0 0
        %2388 = vmatpush1.bf16.msra.mxu0 %v2380
        %2389 = vmatprep.subr.bf16.mxu0 0
        %2390 = vmatpush1.bf16.msra.mxu0 %v2381
        %2391 = vmatprep.subr.bf16.mxu0 0
        %2392 = vmatpush1.bf16.msra.mxu0 0
        %2393 = vmatprep.subr.bf16.mxu0 0
        %2394 = vmatpush1.bf16.msra.mxu0 0
        %2395 = vmatprep.subr.bf16.mxu0 0
        %2396 = vmatpush1.bf16.msra.mxu0 0
        %2397 = vmatprep.subr.bf16.mxu0 0
        %2398 = vmatpush1.bf16.msra.mxu0 0
        %2399 = vmatprep.subr.bf16.mxu0 0
        %2400 = vmatpush1.bf16.msra.mxu0 0
        %2401 = vmatprep.subr.bf16.mxu0 0
        %2402 = vmatpush1.bf16.msra.mxu0 0
        %2403 = vmatprep.subr.bf16.mxu0 0
        %2404 = vmatpush1.bf16.msra.mxu0 0
        %2405 = vmatprep.subr.bf16.mxu0 0
        %2406 = vmatpush1.bf16.msra.mxu0 0
        %2407 = vmatprep.subr.bf16.mxu0 0
        %2408 = vmatpush1.bf16.msra.mxu0 0
        %2409 = vmatprep.subr.bf16.mxu0 0
        %2410 = vmatpush1.bf16.msra.mxu0 0
        %2411 = vmatprep.subr.bf16.mxu0 0
        %2412 = vmatpush1.bf16.msra.mxu0 0
        %2413 = vmatprep.subr.bf16.mxu0 0
        %2414 = vmatpush1.bf16.msra.mxu0 0
        %2415 = vmatprep.subr.bf16.mxu0 0
        %2416 = vmatpush1.bf16.msra.mxu0 0
        %2417 = vmatprep.subr.bf16.mxu0 0
        %2418 = vmatpush1.bf16.msra.mxu0 0
        %2419 = vmatprep.mubr.bf16.mxu0 0
        %2420 = vmatmul.mubr.bf16.gmra.mrb[0].mxu0 %v2385
        %v2421 = vpop.f32.mrb[0].mxu0
        %v2422 = vadd.f32 %v2370, %v2421
        %v2423 = vpop.f32.mrb[0].mxu0
        %v2424 = vpop.f32.mrb[0].mxu0
        %v2425 = vpop.f32.mrb[0].mxu0
        %2426 = vdwg.mxu0
        %v2427 = vadd.f32 %v1792, %v2422
        %v2428 = vld [vmem:[%s12] sm:$0x1]
        %v2429 = vld [vmem:[%s13] sm:$0x1]
        %v2430 = vsel %vm1795, %v2427, 0.0
        %2431 = vadd.xlane.f32.xlu0 %v2430
        %v2432 = vpop.xlane.xlu0 %2431
        %v2433 = vmul.f32 %v2432, %v1799
        %v2434 = vsub.f32 %v2427, %v2433
        %v2435 = vmul.f32 %v2434, %v2434
        %v2436 = vsel %vm1795, %v2435, 0.0
        %2437 = vadd.xlane.f32.xlu0 %v2436
        %v2438 = vpop.xlane.xlu0 %2437
        %v2439 = vmul.f32 %v2438, %v1799
        %v2440 = vadd.f32 %v2439, 1e-05
        %v2441 = vrsqrt.pop %v2440
        %v2442 = vmul.f32 %v2434, %v2441
        %v2444 = vlaneseq
        %v2445 = vshrl.u32 %v2444, 7
        %v2446 = vsub.s32 0, %v2445
        %v2447 = vrot.slane %v2428, %v2446
        %v2449 = vmul.f32 %v2442, %v2447
        %v2451 = vlaneseq
        %v2452 = vshrl.u32 %v2451, 7
        %v2453 = vsub.s32 0, %v2452
        %v2454 = vrot.slane %v2429, %v2453
        %v2456 = vadd.f32 %v2449, %v2454
        %v2457 = vld [vmem:[%s14] sm:$0xf]
        %v2458 = vld [vmem:[%s14 + $0x4] sm:$0xf]
        %v2459 = vld [vmem:[%s14 + $0x8] sm:$0xf]
        %v2460 = vld [vmem:[%s14 + $0xc] sm:$0xf]
        %v2461 = vld [vmem:[%s15] sm:$0x1]
        %v2462 = vpack.c.bf16 %v2456, %v2456
        %v2464 = vlaneseq
        %v2465 = vshrl.u32 %v2464, 7
        %v2466 = vsub.s32 0, %v2465
        %v2467 = vrot.slane %v2461, %v2466
        %v2473 = vunpack.c.l.b16 %v2457
        %v2474 = vunpack.c.l.b16 %v2458
        %v2475 = vunpack.c.l.b16 %v2459
        %v2476 = vunpack.c.l.b16 %v2460
        %v2477 = vpack.c.b16 %v2474, %v2473
        %v2478 = vpack.c.b16 %v2476, %v2475
        %v2482 = vsel %vm841, %v2462, 0
        %2484 = vmatprep.subr.bf16.mxu0 0
        %2485 = vmatpush1.bf16.msra.mxu0 %v2477
        %2486 = vmatprep.subr.bf16.mxu0 0
        %2487 = vmatpush1.bf16.msra.mxu0 %v2478
        %2488 = vmatprep.subr.bf16.mxu0 0
        %2489 = vmatpush1.bf16.msra.mxu0 0
        %2490 = vmatprep.subr.bf16.mxu0 0
        %2491 = vmatpush1.bf16.msra.mxu0 0
        %2492 = vmatprep.subr.bf16.mxu0 0
        %2493 = vmatpush1.bf16.msra.mxu0 0
        %2494 = vmatprep.subr.bf16.mxu0 0
        %2495 = vmatpush1.bf16.msra.mxu0 0
        %2496 = vmatprep.subr.bf16.mxu0 0
        %2497 = vmatpush1.bf16.msra.mxu0 0
        %2498 = vmatprep.subr.bf16.mxu0 0
        %2499 = vmatpush1.bf16.msra.mxu0 0
        %2500 = vmatprep.subr.bf16.mxu0 0
        %2501 = vmatpush1.bf16.msra.mxu0 0
        %2502 = vmatprep.subr.bf16.mxu0 0
        %2503 = vmatpush1.bf16.msra.mxu0 0
        %2504 = vmatprep.subr.bf16.mxu0 0
        %2505 = vmatpush1.bf16.msra.mxu0 0
        %2506 = vmatprep.subr.bf16.mxu0 0
        %2507 = vmatpush1.bf16.msra.mxu0 0
        %2508 = vmatprep.subr.bf16.mxu0 0
        %2509 = vmatpush1.bf16.msra.mxu0 0
        %2510 = vmatprep.subr.bf16.mxu0 0
        %2511 = vmatpush1.bf16.msra.mxu0 0
        %2512 = vmatprep.subr.bf16.mxu0 0
        %2513 = vmatpush1.bf16.msra.mxu0 0
        %2514 = vmatprep.subr.bf16.mxu0 0
        %2515 = vmatpush1.bf16.msra.mxu0 0
        %2516 = vmatprep.mubr.bf16.mxu0 0
        %2517 = vmatmul.mubr.bf16.gmra.mrb[0].mxu0 %v2482
        %v2518 = vpop.f32.mrb[0].mxu0
        %v2519 = vadd.f32 %v2467, %v2518
        %v2520 = vpop.f32.mrb[0].mxu0
        %v2521 = vpop.f32.mrb[0].mxu0
        %v2522 = vpop.f32.mrb[0].mxu0
        %2523 = vdwg.mxu0
        %v2524 = vmax.f32 %v2519, 0.0
        %v2525 = vld [vmem:[%s16] sm:$0xf]
        %v2526 = vld [vmem:[%s16 + $0x4] sm:$0xf]
        %v2527 = vld [vmem:[%s16 + $0x8] sm:$0xf]
        %v2528 = vld [vmem:[%s16 + $0xc] sm:$0xf]
        %v2529 = vld [vmem:[%s16 + $0x10] sm:$0xf]
        %v2530 = vld [vmem:[%s16 + $0x14] sm:$0xf]
        %v2531 = vld [vmem:[%s16 + $0x18] sm:$0xf]
        %v2532 = vld [vmem:[%s16 + $0x1c] sm:$0xf]
        %v2533 = vld [vmem:[%s17] sm:$0x1]
        %v2534 = vpack.c.bf16 %v2524, %v2524
        %v2536 = vlaneseq
        %v2537 = vshrl.u32 %v2536, 7
        %v2538 = vsub.s32 0, %v2537
        %v2539 = vrot.slane %v2533, %v2538
        %v2549 = vunpack.c.l.b16 %v2525
        %v2550 = vunpack.c.l.b16 %v2526
        %v2551 = vunpack.c.l.b16 %v2527
        %v2552 = vunpack.c.l.b16 %v2528
        %v2553 = vunpack.c.l.b16 %v2529
        %v2554 = vunpack.c.l.b16 %v2530
        %v2555 = vunpack.c.l.b16 %v2531
        %v2556 = vunpack.c.l.b16 %v2532
        %v2557 = vpack.c.b16 %v2550, %v2549
        %v2558 = vpack.c.b16 %v2552, %v2551
        %v2559 = vpack.c.b16 %v2554, %v2553
        %v2560 = vpack.c.b16 %v2556, %v2555
        %vm2565 = vcmask 523264
        %v2567 = vsel %vm2565, %v2534, 0
        %2569 = vmatprep.subr.bf16.mxu0 0
        %2570 = vmatpush1.bf16.msra.mxu0 %v2557
        %2571 = vmatprep.subr.bf16.mxu0 0
        %2572 = vmatpush1.bf16.msra.mxu0 %v2558
        %2573 = vmatprep.subr.bf16.mxu0 0
        %2574 = vmatpush1.bf16.msra.mxu0 %v2559
        %2575 = vmatprep.subr.bf16.mxu0 0
        %2576 = vmatpush1.bf16.msra.mxu0 %v2560
        %2577 = vmatprep.subr.bf16.mxu0 0
        %2578 = vmatpush1.bf16.msra.mxu0 0
        %2579 = vmatprep.subr.bf16.mxu0 0
        %2580 = vmatpush1.bf16.msra.mxu0 0
        %2581 = vmatprep.subr.bf16.mxu0 0
        %2582 = vmatpush1.bf16.msra.mxu0 0
        %2583 = vmatprep.subr.bf16.mxu0 0
        %2584 = vmatpush1.bf16.msra.mxu0 0
        %2585 = vmatprep.subr.bf16.mxu0 0
        %2586 = vmatpush1.bf16.msra.mxu0 0
        %2587 = vmatprep.subr.bf16.mxu0 0
        %2588 = vmatpush1.bf16.msra.mxu0 0
        %2589 = vmatprep.subr.bf16.mxu0 0
        %2590 = vmatpush1.bf16.msra.mxu0 0
        %2591 = vmatprep.subr.bf16.mxu0 0
        %2592 = vmatpush1.bf16.msra.mxu0 0
        %2593 = vmatprep.subr.bf16.mxu0 0
        %2594 = vmatpush1.bf16.msra.mxu0 0
        %2595 = vmatprep.subr.bf16.mxu0 0
        %2596 = vmatpush1.bf16.msra.mxu0 0
        %2597 = vmatprep.subr.bf16.mxu0 0
        %2598 = vmatpush1.bf16.msra.mxu0 0
        %2599 = vmatprep.subr.bf16.mxu0 0
        %2600 = vmatpush1.bf16.msra.mxu0 0
        %2601 = vmatprep.mubr.bf16.mxu0 0
        %2602 = vmatmul.mubr.bf16.gmra.mrb[0].mxu0 %v2567
        %v2603 = vpop.f32.mrb[0].mxu0
        %v2604 = vadd.f32 %v2539, %v2603
        %v2605 = vpop.f32.mrb[0].mxu0
        %v2606 = vpop.f32.mrb[0].mxu0
        %v2607 = vpop.f32.mrb[0].mxu0
        %2608 = vdwg.mxu0
        %v2609 = vadd.f32 %v2427, %v2604
        %s2610 = scalar_lea.vmem %s6, 1
        %v2611 = vld [vmem:[%s2610] sm:$0x1]
        %s2612 = scalar_lea.vmem %s7, 1
        %v2613 = vld [vmem:[%s2612] sm:$0x1]
        %v2614 = vsel %vm1795, %v2609, 0.0
        %2615 = vadd.xlane.f32.xlu0 %v2614
        %v2616 = vpop.xlane.xlu0 %2615
        %v2617 = vmul.f32 %v2616, %v1799
        %v2618 = vsub.f32 %v2609, %v2617
        %v2619 = vmul.f32 %v2618, %v2618
        %v2620 = vsel %vm1795, %v2619, 0.0
        %2621 = vadd.xlane.f32.xlu0 %v2620
        %v2622 = vpop.xlane.xlu0 %2621
        %v2623 = vmul.f32 %v2622, %v1799
        %v2624 = vadd.f32 %v2623, 1e-05
        %v2625 = vrsqrt.pop %v2624
        %v2626 = vmul.f32 %v2618, %v2625
        %v2628 = vlaneseq
        %v2629 = vshrl.u32 %v2628, 7
        %v2630 = vsub.s32 0, %v2629
        %v2631 = vrot.slane %v2611, %v2630
        %v2633 = vmul.f32 %v2626, %v2631
        %v2635 = vlaneseq
        %v2636 = vshrl.u32 %v2635, 7
        %v2637 = vsub.s32 0, %v2636
        %v2638 = vrot.slane %v2613, %v2637
        %v2640 = vadd.f32 %v2633, %v2638
        %s2641 = scalar_lea.vmem %s8, 16
        %v2642 = vld [vmem:[%s2641] sm:$0xf]
        %v2643 = vld [vmem:[%s2641 + $0x4] sm:$0xf]
        %v2644 = vld [vmem:[%s2641 + $0x8] sm:$0xf]
        %v2645 = vld [vmem:[%s2641 + $0xc] sm:$0xf]
        %s2646 = scalar_lea.vmem %s9, 1
        %v2647 = vld [vmem:[%s2646] sm:$0x1]
        %v2648 = vpack.c.bf16 %v2640, %v2640
        %v2650 = vlaneseq
        %v2651 = vshrl.u32 %v2650, 7
        %v2652 = vsub.s32 0, %v2651
        %v2653 = vrot.slane %v2647, %v2652
        %v2659 = vunpack.c.l.b16 %v2642
        %v2660 = vunpack.c.l.b16 %v2643
        %v2661 = vunpack.c.l.b16 %v2644
        %v2662 = vunpack.c.l.b16 %v2645
        %v2663 = vpack.c.b16 %v2660, %v2659
        %v2664 = vpack.c.b16 %v2662, %v2661
        %v2668 = vsel %vm841, %v2648, 0
        %2670 = vmatprep.subr.bf16.mxu0 0
        %2671 = vmatpush1.bf16.msra.mxu0 %v2663
        %2672 = vmatprep.subr.bf16.mxu0 0
        %2673 = vmatpush1.bf16.msra.mxu0 %v2664
        %2674 = vmatprep.subr.bf16.mxu0 0
        %2675 = vmatpush1.bf16.msra.mxu0 0
        %2676 = vmatprep.subr.bf16.mxu0 0
        %2677 = vmatpush1.bf16.msra.mxu0 0
        %2678 = vmatprep.subr.bf16.mxu0 0
        %2679 = vmatpush1.bf16.msra.mxu0 0
        %2680 = vmatprep.subr.bf16.mxu0 0
        %2681 = vmatpush1.bf16.msra.mxu0 0
        %2682 = vmatprep.subr.bf16.mxu0 0
        %2683 = vmatpush1.bf16.msra.mxu0 0
        %2684 = vmatprep.subr.bf16.mxu0 0
        %2685 = vmatpush1.bf16.msra.mxu0 0
        %2686 = vmatprep.subr.bf16.mxu0 0
        %2687 = vmatpush1.bf16.msra.mxu0 0
        %2688 = vmatprep.subr.bf16.mxu0 0
        %2689 = vmatpush1.bf16.msra.mxu0 0
        %2690 = vmatprep.subr.bf16.mxu0 0
        %2691 = vmatpush1.bf16.msra.mxu0 0
        %2692 = vmatprep.subr.bf16.mxu0 0
        %2693 = vmatpush1.bf16.msra.mxu0 0
        %2694 = vmatprep.subr.bf16.mxu0 0
        %2695 = vmatpush1.bf16.msra.mxu0 0
        %2696 = vmatprep.subr.bf16.mxu0 0
        %2697 = vmatpush1.bf16.msra.mxu0 0
        %2698 = vmatprep.subr.bf16.mxu0 0
        %2699 = vmatpush1.bf16.msra.mxu0 0
        %2700 = vmatprep.subr.bf16.mxu0 0
        %2701 = vmatpush1.bf16.msra.mxu0 0
        %2702 = vmatprep.mubr.bf16.mxu0 0
        %2703 = vmatmul.mubr.bf16.gmra.mrb[0].mxu0 %v2668
        %v2704 = vpop.f32.mrb[0].mxu0
        %v2705 = vadd.f32 %v2653, %v2704
        %v2706 = vpop.f32.mrb[0].mxu0
        %v2707 = vpop.f32.mrb[0].mxu0
        %v2708 = vpop.f32.mrb[0].mxu0
        %2709 = vdwg.mxu0
        %2711 = vrot.lane.b32.xlu0 %v2705, 120
        %v2712 = vpop.permute.xlu0 %2711
        %2714 = vrot.lane.b32.xlu0 %v2705, 112
        %v2715 = vpop.permute.xlu0 %2714
        %2717 = vrot.lane.b32.xlu0 %v2705, 104
        %v2718 = vpop.permute.xlu0 %2717
        %v2720 = vpack.c.bf16 %v2705, %v2705
        %v2721 = vpack.c.bf16 %v2712, %v2712
        %v2722 = vpack.c.bf16 %v2715, %v2715
        %v2723 = vpack.c.bf16 %v2718, %v2718
        %2725 = vrot.lane.b32.xlu0 %v2720, 96
        %v2726 = vpop.permute.xlu0 %2725
        %v2728 = vsel %vm655, %v2720, 0
        %v2731 = vsel %vm655, %v2726, 0
        %2733 = vmatprep.subr.bf16.mxu0 0
        %2734 = vmatpush1.bf16.xpose.msra.mxu0 %v2731
        %2735 = vmatprep.subr.bf16.mxu0 0
        %2736 = vmatpush1.bf16.xpose.msra.mxu0 0
        %2737 = vmatprep.subr.bf16.mxu0 0
        %2738 = vmatpush1.bf16.xpose.msra.mxu0 0
        %2739 = vmatprep.subr.bf16.mxu0 0
        %2740 = vmatpush1.bf16.xpose.msra.mxu0 0
        %2741 = vmatprep.subr.bf16.mxu0 0
        %2742 = vmatpush1.bf16.xpose.msra.mxu0 0
        %2743 = vmatprep.subr.bf16.mxu0 0
        %2744 = vmatpush1.bf16.xpose.msra.mxu0 0
        %2745 = vmatprep.subr.bf16.mxu0 0
        %2746 = vmatpush1.bf16.xpose.msra.mxu0 0
        %2747 = vmatprep.subr.bf16.mxu0 0
        %2748 = vmatpush1.bf16.xpose.msra.mxu0 0
        %2749 = vmatprep.subr.bf16.mxu0 0
        %2750 = vmatpush1.bf16.xpose.msra.mxu0 0
        %2751 = vmatprep.subr.bf16.mxu0 0
        %2752 = vmatpush1.bf16.xpose.msra.mxu0 0
        %2753 = vmatprep.subr.bf16.mxu0 0
        %2754 = vmatpush1.bf16.xpose.msra.mxu0 0
        %2755 = vmatprep.subr.bf16.mxu0 0
        %2756 = vmatpush1.bf16.xpose.msra.mxu0 0
        %2757 = vmatprep.subr.bf16.mxu0 0
        %2758 = vmatpush1.bf16.xpose.msra.mxu0 0
        %2759 = vmatprep.subr.bf16.mxu0 0
        %2760 = vmatpush1.bf16.xpose.msra.mxu0 0
        %2761 = vmatprep.subr.bf16.mxu0 0
        %2762 = vmatpush1.bf16.xpose.msra.mxu0 0
        %2763 = vmatprep.subr.bf16.mxu0 0
        %2764 = vmatpush1.bf16.xpose.msra.mxu0 0
        %2765 = vmatprep.mubr.bf16.mxu0 0
        %2766 = vmatmul.mubr.bf16.gmra.mrb[0].mxu0 %v2728
        %v2767 = vpop.f32.mrb[0].mxu0
        %v2768 = vadd.f32 0.0, %v2767
        %v2769 = vpop.f32.mrb[0].mxu0
        %v2770 = vpop.f32.mrb[0].mxu0
        %v2771 = vpop.f32.mrb[0].mxu0
        %2772 = vdwg.mxu0
        %2774 = vrot.lane.b32.xlu0 %v2721, 96
        %v2775 = vpop.permute.xlu0 %2774
        %v2777 = vsel %vm655, %v2721, 0
        %v2780 = vsel %vm655, %v2775, 0
        %2782 = vmatprep.subr.bf16.mxu0 0
        %2783 = vmatpush1.bf16.xpose.msra.mxu0 %v2780
        %2784 = vmatprep.subr.bf16.mxu0 0
        %2785 = vmatpush1.bf16.xpose.msra.mxu0 0
        %2786 = vmatprep.subr.bf16.mxu0 0
        %2787 = vmatpush1.bf16.xpose.msra.mxu0 0
        %2788 = vmatprep.subr.bf16.mxu0 0
        %2789 = vmatpush1.bf16.xpose.msra.mxu0 0
        %2790 = vmatprep.subr.bf16.mxu0 0
        %2791 = vmatpush1.bf16.xpose.msra.mxu0 0
        %2792 = vmatprep.subr.bf16.mxu0 0
        %2793 = vmatpush1.bf16.xpose.msra.mxu0 0
        %2794 = vmatprep.subr.bf16.mxu0 0
        %2795 = vmatpush1.bf16.xpose.msra.mxu0 0
        %2796 = vmatprep.subr.bf16.mxu0 0
        %2797 = vmatpush1.bf16.xpose.msra.mxu0 0
        %2798 = vmatprep.subr.bf16.mxu0 0
        %2799 = vmatpush1.bf16.xpose.msra.mxu0 0
        %2800 = vmatprep.subr.bf16.mxu0 0
        %2801 = vmatpush1.bf16.xpose.msra.mxu0 0
        %2802 = vmatprep.subr.bf16.mxu0 0
        %2803 = vmatpush1.bf16.xpose.msra.mxu0 0
        %2804 = vmatprep.subr.bf16.mxu0 0
        %2805 = vmatpush1.bf16.xpose.msra.mxu0 0
        %2806 = vmatprep.subr.bf16.mxu0 0
        %2807 = vmatpush1.bf16.xpose.msra.mxu0 0
        %2808 = vmatprep.subr.bf16.mxu0 0
        %2809 = vmatpush1.bf16.xpose.msra.mxu0 0
        %2810 = vmatprep.subr.bf16.mxu0 0
        %2811 = vmatpush1.bf16.xpose.msra.mxu0 0
        %2812 = vmatprep.subr.bf16.mxu0 0
        %2813 = vmatpush1.bf16.xpose.msra.mxu0 0
        %2814 = vmatprep.mubr.bf16.mxu0 0
        %2815 = vmatmul.mubr.bf16.gmra.mrb[0].mxu0 %v2777
        %v2816 = vpop.f32.mrb[0].mxu0
        %v2817 = vadd.f32 0.0, %v2816
        %v2818 = vpop.f32.mrb[0].mxu0
        %v2819 = vpop.f32.mrb[0].mxu0
        %v2820 = vpop.f32.mrb[0].mxu0
        %2821 = vdwg.mxu0
        %2823 = vrot.lane.b32.xlu0 %v2722, 96
        %v2824 = vpop.permute.xlu0 %2823
        %v2826 = vsel %vm655, %v2722, 0
        %v2829 = vsel %vm655, %v2824, 0
        %2831 = vmatprep.subr.bf16.mxu0 0
        %2832 = vmatpush1.bf16.xpose.msra.mxu0 %v2829
        %2833 = vmatprep.subr.bf16.mxu0 0
        %2834 = vmatpush1.bf16.xpose.msra.mxu0 0
        %2835 = vmatprep.subr.bf16.mxu0 0
        %2836 = vmatpush1.bf16.xpose.msra.mxu0 0
        %2837 = vmatprep.subr.bf16.mxu0 0
        %2838 = vmatpush1.bf16.xpose.msra.mxu0 0
        %2839 = vmatprep.subr.bf16.mxu0 0
        %2840 = vmatpush1.bf16.xpose.msra.mxu0 0
        %2841 = vmatprep.subr.bf16.mxu0 0
        %2842 = vmatpush1.bf16.xpose.msra.mxu0 0
        %2843 = vmatprep.subr.bf16.mxu0 0
        %2844 = vmatpush1.bf16.xpose.msra.mxu0 0
        %2845 = vmatprep.subr.bf16.mxu0 0
        %2846 = vmatpush1.bf16.xpose.msra.mxu0 0
        %2847 = vmatprep.subr.bf16.mxu0 0
        %2848 = vmatpush1.bf16.xpose.msra.mxu0 0
        %2849 = vmatprep.subr.bf16.mxu0 0
        %2850 = vmatpush1.bf16.xpose.msra.mxu0 0
        %2851 = vmatprep.subr.bf16.mxu0 0
        %2852 = vmatpush1.bf16.xpose.msra.mxu0 0
        %2853 = vmatprep.subr.bf16.mxu0 0
        %2854 = vmatpush1.bf16.xpose.msra.mxu0 0
        %2855 = vmatprep.subr.bf16.mxu0 0
        %2856 = vmatpush1.bf16.xpose.msra.mxu0 0
        %2857 = vmatprep.subr.bf16.mxu0 0
        %2858 = vmatpush1.bf16.xpose.msra.mxu0 0
        %2859 = vmatprep.subr.bf16.mxu0 0
        %2860 = vmatpush1.bf16.xpose.msra.mxu0 0
        %2861 = vmatprep.subr.bf16.mxu0 0
        %2862 = vmatpush1.bf16.xpose.msra.mxu0 0
        %2863 = vmatprep.mubr.bf16.mxu0 0
        %2864 = vmatmul.mubr.bf16.gmra.mrb[0].mxu0 %v2826
        %v2865 = vpop.f32.mrb[0].mxu0
        %v2866 = vadd.f32 0.0, %v2865
        %v2867 = vpop.f32.mrb[0].mxu0
        %v2868 = vpop.f32.mrb[0].mxu0
        %v2869 = vpop.f32.mrb[0].mxu0
        %2870 = vdwg.mxu0
        %2872 = vrot.lane.b32.xlu0 %v2723, 96
        %v2873 = vpop.permute.xlu0 %2872
        %v2875 = vsel %vm655, %v2723, 0
        %v2878 = vsel %vm655, %v2873, 0
        %2880 = vmatprep.subr.bf16.mxu0 0
        %2881 = vmatpush1.bf16.xpose.msra.mxu0 %v2878
        %2882 = vmatprep.subr.bf16.mxu0 0
        %2883 = vmatpush1.bf16.xpose.msra.mxu0 0
        %2884 = vmatprep.subr.bf16.mxu0 0
        %2885 = vmatpush1.bf16.xpose.msra.mxu0 0
        %2886 = vmatprep.subr.bf16.mxu0 0
        %2887 = vmatpush1.bf16.xpose.msra.mxu0 0
        %2888 = vmatprep.subr.bf16.mxu0 0
        %2889 = vmatpush1.bf16.xpose.msra.mxu0 0
        %2890 = vmatprep.subr.bf16.mxu0 0
        %2891 = vmatpush1.bf16.xpose.msra.mxu0 0
        %2892 = vmatprep.subr.bf16.mxu0 0
        %2893 = vmatpush1.bf16.xpose.msra.mxu0 0
        %2894 = vmatprep.subr.bf16.mxu0 0
        %2895 = vmatpush1.bf16.xpose.msra.mxu0 0
        %2896 = vmatprep.subr.bf16.mxu0 0
        %2897 = vmatpush1.bf16.xpose.msra.mxu0 0
        %2898 = vmatprep.subr.bf16.mxu0 0
        %2899 = vmatpush1.bf16.xpose.msra.mxu0 0
        %2900 = vmatprep.subr.bf16.mxu0 0
        %2901 = vmatpush1.bf16.xpose.msra.mxu0 0
        %2902 = vmatprep.subr.bf16.mxu0 0
        %2903 = vmatpush1.bf16.xpose.msra.mxu0 0
        %2904 = vmatprep.subr.bf16.mxu0 0
        %2905 = vmatpush1.bf16.xpose.msra.mxu0 0
        %2906 = vmatprep.subr.bf16.mxu0 0
        %2907 = vmatpush1.bf16.xpose.msra.mxu0 0
        %2908 = vmatprep.subr.bf16.mxu0 0
        %2909 = vmatpush1.bf16.xpose.msra.mxu0 0
        %2910 = vmatprep.subr.bf16.mxu0 0
        %2911 = vmatpush1.bf16.xpose.msra.mxu0 0
        %2912 = vmatprep.mubr.bf16.mxu0 0
        %2913 = vmatmul.mubr.bf16.gmra.mrb[0].mxu0 %v2875
        %v2914 = vpop.f32.mrb[0].mxu0
        %v2915 = vadd.f32 0.0, %v2914
        %v2916 = vpop.f32.mrb[0].mxu0
        %v2917 = vpop.f32.mrb[0].mxu0
        %v2918 = vpop.f32.mrb[0].mxu0
        %2919 = vdwg.mxu0
        %v2920 = vsel %vm2101, %v2768, -inf
        %2921 = vmax.xlane.f32.xlu0 %v2920
        %v2922 = vpop.xlane.xlu0 %2921
        %v2923 = vsel %vm2101, %v2817, -inf
        %2924 = vmax.xlane.f32.xlu0 %v2923
        %v2925 = vpop.xlane.xlu0 %2924
        %v2926 = vsel %vm2101, %v2866, -inf
        %2927 = vmax.xlane.f32.xlu0 %v2926
        %v2928 = vpop.xlane.xlu0 %2927
        %v2929 = vsel %vm2101, %v2915, -inf
        %2930 = vmax.xlane.f32.xlu0 %v2929
        %v2931 = vpop.xlane.xlu0 %2930
        %v2932 = vsub.f32 %v2768, %v2922
        %v2933 = vsub.f32 %v2817, %v2925
        %v2934 = vsub.f32 %v2866, %v2928
        %v2935 = vsub.f32 %v2915, %v2931
        %v2936 = vmul.f32 %v2932, 1.442695
        %v2937 = vpow.pop %v2936
        %v2938 = vmul.f32 %v2933, 1.442695
        %v2939 = vpow.pop %v2938
        %v2940 = vmul.f32 %v2934, 1.442695
        %v2941 = vpow.pop %v2940
        %v2942 = vmul.f32 %v2935, 1.442695
        %v2943 = vpow.pop %v2942
        %v2944 = vsel %vm2101, %v2937, 0.0
        %2945 = vadd.xlane.f32.xlu0 %v2944
        %v2946 = vpop.xlane.xlu0 %2945
        %v2947 = vsel %vm2101, %v2939, 0.0
        %2948 = vadd.xlane.f32.xlu0 %v2947
        %v2949 = vpop.xlane.xlu0 %2948
        %v2950 = vsel %vm2101, %v2941, 0.0
        %2951 = vadd.xlane.f32.xlu0 %v2950
        %v2952 = vpop.xlane.xlu0 %2951
        %v2953 = vsel %vm2101, %v2943, 0.0
        %2954 = vadd.xlane.f32.xlu0 %v2953
        %v2955 = vpop.xlane.xlu0 %2954
        %v2956 = vrcp.pop %v2946
        %v2957 = vmul.f32 %v2937, %v2956
        %v2958 = vrcp.pop %v2949
        %v2959 = vmul.f32 %v2939, %v2958
        %v2960 = vrcp.pop %v2952
        %v2961 = vmul.f32 %v2941, %v2960
        %v2962 = vrcp.pop %v2955
        %v2963 = vmul.f32 %v2943, %v2962
        %v2964 = vpack.c.bf16 %v2957, %v2957
        %v2965 = vpack.c.bf16 %v2959, %v2959
        %v2966 = vpack.c.bf16 %v2961, %v2961
        %v2967 = vpack.c.bf16 %v2963, %v2963
        %2968 = vrot.lane.b32.xlu0 %v2720, 64
        %v2969 = vpop.permute.xlu0 %2968
        %v2971 = vsel %vm2152, %v2964, 0
        %v2974 = vsel %vm2156, %v2969, 0
        %2976 = vmatprep.subr.bf16.mxu0 0
        %2977 = vmatpush1.bf16.msra.mxu0 %v2974
        %2978 = vmatprep.subr.bf16.mxu0 0
        %2979 = vmatpush1.bf16.msra.mxu0 0
        %2980 = vmatprep.subr.bf16.mxu0 0
        %2981 = vmatpush1.bf16.msra.mxu0 0
        %2982 = vmatprep.subr.bf16.mxu0 0
        %2983 = vmatpush1.bf16.msra.mxu0 0
        %2984 = vmatprep.subr.bf16.mxu0 0
        %2985 = vmatpush1.bf16.msra.mxu0 0
        %2986 = vmatprep.subr.bf16.mxu0 0
        %2987 = vmatpush1.bf16.msra.mxu0 0
        %2988 = vmatprep.subr.bf16.mxu0 0
        %2989 = vmatpush1.bf16.msra.mxu0 0
        %2990 = vmatprep.subr.bf16.mxu0 0
        %2991 = vmatpush1.bf16.msra.mxu0 0
        %2992 = vmatprep.subr.bf16.mxu0 0
        %2993 = vmatpush1.bf16.msra.mxu0 0
        %2994 = vmatprep.subr.bf16.mxu0 0
        %2995 = vmatpush1.bf16.msra.mxu0 0
        %2996 = vmatprep.subr.bf16.mxu0 0
        %2997 = vmatpush1.bf16.msra.mxu0 0
        %2998 = vmatprep.subr.bf16.mxu0 0
        %2999 = vmatpush1.bf16.msra.mxu0 0
        %3000 = vmatprep.subr.bf16.mxu0 0
        %3001 = vmatpush1.bf16.msra.mxu0 0
        %3002 = vmatprep.subr.bf16.mxu0 0
        %3003 = vmatpush1.bf16.msra.mxu0 0
        %3004 = vmatprep.subr.bf16.mxu0 0
        %3005 = vmatpush1.bf16.msra.mxu0 0
        %3006 = vmatprep.subr.bf16.mxu0 0
        %3007 = vmatpush1.bf16.msra.mxu0 0
        %3008 = vmatprep.mubr.bf16.mxu0 0
        %3009 = vmatmul.mubr.bf16.gmra.mrb[0].mxu0 %v2971
        %v3010 = vpop.f32.mrb[0].mxu0
        %v3011 = vadd.f32 0.0, %v3010
        %v3012 = vpop.f32.mrb[0].mxu0
        %v3013 = vpop.f32.mrb[0].mxu0
        %v3014 = vpop.f32.mrb[0].mxu0
        %3015 = vdwg.mxu0
        %3016 = vrot.lane.b32.xlu0 %v2721, 64
        %v3017 = vpop.permute.xlu0 %3016
        %v3019 = vsel %vm2152, %v2965, 0
        %v3022 = vsel %vm2156, %v3017, 0
        %3024 = vmatprep.subr.bf16.mxu0 0
        %3025 = vmatpush1.bf16.msra.mxu0 %v3022
        %3026 = vmatprep.subr.bf16.mxu0 0
        %3027 = vmatpush1.bf16.msra.mxu0 0
        %3028 = vmatprep.subr.bf16.mxu0 0
        %3029 = vmatpush1.bf16.msra.mxu0 0
        %3030 = vmatprep.subr.bf16.mxu0 0
        %3031 = vmatpush1.bf16.msra.mxu0 0
        %3032 = vmatprep.subr.bf16.mxu0 0
        %3033 = vmatpush1.bf16.msra.mxu0 0
        %3034 = vmatprep.subr.bf16.mxu0 0
        %3035 = vmatpush1.bf16.msra.mxu0 0
        %3036 = vmatprep.subr.bf16.mxu0 0
        %3037 = vmatpush1.bf16.msra.mxu0 0
        %3038 = vmatprep.subr.bf16.mxu0 0
        %3039 = vmatpush1.bf16.msra.mxu0 0
        %3040 = vmatprep.subr.bf16.mxu0 0
        %3041 = vmatpush1.bf16.msra.mxu0 0
        %3042 = vmatprep.subr.bf16.mxu0 0
        %3043 = vmatpush1.bf16.msra.mxu0 0
        %3044 = vmatprep.subr.bf16.mxu0 0
        %3045 = vmatpush1.bf16.msra.mxu0 0
        %3046 = vmatprep.subr.bf16.mxu0 0
        %3047 = vmatpush1.bf16.msra.mxu0 0
        %3048 = vmatprep.subr.bf16.mxu0 0
        %3049 = vmatpush1.bf16.msra.mxu0 0
        %3050 = vmatprep.subr.bf16.mxu0 0
        %3051 = vmatpush1.bf16.msra.mxu0 0
        %3052 = vmatprep.subr.bf16.mxu0 0
        %3053 = vmatpush1.bf16.msra.mxu0 0
        %3054 = vmatprep.subr.bf16.mxu0 0
        %3055 = vmatpush1.bf16.msra.mxu0 0
        %3056 = vmatprep.mubr.bf16.mxu0 0
        %3057 = vmatmul.mubr.bf16.gmra.mrb[0].mxu0 %v3019
        %v3058 = vpop.f32.mrb[0].mxu0
        %v3059 = vadd.f32 0.0, %v3058
        %v3060 = vpop.f32.mrb[0].mxu0
        %v3061 = vpop.f32.mrb[0].mxu0
        %v3062 = vpop.f32.mrb[0].mxu0
        %3063 = vdwg.mxu0
        %3064 = vrot.lane.b32.xlu0 %v2722, 64
        %v3065 = vpop.permute.xlu0 %3064
        %v3067 = vsel %vm2152, %v2966, 0
        %v3070 = vsel %vm2156, %v3065, 0
        %3072 = vmatprep.subr.bf16.mxu0 0
        %3073 = vmatpush1.bf16.msra.mxu0 %v3070
        %3074 = vmatprep.subr.bf16.mxu0 0
        %3075 = vmatpush1.bf16.msra.mxu0 0
        %3076 = vmatprep.subr.bf16.mxu0 0
        %3077 = vmatpush1.bf16.msra.mxu0 0
        %3078 = vmatprep.subr.bf16.mxu0 0
        %3079 = vmatpush1.bf16.msra.mxu0 0
        %3080 = vmatprep.subr.bf16.mxu0 0
        %3081 = vmatpush1.bf16.msra.mxu0 0
        %3082 = vmatprep.subr.bf16.mxu0 0
        %3083 = vmatpush1.bf16.msra.mxu0 0
        %3084 = vmatprep.subr.bf16.mxu0 0
        %3085 = vmatpush1.bf16.msra.mxu0 0
        %3086 = vmatprep.subr.bf16.mxu0 0
        %3087 = vmatpush1.bf16.msra.mxu0 0
        %3088 = vmatprep.subr.bf16.mxu0 0
        %3089 = vmatpush1.bf16.msra.mxu0 0
        %3090 = vmatprep.subr.bf16.mxu0 0
        %3091 = vmatpush1.bf16.msra.mxu0 0
        %3092 = vmatprep.subr.bf16.mxu0 0
        %3093 = vmatpush1.bf16.msra.mxu0 0
        %3094 = vmatprep.subr.bf16.mxu0 0
        %3095 = vmatpush1.bf16.msra.mxu0 0
        %3096 = vmatprep.subr.bf16.mxu0 0
        %3097 = vmatpush1.bf16.msra.mxu0 0
        %3098 = vmatprep.subr.bf16.mxu0 0
        %3099 = vmatpush1.bf16.msra.mxu0 0
        %3100 = vmatprep.subr.bf16.mxu0 0
        %3101 = vmatpush1.bf16.msra.mxu0 0
        %3102 = vmatprep.subr.bf16.mxu0 0
        %3103 = vmatpush1.bf16.msra.mxu0 0
        %3104 = vmatprep.mubr.bf16.mxu0 0
        %3105 = vmatmul.mubr.bf16.gmra.mrb[0].mxu0 %v3067
        %v3106 = vpop.f32.mrb[0].mxu0
        %v3107 = vadd.f32 0.0, %v3106
        %v3108 = vpop.f32.mrb[0].mxu0
        %v3109 = vpop.f32.mrb[0].mxu0
        %v3110 = vpop.f32.mrb[0].mxu0
        %3111 = vdwg.mxu0
        %3112 = vrot.lane.b32.xlu0 %v2723, 64
        %v3113 = vpop.permute.xlu0 %3112
        %v3115 = vsel %vm2152, %v2967, 0
        %v3118 = vsel %vm2156, %v3113, 0
        %3120 = vmatprep.subr.bf16.mxu0 0
        %3121 = vmatpush1.bf16.msra.mxu0 %v3118
        %3122 = vmatprep.subr.bf16.mxu0 0
        %3123 = vmatpush1.bf16.msra.mxu0 0
        %3124 = vmatprep.subr.bf16.mxu0 0
        %3125 = vmatpush1.bf16.msra.mxu0 0
        %3126 = vmatprep.subr.bf16.mxu0 0
        %3127 = vmatpush1.bf16.msra.mxu0 0
        %3128 = vmatprep.subr.bf16.mxu0 0
        %3129 = vmatpush1.bf16.msra.mxu0 0
        %3130 = vmatprep.subr.bf16.mxu0 0
        %3131 = vmatpush1.bf16.msra.mxu0 0
        %3132 = vmatprep.subr.bf16.mxu0 0
        %3133 = vmatpush1.bf16.msra.mxu0 0
        %3134 = vmatprep.subr.bf16.mxu0 0
        %3135 = vmatpush1.bf16.msra.mxu0 0
        %3136 = vmatprep.subr.bf16.mxu0 0
        %3137 = vmatpush1.bf16.msra.mxu0 0
        %3138 = vmatprep.subr.bf16.mxu0 0
        %3139 = vmatpush1.bf16.msra.mxu0 0
        %3140 = vmatprep.subr.bf16.mxu0 0
        %3141 = vmatpush1.bf16.msra.mxu0 0
        %3142 = vmatprep.subr.bf16.mxu0 0
        %3143 = vmatpush1.bf16.msra.mxu0 0
        %3144 = vmatprep.subr.bf16.mxu0 0
        %3145 = vmatpush1.bf16.msra.mxu0 0
        %3146 = vmatprep.subr.bf16.mxu0 0
        %3147 = vmatpush1.bf16.msra.mxu0 0
        %3148 = vmatprep.subr.bf16.mxu0 0
        %3149 = vmatpush1.bf16.msra.mxu0 0
        %3150 = vmatprep.subr.bf16.mxu0 0
        %3151 = vmatpush1.bf16.msra.mxu0 0
        %3152 = vmatprep.mubr.bf16.mxu0 0
        %3153 = vmatmul.mubr.bf16.gmra.mrb[0].mxu0 %v3115
        %v3154 = vpop.f32.mrb[0].mxu0
        %v3155 = vadd.f32 0.0, %v3154
        %v3156 = vpop.f32.mrb[0].mxu0
        %v3157 = vpop.f32.mrb[0].mxu0
        %v3158 = vpop.f32.mrb[0].mxu0
        %3159 = vdwg.mxu0
        %3161 = vrot.lane.b32.xlu0 %v3059, 8
        %v3162 = vpop.permute.xlu0 %3161
        %3165 = vrot.lane.b32.xlu0 %v3107, 16
        %v3166 = vpop.permute.xlu0 %3165
        %3169 = vrot.lane.b32.xlu0 %v3155, 24
        %v3170 = vpop.permute.xlu0 %3169
        %v3172 = vsel %vm655, %v3011, %v3162
        %v3173 = vsel %vm735, %v3172, %v3166
        %v3174 = vsel %vm2358, %v3173, %v3170
        %s3175 = scalar_lea.vmem %s10, 16
        %v3176 = vld [vmem:[%s3175] sm:$0xf]
        %v3177 = vld [vmem:[%s3175 + $0x4] sm:$0xf]
        %v3178 = vld [vmem:[%s3175 + $0x8] sm:$0xf]
        %v3179 = vld [vmem:[%s3175 + $0xc] sm:$0xf]
        %s3180 = scalar_lea.vmem %s11, 1
        %v3181 = vld [vmem:[%s3180] sm:$0x1]
        %v3182 = vpack.c.bf16 %v3174, %v3174
        %v3184 = vlaneseq
        %v3185 = vshrl.u32 %v3184, 7
        %v3186 = vsub.s32 0, %v3185
        %v3187 = vrot.slane %v3181, %v3186
        %v3193 = vunpack.c.l.b16 %v3176
        %v3194 = vunpack.c.l.b16 %v3177
        %v3195 = vunpack.c.l.b16 %v3178
        %v3196 = vunpack.c.l.b16 %v3179
        %v3197 = vpack.c.b16 %v3194, %v3193
        %v3198 = vpack.c.b16 %v3196, %v3195
        %v3202 = vsel %vm841, %v3182, 0
        %3204 = vmatprep.subr.bf16.mxu0 0
        %3205 = vmatpush1.bf16.msra.mxu0 %v3197
        %3206 = vmatprep.subr.bf16.mxu0 0
        %3207 = vmatpush1.bf16.msra.mxu0 %v3198
        %3208 = vmatprep.subr.bf16.mxu0 0
        %3209 = vmatpush1.bf16.msra.mxu0 0
        %3210 = vmatprep.subr.bf16.mxu0 0
        %3211 = vmatpush1.bf16.msra.mxu0 0
        %3212 = vmatprep.subr.bf16.mxu0 0
        %3213 = vmatpush1.bf16.msra.mxu0 0
        %3214 = vmatprep.subr.bf16.mxu0 0
        %3215 = vmatpush1.bf16.msra.mxu0 0
        %3216 = vmatprep.subr.bf16.mxu0 0
        %3217 = vmatpush1.bf16.msra.mxu0 0
        %3218 = vmatprep.subr.bf16.mxu0 0
        %3219 = vmatpush1.bf16.msra.mxu0 0
        %3220 = vmatprep.subr.bf16.mxu0 0
        %3221 = vmatpush1.bf16.msra.mxu0 0
        %3222 = vmatprep.subr.bf16.mxu0 0
        %3223 = vmatpush1.bf16.msra.mxu0 0
        %3224 = vmatprep.subr.bf16.mxu0 0
        %3225 = vmatpush1.bf16.msra.mxu0 0
        %3226 = vmatprep.subr.bf16.mxu0 0
        %3227 = vmatpush1.bf16.msra.mxu0 0
        %3228 = vmatprep.subr.bf16.mxu0 0
        %3229 = vmatpush1.bf16.msra.mxu0 0
        %3230 = vmatprep.subr.bf16.mxu0 0
        %3231 = vmatpush1.bf16.msra.mxu0 0
        %3232 = vmatprep.subr.bf16.mxu0 0
        %3233 = vmatpush1.bf16.msra.mxu0 0
        %3234 = vmatprep.subr.bf16.mxu0 0
        %3235 = vmatpush1.bf16.msra.mxu0 0
        %3236 = vmatprep.mubr.bf16.mxu0 0
        %3237 = vmatmul.mubr.bf16.gmra.mrb[0].mxu0 %v3202
        %v3238 = vpop.f32.mrb[0].mxu0
        %v3239 = vadd.f32 %v3187, %v3238
        %v3240 = vpop.f32.mrb[0].mxu0
        %v3241 = vpop.f32.mrb[0].mxu0
        %v3242 = vpop.f32.mrb[0].mxu0
        %3243 = vdwg.mxu0
        %v3244 = vadd.f32 %v2609, %v3239
        %s3245 = scalar_lea.vmem %s12, 1
        %v3246 = vld [vmem:[%s3245] sm:$0x1]
        %s3247 = scalar_lea.vmem %s13, 1
        %v3248 = vld [vmem:[%s3247] sm:$0x1]
        %v3249 = vsel %vm1795, %v3244, 0.0
        %3250 = vadd.xlane.f32.xlu0 %v3249
        %v3251 = vpop.xlane.xlu0 %3250
        %v3252 = vmul.f32 %v3251, %v1799
        %v3253 = vsub.f32 %v3244, %v3252
        %v3254 = vmul.f32 %v3253, %v3253
        %v3255 = vsel %vm1795, %v3254, 0.0
        %3256 = vadd.xlane.f32.xlu0 %v3255
        %v3257 = vpop.xlane.xlu0 %3256
        %v3258 = vmul.f32 %v3257, %v1799
        %v3259 = vadd.f32 %v3258, 1e-05
        %v3260 = vrsqrt.pop %v3259
        %v3261 = vmul.f32 %v3253, %v3260
        %v3263 = vlaneseq
        %v3264 = vshrl.u32 %v3263, 7
        %v3265 = vsub.s32 0, %v3264
        %v3266 = vrot.slane %v3246, %v3265
        %v3268 = vmul.f32 %v3261, %v3266
        %v3270 = vlaneseq
        %v3271 = vshrl.u32 %v3270, 7
        %v3272 = vsub.s32 0, %v3271
        %v3273 = vrot.slane %v3248, %v3272
        %v3275 = vadd.f32 %v3268, %v3273
        %s3276 = scalar_lea.vmem %s14, 16
        %v3277 = vld [vmem:[%s3276] sm:$0xf]
        %v3278 = vld [vmem:[%s3276 + $0x4] sm:$0xf]
        %v3279 = vld [vmem:[%s3276 + $0x8] sm:$0xf]
        %v3280 = vld [vmem:[%s3276 + $0xc] sm:$0xf]
        %s3281 = scalar_lea.vmem %s15, 1
        %v3282 = vld [vmem:[%s3281] sm:$0x1]
        %v3283 = vpack.c.bf16 %v3275, %v3275
        %v3285 = vlaneseq
        %v3286 = vshrl.u32 %v3285, 7
        %v3287 = vsub.s32 0, %v3286
        %v3288 = vrot.slane %v3282, %v3287
        %v3294 = vunpack.c.l.b16 %v3277
        %v3295 = vunpack.c.l.b16 %v3278
        %v3296 = vunpack.c.l.b16 %v3279
        %v3297 = vunpack.c.l.b16 %v3280
        %v3298 = vpack.c.b16 %v3295, %v3294
        %v3299 = vpack.c.b16 %v3297, %v3296
        %v3303 = vsel %vm841, %v3283, 0
        %3305 = vmatprep.subr.bf16.mxu0 0
        %3306 = vmatpush1.bf16.msra.mxu0 %v3298
        %3307 = vmatprep.subr.bf16.mxu0 0
        %3308 = vmatpush1.bf16.msra.mxu0 %v3299
        %3309 = vmatprep.subr.bf16.mxu0 0
        %3310 = vmatpush1.bf16.msra.mxu0 0
        %3311 = vmatprep.subr.bf16.mxu0 0
        %3312 = vmatpush1.bf16.msra.mxu0 0
        %3313 = vmatprep.subr.bf16.mxu0 0
        %3314 = vmatpush1.bf16.msra.mxu0 0
        %3315 = vmatprep.subr.bf16.mxu0 0
        %3316 = vmatpush1.bf16.msra.mxu0 0
        %3317 = vmatprep.subr.bf16.mxu0 0
        %3318 = vmatpush1.bf16.msra.mxu0 0
        %3319 = vmatprep.subr.bf16.mxu0 0
        %3320 = vmatpush1.bf16.msra.mxu0 0
        %3321 = vmatprep.subr.bf16.mxu0 0
        %3322 = vmatpush1.bf16.msra.mxu0 0
        %3323 = vmatprep.subr.bf16.mxu0 0
        %3324 = vmatpush1.bf16.msra.mxu0 0
        %3325 = vmatprep.subr.bf16.mxu0 0
        %3326 = vmatpush1.bf16.msra.mxu0 0
        %3327 = vmatprep.subr.bf16.mxu0 0
        %3328 = vmatpush1.bf16.msra.mxu0 0
        %3329 = vmatprep.subr.bf16.mxu0 0
        %3330 = vmatpush1.bf16.msra.mxu0 0
        %3331 = vmatprep.subr.bf16.mxu0 0
        %3332 = vmatpush1.bf16.msra.mxu0 0
        %3333 = vmatprep.subr.bf16.mxu0 0
        %3334 = vmatpush1.bf16.msra.mxu0 0
        %3335 = vmatprep.subr.bf16.mxu0 0
        %3336 = vmatpush1.bf16.msra.mxu0 0
        %3337 = vmatprep.mubr.bf16.mxu0 0
        %3338 = vmatmul.mubr.bf16.gmra.mrb[0].mxu0 %v3303
        %v3339 = vpop.f32.mrb[0].mxu0
        %v3340 = vadd.f32 %v3288, %v3339
        %v3341 = vpop.f32.mrb[0].mxu0
        %v3342 = vpop.f32.mrb[0].mxu0
        %v3343 = vpop.f32.mrb[0].mxu0
        %3344 = vdwg.mxu0
        %v3345 = vmax.f32 %v3340, 0.0
        %s3346 = scalar_lea.vmem %s16, 32
        %v3347 = vld [vmem:[%s3346] sm:$0xf]
        %v3348 = vld [vmem:[%s3346 + $0x4] sm:$0xf]
        %v3349 = vld [vmem:[%s3346 + $0x8] sm:$0xf]
        %v3350 = vld [vmem:[%s3346 + $0xc] sm:$0xf]
        %v3351 = vld [vmem:[%s3346 + $0x10] sm:$0xf]
        %v3352 = vld [vmem:[%s3346 + $0x14] sm:$0xf]
        %v3353 = vld [vmem:[%s3346 + $0x18] sm:$0xf]
        %v3354 = vld [vmem:[%s3346 + $0x1c] sm:$0xf]
        %s3355 = scalar_lea.vmem %s17, 1
        %v3356 = vld [vmem:[%s3355] sm:$0x1]
        %v3357 = vpack.c.bf16 %v3345, %v3345
        %v3359 = vlaneseq
        %v3360 = vshrl.u32 %v3359, 7
        %v3361 = vsub.s32 0, %v3360
        %v3362 = vrot.slane %v3356, %v3361
        %v3372 = vunpack.c.l.b16 %v3347
        %v3373 = vunpack.c.l.b16 %v3348
        %v3374 = vunpack.c.l.b16 %v3349
        %v3375 = vunpack.c.l.b16 %v3350
        %v3376 = vunpack.c.l.b16 %v3351
        %v3377 = vunpack.c.l.b16 %v3352
        %v3378 = vunpack.c.l.b16 %v3353
        %v3379 = vunpack.c.l.b16 %v3354
        %v3380 = vpack.c.b16 %v3373, %v3372
        %v3381 = vpack.c.b16 %v3375, %v3374
        %v3382 = vpack.c.b16 %v3377, %v3376
        %v3383 = vpack.c.b16 %v3379, %v3378
        %v3389 = vsel %vm2565, %v3357, 0
        %3391 = vmatprep.subr.bf16.mxu0 0
        %3392 = vmatpush1.bf16.msra.mxu0 %v3380
        %3393 = vmatprep.subr.bf16.mxu0 0
        %3394 = vmatpush1.bf16.msra.mxu0 %v3381
        %3395 = vmatprep.subr.bf16.mxu0 0
        %3396 = vmatpush1.bf16.msra.mxu0 %v3382
        %3397 = vmatprep.subr.bf16.mxu0 0
        %3398 = vmatpush1.bf16.msra.mxu0 %v3383
        %3399 = vmatprep.subr.bf16.mxu0 0
        %3400 = vmatpush1.bf16.msra.mxu0 0
        %3401 = vmatprep.subr.bf16.mxu0 0
        %3402 = vmatpush1.bf16.msra.mxu0 0
        %3403 = vmatprep.subr.bf16.mxu0 0
        %3404 = vmatpush1.bf16.msra.mxu0 0
        %3405 = vmatprep.subr.bf16.mxu0 0
        %3406 = vmatpush1.bf16.msra.mxu0 0
        %3407 = vmatprep.subr.bf16.mxu0 0
        %3408 = vmatpush1.bf16.msra.mxu0 0
        %3409 = vmatprep.subr.bf16.mxu0 0
        %3410 = vmatpush1.bf16.msra.mxu0 0
        %3411 = vmatprep.subr.bf16.mxu0 0
        %3412 = vmatpush1.bf16.msra.mxu0 0
        %3413 = vmatprep.subr.bf16.mxu0 0
        %3414 = vmatpush1.bf16.msra.mxu0 0
        %3415 = vmatprep.subr.bf16.mxu0 0
        %3416 = vmatpush1.bf16.msra.mxu0 0
        %3417 = vmatprep.subr.bf16.mxu0 0
        %3418 = vmatpush1.bf16.msra.mxu0 0
        %3419 = vmatprep.subr.bf16.mxu0 0
        %3420 = vmatpush1.bf16.msra.mxu0 0
        %3421 = vmatprep.subr.bf16.mxu0 0
        %3422 = vmatpush1.bf16.msra.mxu0 0
        %3423 = vmatprep.mubr.bf16.mxu0 0
        %3424 = vmatmul.mubr.bf16.gmra.mrb[0].mxu0 %v3389
        %v3425 = vpop.f32.mrb[0].mxu0
        %v3426 = vadd.f32 %v3362, %v3425
        %v3427 = vpop.f32.mrb[0].mxu0
        %v3428 = vpop.f32.mrb[0].mxu0
        %v3429 = vpop.f32.mrb[0].mxu0
        %3430 = vdwg.mxu0
        %v3431 = vadd.f32 %v3244, %v3426
        %v3432 = vld [vmem:[%s18] sm:$0x1]
        %v3433 = vld [vmem:[%s19] sm:$0x1]
        %v3434 = vsel %vm1795, %v3431, 0.0
        %3435 = vadd.xlane.f32.xlu0 %v3434
        %v3436 = vpop.xlane.xlu0 %3435
        %v3437 = vmul.f32 %v3436, %v1799
        %v3438 = vsub.f32 %v3431, %v3437
        %v3439 = vmul.f32 %v3438, %v3438
        %v3440 = vsel %vm1795, %v3439, 0.0
        %3441 = vadd.xlane.f32.xlu0 %v3440
        %v3442 = vpop.xlane.xlu0 %3441
        %v3443 = vmul.f32 %v3442, %v1799
        %v3444 = vadd.f32 %v3443, 1e-05
        %v3445 = vrsqrt.pop %v3444
        %v3446 = vmul.f32 %v3438, %v3445
        %v3448 = vlaneseq
        %v3449 = vshrl.u32 %v3448, 7
        %v3450 = vsub.s32 0, %v3449
        %v3451 = vrot.slane %v3432, %v3450
        %v3453 = vmul.f32 %v3446, %v3451
        %v3455 = vlaneseq
        %v3456 = vshrl.u32 %v3455, 7
        %v3457 = vsub.s32 0, %v3456
        %v3458 = vrot.slane %v3433, %v3457
        %v3460 = vadd.f32 %v3453, %v3458
        %3461 = vst.msk [vmem:[%s637] sm:$0xf] %vm1795, %v3460
        %s3462 = sand.u32 %s468, 1
        %s3463 = scalar_lea.sflag [#allocation4], %s3462
        %s3464 = sand.u32 %s468, 1
        %s3465 = smul.addr %s3464, 4
        %s3466 = scalar_lea.vmem [#allocation5], %s3465
        // Predicated region
        $region105: #{tpu_custom_call.1} parent=99 // pred_check
          %p3467 = pneg %p478
        $region106: #{tpu_custom_call.1} parent=99 // pred_check_branch
          %3469 = sbr.rel (%p3467) target = $region108
        $region107: #{tpu_custom_call.1} parent=99 // pred_region
          %s3471 = ssub.s32 64, 64
          %3472 = vsyncadd %s3463, %s3471
          %s3473 = smul.addr %s35, 64
          %s3474 = scalar_lea.hbm %s20, %s3473
          %s3476 = sshll.u32 %s3466, 4
          %s3477 = int_to_ptr.vmem [resolvable:$true] %s3476
          %3479 = dma.vmem_to_hbm [thread:$0]  %s3477, 64, %s3474, %s3463
        $region108: #{tpu_custom_call.1} parent=99 // pred_fallthru
          _
      $region100: #{tpu_custom_call.1} parent=5 // pred_fallthru
        _
      %p3480 = scmp.le.s32.totalorder 2, %s30
      // Predicated region
      $region109: #{tpu_custom_call.1} parent=5 // pred_check
        %p3481 = pneg %p3480
      $region110: #{tpu_custom_call.1} parent=5 // pred_check_branch
        %3483 = sbr.rel (%p3481) target = $region112
      $region111: #{tpu_custom_call.1} parent=5 // pred_region
        %s3484 = ssub.s32 %s30, 2
        // Predicated region
        $region113: #{tpu_custom_call.1} parent=111 // pred_check
          %p3485 = pneg %p484
        $region114: #{tpu_custom_call.1} parent=111 // pred_check_branch
          %3487 = sbr.rel (%p3485) target = $region116
        $region115: #{tpu_custom_call.1} parent=111 // pred_region
          %s3488 = sand.u32 %s469, 1
          %s3489 = scalar_lea.sflag [#allocation4], %s3488
          %s3490 = sand.u32 %s469, 1
          %s3491 = smul.addr %s3490, 4
          %s3492 = scalar_lea.vmem [#allocation5], %s3491
          %3493 = dma.done %s3489, 64
        $region116: #{tpu_custom_call.1} parent=111 // pred_fallthru
          _
      $region112: #{tpu_custom_call.1} parent=5 // pred_fallthru
        _
    $region6: #{tpu_custom_call.1} parent=1 // loop_footer
      %s34 = sadd.s32 1, %s30
    $region7: #{tpu_custom_call.1} parent=1 // loop_footer_branch
      %29 = sbr.rel target = $region3
    $region8: #{tpu_custom_call.1} parent=1 // loop_exit
      _
    %3494 = vsyncpa [#allocation3], 1
    %s3495 = scalar_lea.sflag [#allocation3], 1
    %3496 = vsyncpa %s3495, 1
    %3497 = vsyncpa [#allocation4], 1
    %s3498 = scalar_lea.sflag [#allocation4], 1
    %3499 = vsyncpa %s3498, 1

</llo_original>
